<compile_context>
chip_gen: v7x
topology: tpu7x:2x2x1
jax: 0.10.0
libtpu: 0.0.40
codegen_flags: <defaults>
</compile_context>

<pallas_src>
import functools
import inspect

import jax
import jax.numpy as jnp
from jax.experimental import pallas as pl
from jax.experimental.pallas import tpu as pltpu


# ----------------------------------------------------------------------------
# Kernel
# ----------------------------------------------------------------------------
def moe_kernel(x_ref, wr_ref, br_ref, w1_ref, b1_ref, w2_ref, b2_ref,
               logits_ref, out_ref, scores_ref, acc_ref, *, hidden_dim):
    """One (token_tile, eh_tile) step of the fused soft-MoE forward.

    Grid: (token tiles, EH chunks).  The EH axis is a reduction axis: `acc_ref`
    holds the f32 output accumulator for the current token tile.

    x_ref:      (TN, Cp)   f32   token tile (feature-padded)
    wr_ref:     (Cp, Ep)   bf16  router weight (pad cols zero)
    br_ref:     (1, Ep)    f32   router bias (pad cols -1e30 -> softmax wt 0)
    w1_ref:     (Cp, eh)   bf16  this chunk of all experts' layer-1 weights
    b1_ref:     (1, eh)    f32   this chunk of all experts' layer-1 biases
    w2_ref:     (eh, Cp)   bf16  this chunk of all experts' layer-2 weights
    b2_ref:     (Ep, Cp)   bf16  stacked layer-2 biases
    logits_ref: (TN, Ep)   f32   clean router logits (output)
    out_ref:    (TN, Cp)         mixed expert output (output)
    scores_ref: (TN, Ep)   f32   scratch: softmax routing scores
    acc_ref:    (TN, Cp)   f32   scratch: output accumulator
    """
    k = pl.program_id(1)

    @pl.when(k == 0)
    def _init():
        xb = x_ref[...].astype(jnp.bfloat16)
        # Router logits.  Padded expert columns carry a -1e30 bias so their
        # softmax weight underflows to exactly 0.
        logits = jnp.dot(xb, wr_ref[...], preferred_element_type=jnp.float32)
        logits = logits + br_ref[...]
        logits_ref[...] = logits

        m = jnp.max(logits, axis=-1, keepdims=True)
        e = jnp.exp(logits - m)
        denom = jnp.sum(e, axis=-1, keepdims=True)
        scores = e * pl.reciprocal(denom, approx=True)
        scores_ref[...] = scores

        # Score-weighted layer-2 bias term: sum_e scores[:, e] * b2[e, :]
        # (tiny matmul) seeds the accumulator.
        acc_ref[...] = jnp.dot(scores.astype(jnp.bfloat16), b2_ref[...],
                               preferred_element_type=jnp.float32)

    # Fused layer-1 matmul over this EH chunk (all experts concatenated).
    xb = x_ref[...].astype(jnp.bfloat16)
    h = jnp.dot(xb, w1_ref[...], preferred_element_type=jnp.float32) + b1_ref[...]
    h = jnp.maximum(h, 0.0)  # ReLU; Dropout(0.1) = identity (eval semantics).

    # Spread each expert's score across its hidden columns of this chunk.
    # Column c (global index k*eh + c) belongs to expert floor(global / H);
    # build the (Ep, eh) 0/1 selector in-kernel (no DMA'd expand matrix) and
    # apply it with one small bf16 matmul.
    e_pad = scores_ref.shape[1]
    eh_t = h.shape[1]
    col = jax.lax.broadcasted_iota(jnp.int32, (e_pad, eh_t), 1) + k * eh_t
    row_start = jax.lax.broadcasted_iota(jnp.int32, (e_pad, eh_t), 0) * hidden_dim
    mask = (col >= row_start) & (col < row_start + hidden_dim)
    expand = jnp.where(mask, 1.0, 0.0).astype(jnp.bfloat16)
    s_exp = jnp.dot(scores_ref[...].astype(jnp.bfloat16), expand,
                    preferred_element_type=jnp.float32)

    # Fused layer-2 + score-weighted mix for this chunk, accumulated in f32.
    acc_ref[...] += jnp.dot((h * s_exp).astype(jnp.bfloat16), w2_ref[...],
                            preferred_element_type=jnp.float32)

    @pl.when(k == pl.num_programs(1) - 1)
    def _finalize():
        out_ref[...] = acc_ref[...].astype(out_ref.dtype)


# ----------------------------------------------------------------------------
# Wrapper helpers
# ----------------------------------------------------------------------------
def _round_up(n, m):
    return ((n + m - 1) // m) * m


def _chip_config():
    """Generation-specific tiling defaults (best effort; safe fallback)."""
    try:
        kind = jax.devices()[0].device_kind.lower()
    except Exception:  # pragma: no cover
        kind = ""
    if "v7" in kind:
        return dict(kind=kind, align=256, token_tile=512, eh_tile=2048,
                    vmem_cap=56 << 20, resident_budget=16 << 20, two_cores=True)
    if "v6" in kind:
        return dict(kind=kind, align=256, token_tile=768, eh_tile=2048,
                    vmem_cap=100 << 20, resident_budget=36 << 20, two_cores=False)
    # v5e / unknown: 128-wide MXU, slow HBM -> prefer residency, small tiles.
    return dict(kind=kind, align=128, token_tile=256, eh_tile=2048,
                vmem_cap=100 << 20, resident_budget=36 << 20, two_cores=False)


def _supports_buffered_blockspec():
    if not hasattr(pl, "Buffered"):
        return False
    try:
        return "pipeline_mode" in inspect.signature(pl.BlockSpec).parameters
    except (TypeError, ValueError):  # pragma: no cover
        return True


def prepare_moe_params(params, *, config=None):
    """One-time layout plumbing: fuse, pad and bf16-cast the expert weights.

    Hoisted out of the per-call path so HBM is not re-written every forward.
    """
    cfg = config or _chip_config()
    align = cfg["align"]
    wr, br, w1, b1, w2, b2 = (params["wr"], params["br"], params["w1"],
                              params["b1"], params["w2"], params["b2"])
    C, E = wr.shape
    H = w1.shape[2]
    EH = E * H

    C_pad = _round_up(C, align)
    E_pad = _round_up(E, 128)

    # Fully resident expert weights when the bf16 slabs comfortably fit VMEM
    # (most valuable on v5e's slow HBM); otherwise stream EH chunks.
    eh_full = _round_up(EH, align)
    resident_bytes = 2 * (C_pad * eh_full) * 2  # W1 + W2 in bf16
    if resident_bytes <= cfg["resident_budget"]:
        eh_tile = eh_full
    else:
        eh_tile = min(cfg["eh_tile"], eh_full)
    EH_pad = _round_up(EH, eh_tile)

    bf16, f32 = jnp.bfloat16, jnp.float32

    wr_p = jnp.zeros((C_pad, E_pad), bf16).at[:C, :E].set(wr.astype(bf16))
    # Padded expert columns get -1e30 so their softmax weight is exactly 0.
    br_p = jnp.full((1, E_pad), -1e30, f32).at[:, :E].set(
        br.reshape(1, E).astype(f32))

    # W1: (E, C, H) -> (C, E*H) expert-major columns; b1: (E, 1, H) -> (1, E*H).
    w1_cat = jnp.transpose(w1, (1, 0, 2)).reshape(C, EH)
    w1_p = jnp.zeros((C_pad, EH_pad), bf16).at[:C, :EH].set(w1_cat.astype(bf16))
    b1_p = jnp.zeros((1, EH_pad), f32).at[:, :EH].set(
        b1.reshape(1, EH).astype(f32))

    # W2: (E, H, C) -> (E*H, C) expert-major rows; b2: (E, 1, C) -> (E, C).
    w2_p = jnp.zeros((EH_pad, C_pad), bf16).at[:EH, :C].set(
        w2.reshape(EH, C).astype(bf16))
    b2_p = jnp.zeros((E_pad, C_pad), bf16).at[:E, :C].set(
        b2.reshape(E, C).astype(bf16))

    return dict(wr=wr_p, br=br_p, w1=w1_p, b1=b1_p, w2=w2_p, b2=b2_p,
                C=C, E=E, H=H, EH=EH, C_pad=C_pad, E_pad=E_pad,
                EH_pad=EH_pad, eh_tile=eh_tile, config=cfg)


# ----------------------------------------------------------------------------
# Forward
# ----------------------------------------------------------------------------
def moe_forward(x, fused, *, token_tile=None):
    """Reproduces MoE.forward (soft=True) using pre-fused params.

    x: (B, T, C) float32.
    Returns (clean_logits, topk_indices, expert_positions, output).
    """
    B, T, C = x.shape
    cfg = fused["config"]
    align = cfg["align"]
    E, H = fused["E"], fused["H"]
    C_pad, E_pad = fused["C_pad"], fused["E_pad"]
    EH_pad, eh_tile = fused["EH_pad"], fused["eh_tile"]
    assert C == fused["C"], "input feature dim does not match prepared params"

    N = B * T
    if token_tile is None:
        token_tile = cfg["token_tile"]
    # Don't over-pad tiny token counts; keep the MXU M-dim aligned.
    token_tile = max(align, min(token_tile, _round_up(N, align)))
    N_pad = _round_up(N, token_tile)
    # v7x: try to give each of the 2 TensorCores at least one token tile.
    if cfg.get("two_cores") and N_pad // token_tile < 2 and token_tile >= 2 * align:
        token_tile //= 2
        N_pad = _round_up(N, token_tile)

    assert N_pad % token_tile == 0 and EH_pad % eh_tile == 0
    grid = (N_pad // token_tile, EH_pad // eh_tile)

    # --- input padding (skipped entirely when already aligned) --------------
    x_flat = x.reshape(N, C)
    if N_pad == N and C_pad == C:
        x_p = x_flat
    else:
        x_p = jnp.zeros((N_pad, C_pad), x.dtype).at[:N, :C].set(x_flat)

    # --- advisory cost estimate ----------------------------------------------
    n_tok_tiles = grid[0]
    flops = 2 * N_pad * (C_pad * E_pad + C_pad * EH_pad + E_pad * EH_pad +
                         EH_pad * C_pad + E_pad * C_pad)
    weight_bytes = (fused["wr"].size * 2 + fused["br"].size * 4 +
                    fused["w1"].size * 2 + fused["b1"].size * 4 +
                    fused["w2"].size * 2 + fused["b2"].size * 2)
    bytes_accessed = int(x_p.size * 4 + n_tok_tiles * weight_bytes +
                         N_pad * E_pad * 4 + N_pad * C_pad * 4)
    cost = pl.CostEstimate(flops=int(flops), transcendentals=int(N_pad * E_pad),
                           bytes_accessed=bytes_accessed)

    # --- VMEM budget from the actual tile/buffer sizes ----------------------
    vmem_est = (
        2 * token_tile * C_pad * 4          # x tile (double-buffered, f32)
        + C_pad * E_pad * 2                 # router W (bf16)
        + 8 * E_pad * 4                     # router bias (padded sublanes)
        + 2 * C_pad * eh_tile * 2           # W1 chunk (bf16, double-buffered)
        + 2 * 8 * eh_tile * 4               # b1 chunk
        + 2 * eh_tile * C_pad * 2           # W2 chunk (bf16, double-buffered)
        + E_pad * C_pad * 2                 # b2 stack (bf16)
        + 2 * token_tile * E_pad * 4        # logits output
        + 2 * token_tile * C_pad * 4        # output
        + token_tile * E_pad * 4            # scores scratch
        + token_tile * C_pad * 4            # accumulator scratch
        + 3 * token_tile * eh_tile * 4      # in-body temporaries (h, s_exp, ...)
    )
    vmem_limit = int(min(cfg["vmem_cap"], max(vmem_est + (8 << 20), 32 << 20)))

    def _build(single_buffer_consts):
        def const_spec(shape):
            # Grid-invariant inputs: one VMEM buffer is enough.
            if single_buffer_consts:
                return pl.BlockSpec(shape, lambda i, k: (0, 0),
                                    pipeline_mode=pl.Buffered(1))
            return pl.BlockSpec(shape, lambda i, k: (0, 0))

        if grid[1] == 1:
            # Fully resident expert weights: they are grid-invariant too.
            w1_spec = const_spec((C_pad, eh_tile))
            b1_spec = const_spec((1, eh_tile))
            w2_spec = const_spec((eh_tile, C_pad))
        else:
            w1_spec = pl.BlockSpec((C_pad, eh_tile), lambda i, k: (0, k))
            b1_spec = pl.BlockSpec((1, eh_tile), lambda i, k: (0, k))
            w2_spec = pl.BlockSpec((eh_tile, C_pad), lambda i, k: (k, 0))

        grid_spec = pltpu.PrefetchScalarGridSpec(
            num_scalar_prefetch=0,
            grid=grid,
            in_specs=[
                pl.BlockSpec((token_tile, C_pad), lambda i, k: (i, 0)),  # x
                const_spec((C_pad, E_pad)),                              # wr
                const_spec((1, E_pad)),                                  # br
                w1_spec,                                                 # W1 chunk
                b1_spec,                                                 # b1 chunk
                w2_spec,                                                 # W2 chunk
                const_spec((E_pad, C_pad)),                              # b2 stack
            ],
            out_specs=[
                pl.BlockSpec((token_tile, E_pad), lambda i, k: (i, 0)),  # logits
                pl.BlockSpec((token_tile, C_pad), lambda i, k: (i, 0)),  # output
            ],
            scratch_shapes=[
                pltpu.VMEM((token_tile, E_pad), jnp.float32),   # scores
                pltpu.VMEM((token_tile, C_pad), jnp.float32),   # accumulator
            ],
        )
        return pl.pallas_call(
            functools.partial(moe_kernel, hidden_dim=H),
            out_shape=(jax.ShapeDtypeStruct((N_pad, E_pad), jnp.float32),
                       jax.ShapeDtypeStruct((N_pad, C_pad), x.dtype)),
            grid_spec=grid_spec,
            compiler_params=pltpu.CompilerParams(
                dimension_semantics=("parallel", "arbitrary"),
                vmem_limit_bytes=vmem_limit),
            cost_estimate=cost,
        )

    args = (x_p, fused["wr"], fused["br"], fused["w1"], fused["b1"],
            fused["w2"], fused["b2"])
    if _supports_buffered_blockspec():
        try:
            logits_p, out_p = _build(single_buffer_consts=True)(*args)
        except Exception:
            # Fallback if this JAX build rejects pipeline_mode=pl.Buffered(1).
            logits_p, out_p = _build(single_buffer_consts=False)(*args)
    else:
        logits_p, out_p = _build(single_buffer_consts=False)(*args)

    clean_logits = logits_p[:N, :E].reshape(B, T, E)
    output = out_p[:N, :C].reshape(B, T, C)

    # Glue matching the torch module in soft mode:
    #   topk_indices = arange(E) repeated over (B, T)
    #   expert_positions[e] = all flat token positions (every expert sees all)
    topk_indices = jnp.broadcast_to(jnp.arange(E, dtype=jnp.int32), (B, T, E))
    expert_positions = {e: [jnp.arange(N, dtype=jnp.int32)] for e in range(E)}

    return clean_logits, topk_indices, expert_positions, output


# ----------------------------------------------------------------------------
# Parameters / reference
# ----------------------------------------------------------------------------
def init_params(key, input_dim, hidden_dim, num_experts):
    """Deterministic synthetic parameters (shapes match the torch module)."""
    ks = jax.random.split(key, 6)
    scale_r = 1.0 / jnp.sqrt(input_dim)
    scale_1 = 1.0 / jnp.sqrt(input_dim)
    scale_2 = 1.0 / jnp.sqrt(hidden_dim)
    return {
        # router: nn.Linear(input_dim, num_experts) -> stored transposed (C, E)
        "wr": jax.random.uniform(ks[0], (input_dim, num_experts), jnp.float32,
                                 -scale_r, scale_r),
        "br": jax.random.uniform(ks[1], (1, num_experts), jnp.float32,
                                 -scale_r, scale_r),
        # expert layer 1: nn.Linear(input_dim, hidden_dim), stacked & transposed
        "w1": jax.random.uniform(ks[2], (num_experts, input_dim, hidden_dim),
                                 jnp.float32, -scale_1, scale_1),
        "b1": jax.random.uniform(ks[3], (num_experts, 1, hidden_dim),
                                 jnp.float32, -scale_1, scale_1),
        # expert layer 2: nn.Linear(hidden_dim, input_dim), stacked & transposed
        "w2": jax.random.uniform(ks[4], (num_experts, hidden_dim, input_dim),
                                 jnp.float32, -scale_2, scale_2),
        "b2": jax.random.uniform(ks[5], (num_experts, 1, input_dim),
                                 jnp.float32, -scale_2, scale_2),
    }


def moe_reference(x, params):
    """Pure-JAX f32 reference for correctness checking."""
    wr, br, w1, b1, w2, b2 = (params["wr"], params["br"], params["w1"],
                              params["b1"], params["w2"], params["b2"])
    logits = jnp.einsum("btc,ce->bte", x, wr) + br[0]
    scores = jax.nn.softmax(logits, axis=-1)
    h = jnp.maximum(jnp.einsum("btc,ech->beth", x, w1) + b1[None], 0.0)
    y = jnp.einsum("beth,ehc->betc", h, w2) + b2[None]
    out = jnp.einsum("bte,betc->btc", scores, y)
    return logits, out


# ----------------------------------------------------------------------------
if __name__ == "__main__":
    # Small shapes consistent with the module's forward: x is (B, T, C).
    B, T, C, H, E, K = 2, 8, 32, 64, 4, 2

    key = jax.random.PRNGKey(0)
    k_x, k_p = jax.random.split(key)
    x = jax.random.normal(k_x, (B, T, C), dtype=jnp.float32)
    params = init_params(k_p, C, H, E)

    # One-time weight fusion / padding / bf16 cast (hoisted out of forward).
    fused = prepare_moe_params(params)

    clean_logits, topk_indices, expert_positions, output = moe_forward(x, fused)
    jax.block_until_ready((clean_logits, output))

    # Correctness check vs pure-JAX f32 reference (bf16 MXU inputs -> ~1e-2 tol).
    ref_logits, ref_out = moe_reference(x, params)
    assert jnp.allclose(clean_logits, ref_logits, atol=2e-2, rtol=2e-2), (
        "logits max err", float(jnp.max(jnp.abs(clean_logits - ref_logits))))
    assert jnp.allclose(output, ref_out, atol=2e-2, rtol=2e-2), (
        "output max err", float(jnp.max(jnp.abs(output - ref_out))))
    assert topk_indices.shape == (B, T, E)
    assert output.shape == (B, T, C)

    print("KERNEL_OK")
</pallas_src>

<mosaic_0001>
module attributes {stable_mosaic.version = 11 : i64} {
  func.func @moe_kernel(%arg0: i32, %arg1: i32, %arg2: memref<128x128xf32, #tpu.memory_space<vmem>>, %arg3: memref<128x128xbf16, #tpu.memory_space<vmem>>, %arg4: memref<1x128xf32, #tpu.memory_space<vmem>>, %arg5: memref<128x256xbf16, #tpu.memory_space<vmem>>, %arg6: memref<1x256xf32, #tpu.memory_space<vmem>>, %arg7: memref<256x128xbf16, #tpu.memory_space<vmem>>, %arg8: memref<128x128xbf16, #tpu.memory_space<vmem>>, %arg9: memref<128x128xf32, #tpu.memory_space<vmem>>, %arg10: memref<128x128xf32, #tpu.memory_space<vmem>>, %arg11: memref<128x128xf32, #tpu.memory_space<vmem>>, %arg12: memref<128x128xf32, #tpu.memory_space<vmem>>) attributes {dimension_semantics = [#tpu.dimension_semantics<parallel>, #tpu.dimension_semantics<arbitrary>], iteration_bounds = array<i64: 1, 1>, scalar_prefetch = 0 : i64, scratch_operands = 2 : i64, tpu.core_type = #tpu.core_type<tc>, window_params = [{transform_indices = @transform_0, window_bounds = array<i64: 128, 128>}, {pipeline_mode = #tpu.pipeline_mode<synchronous>, transform_indices = @transform_1, window_bounds = array<i64: 128, 128>}, {pipeline_mode = #tpu.pipeline_mode<synchronous>, transform_indices = @transform_2, window_bounds = array<i64: 1, 128>}, {pipeline_mode = #tpu.pipeline_mode<synchronous>, transform_indices = @transform_3, window_bounds = array<i64: 128, 256>}, {pipeline_mode = #tpu.pipeline_mode<synchronous>, transform_indices = @transform_4, window_bounds = array<i64: 1, 256>}, {pipeline_mode = #tpu.pipeline_mode<synchronous>, transform_indices = @transform_5, window_bounds = array<i64: 256, 128>}, {pipeline_mode = #tpu.pipeline_mode<synchronous>, transform_indices = @transform_6, window_bounds = array<i64: 128, 128>}, {transform_indices = @transform_7, window_bounds = array<i64: 128, 128>}, {transform_indices = @transform_8, window_bounds = array<i64: 128, 128>}]} {
    %c0_i32 = arith.constant 0 : i32
    %0 = arith.cmpi eq, %arg1, %c0_i32 : i32
    %1 = arith.extui %0 : i1 to i32
    %c0_i32_0 = arith.constant 0 : i32
    %2 = arith.cmpi ne, %1, %c0_i32_0 : i32
    scf.if %2 {
      %c0_22 = arith.constant 0 : index
      %c0_23 = arith.constant 0 : index
      %41 = vector.load %arg2[%c0_22, %c0_23] : memref<128x128xf32, #tpu.memory_space<vmem>>, vector<128x128xf32>
      %42 = arith.truncf %41 : vector<128x128xf32> to vector<128x128xbf16>
      %c0_24 = arith.constant 0 : index
      %c0_25 = arith.constant 0 : index
      %43 = vector.load %arg3[%c0_24, %c0_25] : memref<128x128xbf16, #tpu.memory_space<vmem>>, vector<128x128xbf16>
      %cst_26 = arith.constant dense<0.000000e+00> : vector<128x128xf32>
      %44 = tpu.matmul %42, %43, %cst_26 {dimension_numbers = #tpu.dot_dimension_numbers<[1], [0], [0], [1], [0, 0, 1, 1], [], []>} : vector<128x128xbf16>, vector<128x128xbf16>, vector<128x128xf32> -> vector<128x128xf32>
      %c0_27 = arith.constant 0 : index
      %c0_28 = arith.constant 0 : index
      %45 = vector.load %arg4[%c0_27, %c0_28] : memref<1x128xf32, #tpu.memory_space<vmem>>, vector<1x128xf32>
      %46 = vector.broadcast %45 : vector<1x128xf32> to vector<128x128xf32>
      %47 = arith.addf %44, %46 : vector<128x128xf32>
      %c0_29 = arith.constant 0 : index
      %c0_30 = arith.constant 0 : index
      %48 = vector.load %arg9[%c0_29, %c0_30] : memref<128x128xf32, #tpu.memory_space<vmem>>, vector<128x128xf32>
      tpu.vector_store %arg9[%c0_29, %c0_30], %47 {strides = array<i32>} : memref<128x128xf32, #tpu.memory_space<vmem>>, vector<128x128xf32>,
      %cst_31 = arith.constant dense<0xFF800000> : vector<128xf32>
      %49 = vector.multi_reduction <maximumf>, %47, %cst_31 [1] : vector<128x128xf32> to vector<128xf32>
      %50 = vector.shape_cast %49 : vector<128xf32> to vector<128x1xf32>
      %51 = vector.broadcast %50 : vector<128x1xf32> to vector<128x128xf32>
      %52 = arith.subf %47, %51 : vector<128x128xf32>
      %53 = math.exp %52 : vector<128x128xf32>
      %cst_32 = arith.constant dense<0.000000e+00> : vector<128xf32>
      %54 = vector.multi_reduction <add>, %53, %cst_32 [1] : vector<128x128xf32> to vector<128xf32>
      %55 = vector.shape_cast %54 : vector<128xf32> to vector<128x1xf32>
      %56 = tpu.reciprocal %55 {approx = true} : vector<128x1xf32> -> vector<128x1xf32>
      %57 = vector.broadcast %56 : vector<128x1xf32> to vector<128x128xf32>
      %58 = arith.mulf %53, %57 : vector<128x128xf32>
      %c0_33 = arith.constant 0 : index
      %c0_34 = arith.constant 0 : index
      %59 = vector.load %arg11[%c0_33, %c0_34] : memref<128x128xf32, #tpu.memory_space<vmem>>, vector<128x128xf32>
      tpu.vector_store %arg11[%c0_33, %c0_34], %58 {strides = array<i32>} : memref<128x128xf32, #tpu.memory_space<vmem>>, vector<128x128xf32>,
      %60 = arith.truncf %58 : vector<128x128xf32> to vector<128x128xbf16>
      %c0_35 = arith.constant 0 : index
      %c0_36 = arith.constant 0 : index
      %61 = vector.load %arg8[%c0_35, %c0_36] : memref<128x128xbf16, #tpu.memory_space<vmem>>, vector<128x128xbf16>
      %cst_37 = arith.constant dense<0.000000e+00> : vector<128x128xf32>
      %62 = tpu.matmul %60, %61, %cst_37 {dimension_numbers = #tpu.dot_dimension_numbers<[1], [0], [0], [1], [0, 0, 1, 1], [], []>} : vector<128x128xbf16>, vector<128x128xbf16>, vector<128x128xf32> -> vector<128x128xf32>
      %c0_38 = arith.constant 0 : index
      %c0_39 = arith.constant 0 : index
      %63 = vector.load %arg12[%c0_38, %c0_39] : memref<128x128xf32, #tpu.memory_space<vmem>>, vector<128x128xf32>
      tpu.vector_store %arg12[%c0_38, %c0_39], %62 {strides = array<i32>} : memref<128x128xf32, #tpu.memory_space<vmem>>, vector<128x128xf32>,
    } else {
    }
    %c0 = arith.constant 0 : index
    %c0_1 = arith.constant 0 : index
    %3 = vector.load %arg2[%c0, %c0_1] : memref<128x128xf32, #tpu.memory_space<vmem>>, vector<128x128xf32>
    %4 = arith.truncf %3 : vector<128x128xf32> to vector<128x128xbf16>
    %c0_2 = arith.constant 0 : index
    %c0_3 = arith.constant 0 : index
    %5 = vector.load %arg5[%c0_2, %c0_3] : memref<128x256xbf16, #tpu.memory_space<vmem>>, vector<128x256xbf16>
    %cst = arith.constant dense<0.000000e+00> : vector<128x256xf32>
    %6 = tpu.matmul %4, %5, %cst {dimension_numbers = #tpu.dot_dimension_numbers<[1], [0], [0], [1], [0, 0, 1, 1], [], []>} : vector<128x128xbf16>, vector<128x256xbf16>, vector<128x256xf32> -> vector<128x256xf32>
    %c0_4 = arith.constant 0 : index
    %c0_5 = arith.constant 0 : index
    %7 = vector.load %arg6[%c0_4, %c0_5] : memref<1x256xf32, #tpu.memory_space<vmem>>, vector<1x256xf32>
    %8 = vector.broadcast %7 : vector<1x256xf32> to vector<128x256xf32>
    %9 = arith.addf %6, %8 : vector<128x256xf32>
    %cst_6 = arith.constant 0.000000e+00 : f32
    %10 = vector.broadcast %cst_6 : f32 to vector<128x256xf32>
    %11 = arith.maximumf %9, %10 : vector<128x256xf32>
    %12 = tpu.iota {dimensions = array<i32: 1>} : vector<128x256xi32>
    %c256_i32 = arith.constant 256 : i32
    %13 = arith.muli %arg1, %c256_i32 : i32
    %14 = vector.broadcast %13 : i32 to vector<128x256xi32>
    %15 = arith.addi %12, %14 : vector<128x256xi32>
    %16 = tpu.iota {dimensions = array<i32: 0>} : vector<128x256xi32>
    %c64_i32 = arith.constant 64 : i32
    %17 = vector.broadcast %c64_i32 : i32 to vector<128x256xi32>
    %18 = arith.muli %16, %17 : vector<128x256xi32>
    %19 = arith.cmpi sge, %15, %18 : vector<128x256xi32>
    %c64_i32_7 = arith.constant 64 : i32
    %20 = vector.broadcast %c64_i32_7 : i32 to vector<128x256xi32>
    %21 = arith.addi %18, %20 : vector<128x256xi32>
    %22 = arith.cmpi slt, %15, %21 : vector<128x256xi32>
    %23 = arith.andi %19, %22 : vector<128x256xi1>
    %cst_8 = arith.constant 1.000000e+00 : f32
    %cst_9 = arith.constant 0.000000e+00 : f32
    %24 = vector.broadcast %cst_8 : f32 to vector<128x256xf32>
    %25 = vector.broadcast %cst_9 : f32 to vector<128x256xf32>
    %26 = arith.select %23, %24, %25 : vector<128x256xi1>, vector<128x256xf32>
    %27 = arith.truncf %26 : vector<128x256xf32> to vector<128x256xbf16>
    %c0_10 = arith.constant 0 : index
    %c0_11 = arith.constant 0 : index
    %28 = vector.load %arg11[%c0_10, %c0_11] : memref<128x128xf32, #tpu.memory_space<vmem>>, vector<128x128xf32>
    %29 = arith.truncf %28 : vector<128x128xf32> to vector<128x128xbf16>
    %cst_12 = arith.constant dense<0.000000e+00> : vector<128x256xf32>
    %30 = tpu.matmul %29, %27, %cst_12 {dimension_numbers = #tpu.dot_dimension_numbers<[1], [0], [0], [1], [0, 0, 1, 1], [], []>} : vector<128x128xbf16>, vector<128x256xbf16>, vector<128x256xf32> -> vector<128x256xf32>
    %c0_13 = arith.constant 0 : index
    %c0_14 = arith.constant 0 : index
    %31 = vector.load %arg12[%c0_13, %c0_14] : memref<128x128xf32, #tpu.memory_space<vmem>>, vector<128x128xf32>
    %32 = arith.mulf %11, %30 : vector<128x256xf32>
    %33 = arith.truncf %32 : vector<128x256xf32> to vector<128x256xbf16>
    %c0_15 = arith.constant 0 : index
    %c0_16 = arith.constant 0 : index
    %34 = vector.load %arg7[%c0_15, %c0_16] : memref<256x128xbf16, #tpu.memory_space<vmem>>, vector<256x128xbf16>
    %cst_17 = arith.constant dense<0.000000e+00> : vector<128x128xf32>
    %35 = tpu.matmul %33, %34, %cst_17 {dimension_numbers = #tpu.dot_dimension_numbers<[1], [0], [0], [1], [0, 0, 1, 1], [], []>} : vector<128x256xbf16>, vector<256x128xbf16>, vector<128x128xf32> -> vector<128x128xf32>
    %36 = arith.addf %31, %35 : vector<128x128xf32>
    %c0_18 = arith.constant 0 : index
    %c0_19 = arith.constant 0 : index
    %37 = vector.load %arg12[%c0_18, %c0_19] : memref<128x128xf32, #tpu.memory_space<vmem>>, vector<128x128xf32>
    tpu.vector_store %arg12[%c0_18, %c0_19], %36 {strides = array<i32>} : memref<128x128xf32, #tpu.memory_space<vmem>>, vector<128x128xf32>,
    %c0_i32_20 = arith.constant 0 : i32
    %38 = arith.cmpi eq, %arg1, %c0_i32_20 : i32
    %39 = arith.extui %38 : i1 to i32
    %c0_i32_21 = arith.constant 0 : i32
    %40 = arith.cmpi ne, %39, %c0_i32_21 : i32
    scf.if %40 {
      %c0_22 = arith.constant 0 : index
      %c0_23 = arith.constant 0 : index
      %41 = vector.load %arg12[%c0_22, %c0_23] : memref<128x128xf32, #tpu.memory_space<vmem>>, vector<128x128xf32>
      %c0_24 = arith.constant 0 : index
      %c0_25 = arith.constant 0 : index
      %42 = vector.load %arg10[%c0_24, %c0_25] : memref<128x128xf32, #tpu.memory_space<vmem>>, vector<128x128xf32>
      tpu.vector_store %arg10[%c0_24, %c0_25], %41 {strides = array<i32>} : memref<128x128xf32, #tpu.memory_space<vmem>>, vector<128x128xf32>,
    } else {
    }
    return
  }
  func.func @transform_0(%arg0: i32, %arg1: i32) -> (i32, i32) {
    %c0_i32 = arith.constant 0 : i32
    %c0_i32_0 = arith.constant 0 : i32
    return %arg0, %c0_i32 : i32, i32
  }
  func.func @transform_1(%arg0: i32, %arg1: i32) -> (i32, i32) {
    %c0_i32 = arith.constant 0 : i32
    %c0_i32_0 = arith.constant 0 : i32
    %c0_i32_1 = arith.constant 0 : i32
    return %c0_i32, %c0_i32_0 : i32, i32
  }
  func.func @transform_2(%arg0: i32, %arg1: i32) -> (i32, i32) {
    %c0_i32 = arith.constant 0 : i32
    %c0_i32_0 = arith.constant 0 : i32
    %c0_i32_1 = arith.constant 0 : i32
    return %c0_i32, %c0_i32_0 : i32, i32
  }
  func.func @transform_3(%arg0: i32, %arg1: i32) -> (i32, i32) {
    %c0_i32 = arith.constant 0 : i32
    %c0_i32_0 = arith.constant 0 : i32
    %c0_i32_1 = arith.constant 0 : i32
    return %c0_i32, %c0_i32_0 : i32, i32
  }
  func.func @transform_4(%arg0: i32, %arg1: i32) -> (i32, i32) {
    %c0_i32 = arith.constant 0 : i32
    %c0_i32_0 = arith.constant 0 : i32
    %c0_i32_1 = arith.constant 0 : i32
    return %c0_i32, %c0_i32_0 : i32, i32
  }
  func.func @transform_5(%arg0: i32, %arg1: i32) -> (i32, i32) {
    %c0_i32 = arith.constant 0 : i32
    %c0_i32_0 = arith.constant 0 : i32
    %c0_i32_1 = arith.constant 0 : i32
    return %c0_i32, %c0_i32_0 : i32, i32
  }
  func.func @transform_6(%arg0: i32, %arg1: i32) -> (i32, i32) {
    %c0_i32 = arith.constant 0 : i32
    %c0_i32_0 = arith.constant 0 : i32
    %c0_i32_1 = arith.constant 0 : i32
    return %c0_i32, %c0_i32_0 : i32, i32
  }
  func.func @transform_7(%arg0: i32, %arg1: i32) -> (i32, i32) {
    %c0_i32 = arith.constant 0 : i32
    %c0_i32_0 = arith.constant 0 : i32
    return %arg0, %c0_i32 : i32, i32
  }
  func.func @transform_8(%arg0: i32, %arg1: i32) -> (i32, i32) {
    %c0_i32 = arith.constant 0 : i32
    %c0_i32_0 = arith.constant 0 : i32
    return %arg0, %c0_i32 : i32, i32
  }
}

module attributes {stable_mosaic.version = 11 : i64} {
  func.func @moe_kernel(%arg0: i32, %arg1: i32, %arg2: memref<128x128xf32, #tpu.memory_space<vmem>>, %arg3: memref<128x128xbf16, #tpu.memory_space<vmem>>, %arg4: memref<1x128xf32, #tpu.memory_space<vmem>>, %arg5: memref<128x256xbf16, #tpu.memory_space<vmem>>, %arg6: memref<1x256xf32, #tpu.memory_space<vmem>>, %arg7: memref<256x128xbf16, #tpu.memory_space<vmem>>, %arg8: memref<128x128xbf16, #tpu.memory_space<vmem>>, %arg9: memref<128x128xf32, #tpu.memory_space<vmem>>, %arg10: memref<128x128xf32, #tpu.memory_space<vmem>>, %arg11: memref<128x128xf32, #tpu.memory_space<vmem>>, %arg12: memref<128x128xf32, #tpu.memory_space<vmem>>) attributes {dimension_semantics = [#tpu.dimension_semantics<parallel>, #tpu.dimension_semantics<arbitrary>], iteration_bounds = array<i64: 1, 1>, scalar_prefetch = 0 : i64, scratch_operands = 2 : i64, tpu.core_type = #tpu.core_type<tc>, window_params = [{transform_indices = @transform_0, window_bounds = array<i64: 128, 128>}, {pipeline_mode = #tpu.pipeline_mode<synchronous>, transform_indices = @transform_1, window_bounds = array<i64: 128, 128>}, {pipeline_mode = #tpu.pipeline_mode<synchronous>, transform_indices = @transform_2, window_bounds = array<i64: 1, 128>}, {pipeline_mode = #tpu.pipeline_mode<synchronous>, transform_indices = @transform_3, window_bounds = array<i64: 128, 256>}, {pipeline_mode = #tpu.pipeline_mode<synchronous>, transform_indices = @transform_4, window_bounds = array<i64: 1, 256>}, {pipeline_mode = #tpu.pipeline_mode<synchronous>, transform_indices = @transform_5, window_bounds = array<i64: 256, 128>}, {pipeline_mode = #tpu.pipeline_mode<synchronous>, transform_indices = @transform_6, window_bounds = array<i64: 128, 128>}, {transform_indices = @transform_7, window_bounds = array<i64: 128, 128>}, {transform_indices = @transform_8, window_bounds = array<i64: 128, 128>}]} {
    %c0_i32 = arith.constant 0 : i32
    %0 = arith.cmpi eq, %arg1, %c0_i32 : i32
    %1 = arith.extui %0 : i1 to i32
    %c0_i32_0 = arith.constant 0 : i32
    %2 = arith.cmpi ne, %1, %c0_i32_0 : i32
    scf.if %2 {
      %c0_22 = arith.constant 0 : index
      %c0_23 = arith.constant 0 : index
      %41 = vector.load %arg2[%c0_22, %c0_23] : memref<128x128xf32, #tpu.memory_space<vmem>>, vector<128x128xf32>
      %42 = arith.truncf %41 : vector<128x128xf32> to vector<128x128xbf16>
      %c0_24 = arith.constant 0 : index
      %c0_25 = arith.constant 0 : index
      %43 = vector.load %arg3[%c0_24, %c0_25] : memref<128x128xbf16, #tpu.memory_space<vmem>>, vector<128x128xbf16>
      %cst_26 = arith.constant dense<0.000000e+00> : vector<128x128xf32>
      %44 = tpu.matmul %42, %43, %cst_26 {dimension_numbers = #tpu.dot_dimension_numbers<[1], [0], [0], [1], [0, 0, 1, 1], [], []>} : vector<128x128xbf16>, vector<128x128xbf16>, vector<128x128xf32> -> vector<128x128xf32>
      %c0_27 = arith.constant 0 : index
      %c0_28 = arith.constant 0 : index
      %45 = vector.load %arg4[%c0_27, %c0_28] : memref<1x128xf32, #tpu.memory_space<vmem>>, vector<1x128xf32>
      %46 = vector.broadcast %45 : vector<1x128xf32> to vector<128x128xf32>
      %47 = arith.addf %44, %46 : vector<128x128xf32>
      %c0_29 = arith.constant 0 : index
      %c0_30 = arith.constant 0 : index
      %48 = vector.load %arg9[%c0_29, %c0_30] : memref<128x128xf32, #tpu.memory_space<vmem>>, vector<128x128xf32>
      tpu.vector_store %arg9[%c0_29, %c0_30], %47 {strides = array<i32>} : memref<128x128xf32, #tpu.memory_space<vmem>>, vector<128x128xf32>,
      %cst_31 = arith.constant dense<0xFF800000> : vector<128xf32>
      %49 = vector.multi_reduction <maximumf>, %47, %cst_31 [1] : vector<128x128xf32> to vector<128xf32>
      %50 = vector.shape_cast %49 : vector<128xf32> to vector<128x1xf32>
      %51 = vector.broadcast %50 : vector<128x1xf32> to vector<128x128xf32>
      %52 = arith.subf %47, %51 : vector<128x128xf32>
      %53 = math.exp %52 : vector<128x128xf32>
      %cst_32 = arith.constant dense<0.000000e+00> : vector<128xf32>
      %54 = vector.multi_reduction <add>, %53, %cst_32 [1] : vector<128x128xf32> to vector<128xf32>
      %55 = vector.shape_cast %54 : vector<128xf32> to vector<128x1xf32>
      %56 = tpu.reciprocal %55 {approx = true} : vector<128x1xf32> -> vector<128x1xf32>
      %57 = vector.broadcast %56 : vector<128x1xf32> to vector<128x128xf32>
      %58 = arith.mulf %53, %57 : vector<128x128xf32>
      %c0_33 = arith.constant 0 : index
      %c0_34 = arith.constant 0 : index
      %59 = vector.load %arg11[%c0_33, %c0_34] : memref<128x128xf32, #tpu.memory_space<vmem>>, vector<128x128xf32>
      tpu.vector_store %arg11[%c0_33, %c0_34], %58 {strides = array<i32>} : memref<128x128xf32, #tpu.memory_space<vmem>>, vector<128x128xf32>,
      %60 = arith.truncf %58 : vector<128x128xf32> to vector<128x128xbf16>
      %c0_35 = arith.constant 0 : index
      %c0_36 = arith.constant 0 : index
      %61 = vector.load %arg8[%c0_35, %c0_36] : memref<128x128xbf16, #tpu.memory_space<vmem>>, vector<128x128xbf16>
      %cst_37 = arith.constant dense<0.000000e+00> : vector<128x128xf32>
      %62 = tpu.matmul %60, %61, %cst_37 {dimension_numbers = #tpu.dot_dimension_numbers<[1], [0], [0], [1], [0, 0, 1, 1], [], []>} : vector<128x128xbf16>, vector<128x128xbf16>, vector<128x128xf32> -> vector<128x128xf32>
      %c0_38 = arith.constant 0 : index
      %c0_39 = arith.constant 0 : index
      %63 = vector.load %arg12[%c0_38, %c0_39] : memref<128x128xf32, #tpu.memory_space<vmem>>, vector<128x128xf32>
      tpu.vector_store %arg12[%c0_38, %c0_39], %62 {strides = array<i32>} : memref<128x128xf32, #tpu.memory_space<vmem>>, vector<128x128xf32>,
    } else {
    }
    %c0 = arith.constant 0 : index
    %c0_1 = arith.constant 0 : index
    %3 = vector.load %arg2[%c0, %c0_1] : memref<128x128xf32, #tpu.memory_space<vmem>>, vector<128x128xf32>
    %4 = arith.truncf %3 : vector<128x128xf32> to vector<128x128xbf16>
    %c0_2 = arith.constant 0 : index
    %c0_3 = arith.constant 0 : index
    %5 = vector.load %arg5[%c0_2, %c0_3] : memref<128x256xbf16, #tpu.memory_space<vmem>>, vector<128x256xbf16>
    %cst = arith.constant dense<0.000000e+00> : vector<128x256xf32>
    %6 = tpu.matmul %4, %5, %cst {dimension_numbers = #tpu.dot_dimension_numbers<[1], [0], [0], [1], [0, 0, 1, 1], [], []>} : vector<128x128xbf16>, vector<128x256xbf16>, vector<128x256xf32> -> vector<128x256xf32>
    %c0_4 = arith.constant 0 : index
    %c0_5 = arith.constant 0 : index
    %7 = vector.load %arg6[%c0_4, %c0_5] : memref<1x256xf32, #tpu.memory_space<vmem>>, vector<1x256xf32>
    %8 = vector.broadcast %7 : vector<1x256xf32> to vector<128x256xf32>
    %9 = arith.addf %6, %8 : vector<128x256xf32>
    %cst_6 = arith.constant 0.000000e+00 : f32
    %10 = vector.broadcast %cst_6 : f32 to vector<128x256xf32>
    %11 = arith.maximumf %9, %10 : vector<128x256xf32>
    %12 = tpu.iota {dimensions = array<i32: 1>} : vector<128x256xi32>
    %c256_i32 = arith.constant 256 : i32
    %13 = arith.muli %arg1, %c256_i32 : i32
    %14 = vector.broadcast %13 : i32 to vector<128x256xi32>
    %15 = arith.addi %12, %14 : vector<128x256xi32>
    %16 = tpu.iota {dimensions = array<i32: 0>} : vector<128x256xi32>
    %c64_i32 = arith.constant 64 : i32
    %17 = vector.broadcast %c64_i32 : i32 to vector<128x256xi32>
    %18 = arith.muli %16, %17 : vector<128x256xi32>
    %19 = arith.cmpi sge, %15, %18 : vector<128x256xi32>
    %c64_i32_7 = arith.constant 64 : i32
    %20 = vector.broadcast %c64_i32_7 : i32 to vector<128x256xi32>
    %21 = arith.addi %18, %20 : vector<128x256xi32>
    %22 = arith.cmpi slt, %15, %21 : vector<128x256xi32>
    %23 = arith.andi %19, %22 : vector<128x256xi1>
    %cst_8 = arith.constant 1.000000e+00 : f32
    %cst_9 = arith.constant 0.000000e+00 : f32
    %24 = vector.broadcast %cst_8 : f32 to vector<128x256xf32>
    %25 = vector.broadcast %cst_9 : f32 to vector<128x256xf32>
    %26 = arith.select %23, %24, %25 : vector<128x256xi1>, vector<128x256xf32>
    %27 = arith.truncf %26 : vector<128x256xf32> to vector<128x256xbf16>
    %c0_10 = arith.constant 0 : index
    %c0_11 = arith.constant 0 : index
    %28 = vector.load %arg11[%c0_10, %c0_11] : memref<128x128xf32, #tpu.memory_space<vmem>>, vector<128x128xf32>
    %29 = arith.truncf %28 : vector<128x128xf32> to vector<128x128xbf16>
    %cst_12 = arith.constant dense<0.000000e+00> : vector<128x256xf32>
    %30 = tpu.matmul %29, %27, %cst_12 {dimension_numbers = #tpu.dot_dimension_numbers<[1], [0], [0], [1], [0, 0, 1, 1], [], []>} : vector<128x128xbf16>, vector<128x256xbf16>, vector<128x256xf32> -> vector<128x256xf32>
    %c0_13 = arith.constant 0 : index
    %c0_14 = arith.constant 0 : index
    %31 = vector.load %arg12[%c0_13, %c0_14] : memref<128x128xf32, #tpu.memory_space<vmem>>, vector<128x128xf32>
    %32 = arith.mulf %11, %30 : vector<128x256xf32>
    %33 = arith.truncf %32 : vector<128x256xf32> to vector<128x256xbf16>
    %c0_15 = arith.constant 0 : index
    %c0_16 = arith.constant 0 : index
    %34 = vector.load %arg7[%c0_15, %c0_16] : memref<256x128xbf16, #tpu.memory_space<vmem>>, vector<256x128xbf16>
    %cst_17 = arith.constant dense<0.000000e+00> : vector<128x128xf32>
    %35 = tpu.matmul %33, %34, %cst_17 {dimension_numbers = #tpu.dot_dimension_numbers<[1], [0], [0], [1], [0, 0, 1, 1], [], []>} : vector<128x256xbf16>, vector<256x128xbf16>, vector<128x128xf32> -> vector<128x128xf32>
    %36 = arith.addf %31, %35 : vector<128x128xf32>
    %c0_18 = arith.constant 0 : index
    %c0_19 = arith.constant 0 : index
    %37 = vector.load %arg12[%c0_18, %c0_19] : memref<128x128xf32, #tpu.memory_space<vmem>>, vector<128x128xf32>
    tpu.vector_store %arg12[%c0_18, %c0_19], %36 {strides = array<i32>} : memref<128x128xf32, #tpu.memory_space<vmem>>, vector<128x128xf32>,
    %c0_i32_20 = arith.constant 0 : i32
    %38 = arith.cmpi eq, %arg1, %c0_i32_20 : i32
    %39 = arith.extui %38 : i1 to i32
    %c0_i32_21 = arith.constant 0 : i32
    %40 = arith.cmpi ne, %39, %c0_i32_21 : i32
    scf.if %40 {
      %c0_22 = arith.constant 0 : index
      %c0_23 = arith.constant 0 : index
      %41 = vector.load %arg12[%c0_22, %c0_23] : memref<128x128xf32, #tpu.memory_space<vmem>>, vector<128x128xf32>
      %c0_24 = arith.constant 0 : index
      %c0_25 = arith.constant 0 : index
      %42 = vector.load %arg10[%c0_24, %c0_25] : memref<128x128xf32, #tpu.memory_space<vmem>>, vector<128x128xf32>
      tpu.vector_store %arg10[%c0_24, %c0_25], %41 {strides = array<i32>} : memref<128x128xf32, #tpu.memory_space<vmem>>, vector<128x128xf32>,
    } else {
    }
    return
  }
  func.func @transform_0(%arg0: i32, %arg1: i32) -> (i32, i32) {
    %c0_i32 = arith.constant 0 : i32
    %c0_i32_0 = arith.constant 0 : i32
    return %arg0, %c0_i32 : i32, i32
  }
  func.func @transform_1(%arg0: i32, %arg1: i32) -> (i32, i32) {
    %c0_i32 = arith.constant 0 : i32
    %c0_i32_0 = arith.constant 0 : i32
    %c0_i32_1 = arith.constant 0 : i32
    return %c0_i32, %c0_i32_0 : i32, i32
  }
  func.func @transform_2(%arg0: i32, %arg1: i32) -> (i32, i32) {
    %c0_i32 = arith.constant 0 : i32
    %c0_i32_0 = arith.constant 0 : i32
    %c0_i32_1 = arith.constant 0 : i32
    return %c0_i32, %c0_i32_0 : i32, i32
  }
  func.func @transform_3(%arg0: i32, %arg1: i32) -> (i32, i32) {
    %c0_i32 = arith.constant 0 : i32
    %c0_i32_0 = arith.constant 0 : i32
    %c0_i32_1 = arith.constant 0 : i32
    return %c0_i32, %c0_i32_0 : i32, i32
  }
  func.func @transform_4(%arg0: i32, %arg1: i32) -> (i32, i32) {
    %c0_i32 = arith.constant 0 : i32
    %c0_i32_0 = arith.constant 0 : i32
    %c0_i32_1 = arith.constant 0 : i32
    return %c0_i32, %c0_i32_0 : i32, i32
  }
  func.func @transform_5(%arg0: i32, %arg1: i32) -> (i32, i32) {
    %c0_i32 = arith.constant 0 : i32
    %c0_i32_0 = arith.constant 0 : i32
    %c0_i32_1 = arith.constant 0 : i32
    return %c0_i32, %c0_i32_0 : i32, i32
  }
  func.func @transform_6(%arg0: i32, %arg1: i32) -> (i32, i32) {
    %c0_i32 = arith.constant 0 : i32
    %c0_i32_0 = arith.constant 0 : i32
    %c0_i32_1 = arith.constant 0 : i32
    return %c0_i32, %c0_i32_0 : i32, i32
  }
  func.func @transform_7(%arg0: i32, %arg1: i32) -> (i32, i32) {
    %c0_i32 = arith.constant 0 : i32
    %c0_i32_0 = arith.constant 0 : i32
    return %arg0, %c0_i32 : i32, i32
  }
  func.func @transform_8(%arg0: i32, %arg1: i32) -> (i32, i32) {
    %c0_i32 = arith.constant 0 : i32
    %c0_i32_0 = arith.constant 0 : i32
    return %arg0, %c0_i32 : i32, i32
  }
}

</mosaic_0001>

<llo_original>
// kernel: tpu_custom_call.1
$region0: #{tpu_custom_call.1}
  #allocation0 [shape = 'u32[]', space=smem, size = 0x4, offset = 0x4, fixed_abs, tag = 'smem constant byte address 0x4 - core index']
  #allocation1 [shape = 'u32[144,128]{1,0:T(1,128)}', space=vmem, size = 0x12000, scoped, tag = 'internal scratch']
  #allocation2 [shape = 'f32[128,128]{1,0:T(8,128)}', space=vmem, size = 0x10000, scoped, tag = 'scratch operand']
  #allocation3 [shape = 'f32[128,128]{1,0:T(8,128)}', space=vmem, size = 0x10000, scoped, tag = 'scratch operand']
  %s0 = inlined_call_operand.hbm [shape: f32[128,128], index: 0, kind: input, shape index: {}]
  %s1 = inlined_call_operand.hbm [shape: bf16[128,128], index: 1, kind: input, shape index: {}]
  %s2 = inlined_call_operand.vmem [shape: f32[1,128], index: 2, kind: input, shape index: {}]
  %s3 = inlined_call_operand.hbm [shape: bf16[128,256], index: 3, kind: input, shape index: {}]
  %s4 = inlined_call_operand.vmem [shape: f32[1,256], index: 4, kind: input, shape index: {}]
  %s5 = inlined_call_operand.hbm [shape: bf16[256,128], index: 5, kind: input, shape index: {}]
  %s6 = inlined_call_operand.hbm [shape: bf16[128,128], index: 6, kind: input, shape index: {}]
  %s7 = inlined_call_operand.hbm [shape: f32[128,128], index: 7, kind: output, shape index: {0}]
  %s8 = inlined_call_operand.hbm [shape: f32[128,128], index: 8, kind: output, shape index: {1}]
  %9 = xla_tuple %s7, %s8
  %s10 = sld [smem:[#allocation0]]
  $region74: #{tpu_custom_call.1} parent=0
    _
  %s12 = ssub.s32 1, %s10
  %s13 = scalar_select 0, %s12, %s10
  $region1: #{tpu_custom_call.1} parent=0
    #allocation4 [shape = 'u8[65536]{0}', space=vmem, size = 0x10000, scoped, tag = 'input window, operand 0, single buffered']
    #allocation5 [shape = 's32[1]{0}', space=sflag, size = 0x4, scoped, tag = 'scoped memory for tpu_custom_call.1']
    #allocation6 [shape = 's32[1]{0}', space=sflag, size = 0x4, scoped, tag = 'scoped memory for tpu_custom_call.1']
    #allocation7 [shape = 'u8[32768]{0}', space=vmem, size = 0x8000, scoped, tag = 'input window, operand 1, single buffered']
    #allocation8 [shape = 's32[1]{0}', space=sflag, size = 0x4, scoped, tag = 'scoped memory for tpu_custom_call.1']
    #allocation9 [shape = 'u8[65536]{0}', space=vmem, size = 0x10000, scoped, tag = 'input window, operand 3, single buffered']
    #allocation10 [shape = 'u8[65536]{0}', space=vmem, size = 0x10000, scoped, tag = 'input window, operand 5, single buffered']
    #allocation11 [shape = 's32[1]{0}', space=sflag, size = 0x4, scoped, tag = 'scoped memory for tpu_custom_call.1']
    #allocation12 [shape = 'u8[32768]{0}', space=vmem, size = 0x8000, scoped, tag = 'input window, operand 6, single buffered']
    #allocation13 [shape = 'u8[65536]{0}', space=vmem, size = 0x10000, scoped, tag = 'output window, operand 0, single buffered']
    #allocation14 [shape = 'u8[65536]{0}', space=vmem, size = 0x10000, scoped, tag = 'output window, operand 1, single buffered']
    #allocation15 [shape = 's32[1]{0}', space=sflag, size = 0x4, scoped, tag = 'scoped memory for tpu_custom_call.1']
    %14 = vsyncpa [#allocation5], 0
    %15 = vsyncpa [#allocation8], 0
    %16 = vsyncpa [#allocation11], 0
    %17 = vsyncpa [#allocation6], 0
    %18 = vsyncpa [#allocation15], 0
    // Predicated region
    $region2: #{tpu_custom_call.1} parent=1 // pred_check
      _
    $region3: #{tpu_custom_call.1} parent=1 // pred_check_branch
      %20 = sbr.rel (0) target = $region5
    $region4: #{tpu_custom_call.1} parent=1 // pred_region
      %s22 = ssub.s32 2048, 2048
      %23 = vsyncadd [#allocation5], %s22
      %s24 = sshll.u32 [#allocation4], 4
      %s25 = int_to_ptr.vmem [resolvable:$true] %s24
      %30 = dma.hbm_to_vmem [thread:$0]  %s0, 2048, %s25, [#allocation5], 128, 128, 8
    $region5: #{tpu_custom_call.1} parent=1 // pred_fallthru
      _
    // Predicated region
    $region6: #{tpu_custom_call.1} parent=1 // pred_check
      _
    $region7: #{tpu_custom_call.1} parent=1 // pred_check_branch
      %32 = sbr.rel (0) target = $region9
    $region8: #{tpu_custom_call.1} parent=1 // pred_region
      %s34 = ssub.s32 1024, 1024
      %35 = vsyncadd [#allocation8], %s34
      %s36 = sshll.u32 [#allocation7], 4
      %s37 = int_to_ptr.vmem [resolvable:$true] %s36
      %42 = dma.hbm_to_vmem [thread:$0]  %s1, 1024, %s37, [#allocation8], 64, 64, 4
    $region9: #{tpu_custom_call.1} parent=1 // pred_fallthru
      _
    // Predicated region
    $region10: #{tpu_custom_call.1} parent=1 // pred_check
      _
    $region11: #{tpu_custom_call.1} parent=1 // pred_check_branch
      %44 = sbr.rel (0) target = $region13
    $region12: #{tpu_custom_call.1} parent=1 // pred_region
      _
    $region13: #{tpu_custom_call.1} parent=1 // pred_fallthru
      _
    // Predicated region
    $region14: #{tpu_custom_call.1} parent=1 // pred_check
      _
    $region15: #{tpu_custom_call.1} parent=1 // pred_check_branch
      %46 = sbr.rel (0) target = $region17
    $region16: #{tpu_custom_call.1} parent=1 // pred_region
      %s48 = ssub.s32 2048, 2048
      %49 = vsyncadd [#allocation8], %s48
      %s50 = sshll.u32 [#allocation9], 4
      %s51 = int_to_ptr.vmem [resolvable:$true] %s50
      %56 = dma.hbm_to_vmem [thread:$0]  %s3, 2048, %s51, [#allocation8], 128, 128, 8
    $region17: #{tpu_custom_call.1} parent=1 // pred_fallthru
      _
    // Predicated region
    $region18: #{tpu_custom_call.1} parent=1 // pred_check
      _
    $region19: #{tpu_custom_call.1} parent=1 // pred_check_branch
      %58 = sbr.rel (0) target = $region21
    $region20: #{tpu_custom_call.1} parent=1 // pred_region
      _
    $region21: #{tpu_custom_call.1} parent=1 // pred_fallthru
      _
    // Predicated region
    $region22: #{tpu_custom_call.1} parent=1 // pred_check
      _
    $region23: #{tpu_custom_call.1} parent=1 // pred_check_branch
      %60 = sbr.rel (0) target = $region25
    $region24: #{tpu_custom_call.1} parent=1 // pred_region
      %s62 = ssub.s32 2048, 2048
      %63 = vsyncadd [#allocation11], %s62
      %s64 = sshll.u32 [#allocation10], 4
      %s65 = int_to_ptr.vmem [resolvable:$true] %s64
      %70 = dma.hbm_to_vmem [thread:$0]  %s5, 2048, %s65, [#allocation11], 64, 64, 4
    $region25: #{tpu_custom_call.1} parent=1 // pred_fallthru
      _
    // Predicated region
    $region26: #{tpu_custom_call.1} parent=1 // pred_check
      _
    $region27: #{tpu_custom_call.1} parent=1 // pred_check_branch
      %72 = sbr.rel (0) target = $region29
    $region28: #{tpu_custom_call.1} parent=1 // pred_region
      %s74 = ssub.s32 1024, 1024
      %75 = vsyncadd [#allocation11], %s74
      %s76 = sshll.u32 [#allocation12], 4
      %s77 = int_to_ptr.vmem [resolvable:$true] %s76
      %82 = dma.hbm_to_vmem [thread:$0]  %s6, 1024, %s77, [#allocation11], 64, 64, 4
    $region29: #{tpu_custom_call.1} parent=1 // pred_fallthru
      _
    // Predicated region
    $region30: #{tpu_custom_call.1} parent=1 // pred_check
      _
    $region31: #{tpu_custom_call.1} parent=1 // pred_check_branch
      %84 = sbr.rel (0) target = $region33
    $region32: #{tpu_custom_call.1} parent=1 // pred_region
      %85 = dma.done [#allocation5], 2048
    $region33: #{tpu_custom_call.1} parent=1 // pred_fallthru
      _
    // Predicated region
    $region34: #{tpu_custom_call.1} parent=1 // pred_check
      _
    $region35: #{tpu_custom_call.1} parent=1 // pred_check_branch
      %87 = sbr.rel (0) target = $region37
    $region36: #{tpu_custom_call.1} parent=1 // pred_region
      %88 = dma.done [#allocation8], 1024
    $region37: #{tpu_custom_call.1} parent=1 // pred_fallthru
      _
    // Predicated region
    $region38: #{tpu_custom_call.1} parent=1 // pred_check
      _
    $region39: #{tpu_custom_call.1} parent=1 // pred_check_branch
      %90 = sbr.rel (0) target = $region41
    $region40: #{tpu_custom_call.1} parent=1 // pred_region
      %91 = dma.done [#allocation8], 2048
    $region41: #{tpu_custom_call.1} parent=1 // pred_fallthru
      _
    // Predicated region
    $region42: #{tpu_custom_call.1} parent=1 // pred_check
      _
    $region43: #{tpu_custom_call.1} parent=1 // pred_check_branch
      %93 = sbr.rel (0) target = $region45
    $region44: #{tpu_custom_call.1} parent=1 // pred_region
      %94 = dma.done [#allocation11], 2048
    $region45: #{tpu_custom_call.1} parent=1 // pred_fallthru
      _
    // Predicated region
    $region46: #{tpu_custom_call.1} parent=1 // pred_check
      _
    $region47: #{tpu_custom_call.1} parent=1 // pred_check_branch
      %96 = sbr.rel (0) target = $region49
    $region48: #{tpu_custom_call.1} parent=1 // pred_region
      %97 = dma.done [#allocation11], 1024
    $region49: #{tpu_custom_call.1} parent=1 // pred_fallthru
      _
    %p99 = scmp.eq.s32.totalorder 0, 0
    // Predicated region
    $region50: #{tpu_custom_call.1} parent=1 // pred_check
      %p100 = pneg %p99
    $region51: #{tpu_custom_call.1} parent=1 // pred_check_branch
      %102 = sbr.rel (%p100) target = $region53
    $region52: #{tpu_custom_call.1} parent=1 // pred_region
      %v103 = vld [vmem:[#allocation4] sm:$0xff]
      %v104 = vld [vmem:[#allocation4 + $0x8] sm:$0xff]
      %v105 = vld [vmem:[#allocation4 + $0x10] sm:$0xff]
      %v106 = vld [vmem:[#allocation4 + $0x18] sm:$0xff]
      %v107 = vld [vmem:[#allocation4 + $0x20] sm:$0xff]
      %v108 = vld [vmem:[#allocation4 + $0x28] sm:$0xff]
      %v109 = vld [vmem:[#allocation4 + $0x30] sm:$0xff]
      %v110 = vld [vmem:[#allocation4 + $0x38] sm:$0xff]
      %v111 = vld [vmem:[#allocation4 + $0x40] sm:$0xff]
      %v112 = vld [vmem:[#allocation4 + $0x48] sm:$0xff]
      %v113 = vld [vmem:[#allocation4 + $0x50] sm:$0xff]
      %v114 = vld [vmem:[#allocation4 + $0x58] sm:$0xff]
      %v115 = vld [vmem:[#allocation4 + $0x60] sm:$0xff]
      %v116 = vld [vmem:[#allocation4 + $0x68] sm:$0xff]
      %v117 = vld [vmem:[#allocation4 + $0x70] sm:$0xff]
      %v118 = vld [vmem:[#allocation4 + $0x78] sm:$0xff]
      %v119 = vpack.c.bf16 %v104, %v103
      %v120 = vpack.c.bf16 %v106, %v105
      %v121 = vpack.c.bf16 %v108, %v107
      %v122 = vpack.c.bf16 %v110, %v109
      %v123 = vpack.c.bf16 %v112, %v111
      %v124 = vpack.c.bf16 %v114, %v113
      %v125 = vpack.c.bf16 %v116, %v115
      %v126 = vpack.c.bf16 %v118, %v117
      %v127 = vld [vmem:[#allocation7] sm:$0xf]
      %v128 = vld [vmem:[#allocation7 + $0x4] sm:$0xf]
      %v129 = vld [vmem:[#allocation7 + $0x8] sm:$0xf]
      %v130 = vld [vmem:[#allocation7 + $0xc] sm:$0xf]
      %v131 = vld [vmem:[#allocation7 + $0x10] sm:$0xf]
      %v132 = vld [vmem:[#allocation7 + $0x14] sm:$0xf]
      %v133 = vld [vmem:[#allocation7 + $0x18] sm:$0xf]
      %v134 = vld [vmem:[#allocation7 + $0x1c] sm:$0xf]
      %v135 = vld [vmem:[#allocation7 + $0x20] sm:$0xf]
      %v136 = vld [vmem:[#allocation7 + $0x24] sm:$0xf]
      %v137 = vld [vmem:[#allocation7 + $0x28] sm:$0xf]
      %v138 = vld [vmem:[#allocation7 + $0x2c] sm:$0xf]
      %v139 = vld [vmem:[#allocation7 + $0x30] sm:$0xf]
      %v140 = vld [vmem:[#allocation7 + $0x34] sm:$0xf]
      %v141 = vld [vmem:[#allocation7 + $0x38] sm:$0xf]
      %v142 = vld [vmem:[#allocation7 + $0x3c] sm:$0xf]
      %v143 = vld [vmem:[%s2] sm:$0x1]
      %v145 = vlaneseq
      %v146 = vshrl.u32 %v145, 7
      %v147 = vsub.s32 0, %v146
      %v148 = vrot.slane %v143, %v147
      %v166 = vunpack.c.l.b16 %v127
      %v167 = vunpack.c.l.b16 %v128
      %v168 = vunpack.c.l.b16 %v129
      %v169 = vunpack.c.l.b16 %v130
      %v170 = vunpack.c.l.b16 %v131
      %v171 = vunpack.c.l.b16 %v132
      %v172 = vunpack.c.l.b16 %v133
      %v173 = vunpack.c.l.b16 %v134
      %v174 = vunpack.c.l.b16 %v135
      %v175 = vunpack.c.l.b16 %v136
      %v176 = vunpack.c.l.b16 %v137
      %v177 = vunpack.c.l.b16 %v138
      %v178 = vunpack.c.l.b16 %v139
      %v179 = vunpack.c.l.b16 %v140
      %v180 = vunpack.c.l.b16 %v141
      %v181 = vunpack.c.l.b16 %v142
      %v182 = vpack.c.b16 %v167, %v166
      %v183 = vpack.c.b16 %v169, %v168
      %v184 = vpack.c.b16 %v171, %v170
      %v185 = vpack.c.b16 %v173, %v172
      %v186 = vpack.c.b16 %v175, %v174
      %v187 = vpack.c.b16 %v177, %v176
      %v188 = vpack.c.b16 %v179, %v178
      %v189 = vpack.c.b16 %v181, %v180
      %198 = vmatprep.subr.bf16.mxu0 0
      %199 = vmatpush1.bf16.msra.mxu0 %v182
      %200 = vmatprep.subr.bf16.mxu0 0
      %201 = vmatpush1.bf16.msra.mxu0 %v183
      %202 = vmatprep.subr.bf16.mxu0 0
      %203 = vmatpush1.bf16.msra.mxu0 %v184
      %204 = vmatprep.subr.bf16.mxu0 0
      %205 = vmatpush1.bf16.msra.mxu0 %v185
      %206 = vmatprep.subr.bf16.mxu0 0
      %207 = vmatpush1.bf16.msra.mxu0 %v186
      %208 = vmatprep.subr.bf16.mxu0 0
      %209 = vmatpush1.bf16.msra.mxu0 %v187
      %210 = vmatprep.subr.bf16.mxu0 0
      %211 = vmatpush1.bf16.msra.mxu0 %v188
      %212 = vmatprep.subr.bf16.mxu0 0
      %213 = vmatpush1.bf16.msra.mxu0 %v189
      %214 = vmatprep.subr.bf16.mxu0 0
      %215 = vmatpush1.bf16.msra.mxu0 0
      %216 = vmatprep.subr.bf16.mxu0 0
      %217 = vmatpush1.bf16.msra.mxu0 0
      %218 = vmatprep.subr.bf16.mxu0 0
      %219 = vmatpush1.bf16.msra.mxu0 0
      %220 = vmatprep.subr.bf16.mxu0 0
      %221 = vmatpush1.bf16.msra.mxu0 0
      %222 = vmatprep.subr.bf16.mxu0 0
      %223 = vmatpush1.bf16.msra.mxu0 0
      %224 = vmatprep.subr.bf16.mxu0 0
      %225 = vmatpush1.bf16.msra.mxu0 0
      %226 = vmatprep.subr.bf16.mxu0 0
      %227 = vmatpush1.bf16.msra.mxu0 0
      %228 = vmatprep.subr.bf16.mxu0 0
      %229 = vmatpush1.bf16.msra.mxu0 0
      %230 = vmatprep.mubr.bf16.mxu0 0
      %231 = vmatmul.mubr.bf16.gmra.mrb[0].mxu0 %v119
      %v232 = vpop.f32.mrb[0].mxu0
      %v233 = vadd.f32 %v148, %v232
      %v234 = vpop.f32.mrb[0].mxu0
      %v235 = vpop.f32.mrb[0].mxu0
      %v236 = vadd.f32 %v148, %v235
      %v237 = vpop.f32.mrb[0].mxu0
      %238 = vmatprep.mubr.bf16.mxu0 0
      %239 = vmatmul.mubr.bf16.gmra.mrb[0].mxu0 %v120
      %v240 = vpop.f32.mrb[0].mxu0
      %v241 = vadd.f32 %v148, %v240
      %v242 = vpop.f32.mrb[0].mxu0
      %v243 = vpop.f32.mrb[0].mxu0
      %v244 = vadd.f32 %v148, %v243
      %v245 = vpop.f32.mrb[0].mxu0
      %246 = vmatprep.mubr.bf16.mxu0 0
      %247 = vmatmul.mubr.bf16.gmra.mrb[0].mxu0 %v121
      %v248 = vpop.f32.mrb[0].mxu0
      %v249 = vadd.f32 %v148, %v248
      %v250 = vpop.f32.mrb[0].mxu0
      %v251 = vpop.f32.mrb[0].mxu0
      %v252 = vadd.f32 %v148, %v251
      %v253 = vpop.f32.mrb[0].mxu0
      %254 = vmatprep.mubr.bf16.mxu0 0
      %255 = vmatmul.mubr.bf16.gmra.mrb[0].mxu0 %v122
      %v256 = vpop.f32.mrb[0].mxu0
      %v257 = vadd.f32 %v148, %v256
      %v258 = vpop.f32.mrb[0].mxu0
      %v259 = vpop.f32.mrb[0].mxu0
      %v260 = vadd.f32 %v148, %v259
      %v261 = vpop.f32.mrb[0].mxu0
      %262 = vmatprep.mubr.bf16.mxu0 0
      %263 = vmatmul.mubr.bf16.gmra.mrb[0].mxu0 %v123
      %v264 = vpop.f32.mrb[0].mxu0
      %v265 = vadd.f32 %v148, %v264
      %v266 = vpop.f32.mrb[0].mxu0
      %v267 = vpop.f32.mrb[0].mxu0
      %v268 = vadd.f32 %v148, %v267
      %v269 = vpop.f32.mrb[0].mxu0
      %270 = vmatprep.mubr.bf16.mxu0 0
      %271 = vmatmul.mubr.bf16.gmra.mrb[0].mxu0 %v124
      %v272 = vpop.f32.mrb[0].mxu0
      %v273 = vadd.f32 %v148, %v272
      %v274 = vpop.f32.mrb[0].mxu0
      %v275 = vpop.f32.mrb[0].mxu0
      %v276 = vadd.f32 %v148, %v275
      %v277 = vpop.f32.mrb[0].mxu0
      %278 = vmatprep.mubr.bf16.mxu0 0
      %279 = vmatmul.mubr.bf16.gmra.mrb[0].mxu0 %v125
      %v280 = vpop.f32.mrb[0].mxu0
      %v281 = vadd.f32 %v148, %v280
      %v282 = vpop.f32.mrb[0].mxu0
      %v283 = vpop.f32.mrb[0].mxu0
      %v284 = vadd.f32 %v148, %v283
      %v285 = vpop.f32.mrb[0].mxu0
      %286 = vmatprep.mubr.bf16.mxu0 0
      %287 = vmatmul.mubr.bf16.gmra.mrb[0].mxu0 %v126
      %v288 = vpop.f32.mrb[0].mxu0
      %v289 = vadd.f32 %v148, %v288
      %v290 = vpop.f32.mrb[0].mxu0
      %v291 = vpop.f32.mrb[0].mxu0
      %v292 = vadd.f32 %v148, %v291
      %v293 = vpop.f32.mrb[0].mxu0
      %294 = vdwg.mxu0
      %295 = vst [vmem:[#allocation13] sm:$0xff] %v233
      %296 = vst [vmem:[#allocation13 + $0x8] sm:$0xff] %v236
      %297 = vst [vmem:[#allocation13 + $0x10] sm:$0xff] %v241
      %298 = vst [vmem:[#allocation13 + $0x18] sm:$0xff] %v244
      %299 = vst [vmem:[#allocation13 + $0x20] sm:$0xff] %v249
      %300 = vst [vmem:[#allocation13 + $0x28] sm:$0xff] %v252
      %301 = vst [vmem:[#allocation13 + $0x30] sm:$0xff] %v257
      %302 = vst [vmem:[#allocation13 + $0x38] sm:$0xff] %v260
      %303 = vst [vmem:[#allocation13 + $0x40] sm:$0xff] %v265
      %304 = vst [vmem:[#allocation13 + $0x48] sm:$0xff] %v268
      %305 = vst [vmem:[#allocation13 + $0x50] sm:$0xff] %v273
      %306 = vst [vmem:[#allocation13 + $0x58] sm:$0xff] %v276
      %307 = vst [vmem:[#allocation13 + $0x60] sm:$0xff] %v281
      %308 = vst [vmem:[#allocation13 + $0x68] sm:$0xff] %v284
      %309 = vst [vmem:[#allocation13 + $0x70] sm:$0xff] %v289
      %310 = vst [vmem:[#allocation13 + $0x78] sm:$0xff] %v292
      %311 = vmax.xlane.f32.xlu0 %v233
      %v312 = vpop.xlane.xlu0 %311
      %313 = vmax.xlane.f32.xlu0 %v236
      %v314 = vpop.xlane.xlu0 %313
      %315 = vmax.xlane.f32.xlu0 %v241
      %v316 = vpop.xlane.xlu0 %315
      %317 = vmax.xlane.f32.xlu0 %v244
      %v318 = vpop.xlane.xlu0 %317
      %319 = vmax.xlane.f32.xlu0 %v249
      %v320 = vpop.xlane.xlu0 %319
      %321 = vmax.xlane.f32.xlu0 %v252
      %v322 = vpop.xlane.xlu0 %321
      %323 = vmax.xlane.f32.xlu0 %v257
      %v324 = vpop.xlane.xlu0 %323
      %325 = vmax.xlane.f32.xlu0 %v260
      %v326 = vpop.xlane.xlu0 %325
      %327 = vmax.xlane.f32.xlu0 %v265
      %v328 = vpop.xlane.xlu0 %327
      %329 = vmax.xlane.f32.xlu0 %v268
      %v330 = vpop.xlane.xlu0 %329
      %331 = vmax.xlane.f32.xlu0 %v273
      %v332 = vpop.xlane.xlu0 %331
      %333 = vmax.xlane.f32.xlu0 %v276
      %v334 = vpop.xlane.xlu0 %333
      %335 = vmax.xlane.f32.xlu0 %v281
      %v336 = vpop.xlane.xlu0 %335
      %337 = vmax.xlane.f32.xlu0 %v284
      %v338 = vpop.xlane.xlu0 %337
      %339 = vmax.xlane.f32.xlu0 %v289
      %v340 = vpop.xlane.xlu0 %339
      %341 = vmax.xlane.f32.xlu0 %v292
      %v342 = vpop.xlane.xlu0 %341
      %v343 = vsub.f32 %v233, %v312
      %v344 = vsub.f32 %v236, %v314
      %v345 = vsub.f32 %v241, %v316
      %v346 = vsub.f32 %v244, %v318
      %v347 = vsub.f32 %v249, %v320
      %v348 = vsub.f32 %v252, %v322
      %v349 = vsub.f32 %v257, %v324
      %v350 = vsub.f32 %v260, %v326
      %v351 = vsub.f32 %v265, %v328
      %v352 = vsub.f32 %v268, %v330
      %v353 = vsub.f32 %v273, %v332
      %v354 = vsub.f32 %v276, %v334
      %v355 = vsub.f32 %v281, %v336
      %v356 = vsub.f32 %v284, %v338
      %v357 = vsub.f32 %v289, %v340
      %v358 = vsub.f32 %v292, %v342
      %v359 = vmul.f32 %v343, 1.442695
      %v360 = vpow.pop %v359
      %v361 = vmul.f32 %v344, 1.442695
      %v362 = vpow.pop %v361
      %v363 = vmul.f32 %v345, 1.442695
      %v364 = vpow.pop %v363
      %v365 = vmul.f32 %v346, 1.442695
      %v366 = vpow.pop %v365
      %v367 = vmul.f32 %v347, 1.442695
      %v368 = vpow.pop %v367
      %v369 = vmul.f32 %v348, 1.442695
      %v370 = vpow.pop %v369
      %v371 = vmul.f32 %v349, 1.442695
      %v372 = vpow.pop %v371
      %v373 = vmul.f32 %v350, 1.442695
      %v374 = vpow.pop %v373
      %v375 = vmul.f32 %v351, 1.442695
      %v376 = vpow.pop %v375
      %v377 = vmul.f32 %v352, 1.442695
      %v378 = vpow.pop %v377
      %v379 = vmul.f32 %v353, 1.442695
      %v380 = vpow.pop %v379
      %v381 = vmul.f32 %v354, 1.442695
      %v382 = vpow.pop %v381
      %v383 = vmul.f32 %v355, 1.442695
      %v384 = vpow.pop %v383
      %v385 = vmul.f32 %v356, 1.442695
      %v386 = vpow.pop %v385
      %v387 = vmul.f32 %v357, 1.442695
      %v388 = vpow.pop %v387
      %v389 = vmul.f32 %v358, 1.442695
      %v390 = vpow.pop %v389
      %391 = vadd.xlane.f32.xlu0 %v360
      %v392 = vpop.xlane.xlu0 %391
      %393 = vadd.xlane.f32.xlu0 %v362
      %v394 = vpop.xlane.xlu0 %393
      %395 = vadd.xlane.f32.xlu0 %v364
      %v396 = vpop.xlane.xlu0 %395
      %397 = vadd.xlane.f32.xlu0 %v366
      %v398 = vpop.xlane.xlu0 %397
      %399 = vadd.xlane.f32.xlu0 %v368
      %v400 = vpop.xlane.xlu0 %399
      %401 = vadd.xlane.f32.xlu0 %v370
      %v402 = vpop.xlane.xlu0 %401
      %403 = vadd.xlane.f32.xlu0 %v372
      %v404 = vpop.xlane.xlu0 %403
      %405 = vadd.xlane.f32.xlu0 %v374
      %v406 = vpop.xlane.xlu0 %405
      %407 = vadd.xlane.f32.xlu0 %v376
      %v408 = vpop.xlane.xlu0 %407
      %409 = vadd.xlane.f32.xlu0 %v378
      %v410 = vpop.xlane.xlu0 %409
      %411 = vadd.xlane.f32.xlu0 %v380
      %v412 = vpop.xlane.xlu0 %411
      %413 = vadd.xlane.f32.xlu0 %v382
      %v414 = vpop.xlane.xlu0 %413
      %415 = vadd.xlane.f32.xlu0 %v384
      %v416 = vpop.xlane.xlu0 %415
      %417 = vadd.xlane.f32.xlu0 %v386
      %v418 = vpop.xlane.xlu0 %417
      %419 = vadd.xlane.f32.xlu0 %v388
      %v420 = vpop.xlane.xlu0 %419
      %421 = vadd.xlane.f32.xlu0 %v390
      %v422 = vpop.xlane.xlu0 %421
      %v423 = vrcp.pop %v392
      %v424 = vrcp.pop %v394
      %v425 = vrcp.pop %v396
      %v426 = vrcp.pop %v398
      %v427 = vrcp.pop %v400
      %v428 = vrcp.pop %v402
      %v429 = vrcp.pop %v404
      %v430 = vrcp.pop %v406
      %v431 = vrcp.pop %v408
      %v432 = vrcp.pop %v410
      %v433 = vrcp.pop %v412
      %v434 = vrcp.pop %v414
      %v435 = vrcp.pop %v416
      %v436 = vrcp.pop %v418
      %v437 = vrcp.pop %v420
      %v438 = vrcp.pop %v422
      %v439 = vmul.f32 %v360, %v423
      %v440 = vmul.f32 %v362, %v424
      %v441 = vmul.f32 %v364, %v425
      %v442 = vmul.f32 %v366, %v426
      %v443 = vmul.f32 %v368, %v427
      %v444 = vmul.f32 %v370, %v428
      %v445 = vmul.f32 %v372, %v429
      %v446 = vmul.f32 %v374, %v430
      %v447 = vmul.f32 %v376, %v431
      %v448 = vmul.f32 %v378, %v432
      %v449 = vmul.f32 %v380, %v433
      %v450 = vmul.f32 %v382, %v434
      %v451 = vmul.f32 %v384, %v435
      %v452 = vmul.f32 %v386, %v436
      %v453 = vmul.f32 %v388, %v437
      %v454 = vmul.f32 %v390, %v438
      %455 = vst [vmem:[#allocation2] sm:$0xff] %v439
      %456 = vst [vmem:[#allocation2 + $0x8] sm:$0xff] %v440
      %457 = vst [vmem:[#allocation2 + $0x10] sm:$0xff] %v441
      %458 = vst [vmem:[#allocation2 + $0x18] sm:$0xff] %v442
      %459 = vst [vmem:[#allocation2 + $0x20] sm:$0xff] %v443
      %460 = vst [vmem:[#allocation2 + $0x28] sm:$0xff] %v444
      %461 = vst [vmem:[#allocation2 + $0x30] sm:$0xff] %v445
      %462 = vst [vmem:[#allocation2 + $0x38] sm:$0xff] %v446
      %463 = vst [vmem:[#allocation2 + $0x40] sm:$0xff] %v447
      %464 = vst [vmem:[#allocation2 + $0x48] sm:$0xff] %v448
      %465 = vst [vmem:[#allocation2 + $0x50] sm:$0xff] %v449
      %466 = vst [vmem:[#allocation2 + $0x58] sm:$0xff] %v450
      %467 = vst [vmem:[#allocation2 + $0x60] sm:$0xff] %v451
      %468 = vst [vmem:[#allocation2 + $0x68] sm:$0xff] %v452
      %469 = vst [vmem:[#allocation2 + $0x70] sm:$0xff] %v453
      %470 = vst [vmem:[#allocation2 + $0x78] sm:$0xff] %v454
      %v471 = vpack.c.bf16 %v440, %v439
      %v472 = vpack.c.bf16 %v442, %v441
      %v473 = vpack.c.bf16 %v444, %v443
      %v474 = vpack.c.bf16 %v446, %v445
      %v475 = vpack.c.bf16 %v448, %v447
      %v476 = vpack.c.bf16 %v450, %v449
      %v477 = vpack.c.bf16 %v452, %v451
      %v478 = vpack.c.bf16 %v454, %v453
      %v479 = vld [vmem:[#allocation12] sm:$0xf]
      %v480 = vld [vmem:[#allocation12 + $0x4] sm:$0xf]
      %v481 = vld [vmem:[#allocation12 + $0x8] sm:$0xf]
      %v482 = vld [vmem:[#allocation12 + $0xc] sm:$0xf]
      %v483 = vld [vmem:[#allocation12 + $0x10] sm:$0xf]
      %v484 = vld [vmem:[#allocation12 + $0x14] sm:$0xf]
      %v485 = vld [vmem:[#allocation12 + $0x18] sm:$0xf]
      %v486 = vld [vmem:[#allocation12 + $0x1c] sm:$0xf]
      %v487 = vld [vmem:[#allocation12 + $0x20] sm:$0xf]
      %v488 = vld [vmem:[#allocation12 + $0x24] sm:$0xf]
      %v489 = vld [vmem:[#allocation12 + $0x28] sm:$0xf]
      %v490 = vld [vmem:[#allocation12 + $0x2c] sm:$0xf]
      %v491 = vld [vmem:[#allocation12 + $0x30] sm:$0xf]
      %v492 = vld [vmem:[#allocation12 + $0x34] sm:$0xf]
      %v493 = vld [vmem:[#allocation12 + $0x38] sm:$0xf]
      %v494 = vld [vmem:[#allocation12 + $0x3c] sm:$0xf]
      %v511 = vunpack.c.l.b16 %v479
      %v512 = vunpack.c.l.b16 %v480
      %v513 = vunpack.c.l.b16 %v481
      %v514 = vunpack.c.l.b16 %v482
      %v515 = vunpack.c.l.b16 %v483
      %v516 = vunpack.c.l.b16 %v484
      %v517 = vunpack.c.l.b16 %v485
      %v518 = vunpack.c.l.b16 %v486
      %v519 = vunpack.c.l.b16 %v487
      %v520 = vunpack.c.l.b16 %v488
      %v521 = vunpack.c.l.b16 %v489
      %v522 = vunpack.c.l.b16 %v490
      %v523 = vunpack.c.l.b16 %v491
      %v524 = vunpack.c.l.b16 %v492
      %v525 = vunpack.c.l.b16 %v493
      %v526 = vunpack.c.l.b16 %v494
      %v527 = vpack.c.b16 %v512, %v511
      %v528 = vpack.c.b16 %v514, %v513
      %v529 = vpack.c.b16 %v516, %v515
      %v530 = vpack.c.b16 %v518, %v517
      %v531 = vpack.c.b16 %v520, %v519
      %v532 = vpack.c.b16 %v522, %v521
      %v533 = vpack.c.b16 %v524, %v523
      %v534 = vpack.c.b16 %v526, %v525
      %543 = vmatprep.subr.bf16.mxu0 0
      %544 = vmatpush1.bf16.msra.mxu0 %v527
      %545 = vmatprep.subr.bf16.mxu0 0
      %546 = vmatpush1.bf16.msra.mxu0 %v528
      %547 = vmatprep.subr.bf16.mxu0 0
      %548 = vmatpush1.bf16.msra.mxu0 %v529
      %549 = vmatprep.subr.bf16.mxu0 0
      %550 = vmatpush1.bf16.msra.mxu0 %v530
      %551 = vmatprep.subr.bf16.mxu0 0
      %552 = vmatpush1.bf16.msra.mxu0 %v531
      %553 = vmatprep.subr.bf16.mxu0 0
      %554 = vmatpush1.bf16.msra.mxu0 %v532
      %555 = vmatprep.subr.bf16.mxu0 0
      %556 = vmatpush1.bf16.msra.mxu0 %v533
      %557 = vmatprep.subr.bf16.mxu0 0
      %558 = vmatpush1.bf16.msra.mxu0 %v534
      %559 = vmatprep.subr.bf16.mxu0 0
      %560 = vmatpush1.bf16.msra.mxu0 0
      %561 = vmatprep.subr.bf16.mxu0 0
      %562 = vmatpush1.bf16.msra.mxu0 0
      %563 = vmatprep.subr.bf16.mxu0 0
      %564 = vmatpush1.bf16.msra.mxu0 0
      %565 = vmatprep.subr.bf16.mxu0 0
      %566 = vmatpush1.bf16.msra.mxu0 0
      %567 = vmatprep.subr.bf16.mxu0 0
      %568 = vmatpush1.bf16.msra.mxu0 0
      %569 = vmatprep.subr.bf16.mxu0 0
      %570 = vmatpush1.bf16.msra.mxu0 0
      %571 = vmatprep.subr.bf16.mxu0 0
      %572 = vmatpush1.bf16.msra.mxu0 0
      %573 = vmatprep.subr.bf16.mxu0 0
      %574 = vmatpush1.bf16.msra.mxu0 0
      %575 = vmatprep.mubr.bf16.mxu0 0
      %576 = vmatmul.mubr.bf16.gmra.mrb[0].mxu0 %v471
      %v577 = vpop.f32.mrb[0].mxu0
      %v578 = vadd.f32 0.0, %v577
      %v579 = vpop.f32.mrb[0].mxu0
      %v580 = vpop.f32.mrb[0].mxu0
      %v581 = vadd.f32 0.0, %v580
      %v582 = vpop.f32.mrb[0].mxu0
      %583 = vmatprep.mubr.bf16.mxu0 0
      %584 = vmatmul.mubr.bf16.gmra.mrb[0].mxu0 %v472
      %v585 = vpop.f32.mrb[0].mxu0
      %v586 = vadd.f32 0.0, %v585
      %v587 = vpop.f32.mrb[0].mxu0
      %v588 = vpop.f32.mrb[0].mxu0
      %v589 = vadd.f32 0.0, %v588
      %v590 = vpop.f32.mrb[0].mxu0
      %591 = vmatprep.mubr.bf16.mxu0 0
      %592 = vmatmul.mubr.bf16.gmra.mrb[0].mxu0 %v473
      %v593 = vpop.f32.mrb[0].mxu0
      %v594 = vadd.f32 0.0, %v593
      %v595 = vpop.f32.mrb[0].mxu0
      %v596 = vpop.f32.mrb[0].mxu0
      %v597 = vadd.f32 0.0, %v596
      %v598 = vpop.f32.mrb[0].mxu0
      %599 = vmatprep.mubr.bf16.mxu0 0
      %600 = vmatmul.mubr.bf16.gmra.mrb[0].mxu0 %v474
      %v601 = vpop.f32.mrb[0].mxu0
      %v602 = vadd.f32 0.0, %v601
      %v603 = vpop.f32.mrb[0].mxu0
      %v604 = vpop.f32.mrb[0].mxu0
      %v605 = vadd.f32 0.0, %v604
      %v606 = vpop.f32.mrb[0].mxu0
      %607 = vmatprep.mubr.bf16.mxu0 0
      %608 = vmatmul.mubr.bf16.gmra.mrb[0].mxu0 %v475
      %v609 = vpop.f32.mrb[0].mxu0
      %v610 = vadd.f32 0.0, %v609
      %v611 = vpop.f32.mrb[0].mxu0
      %v612 = vpop.f32.mrb[0].mxu0
      %v613 = vadd.f32 0.0, %v612
      %v614 = vpop.f32.mrb[0].mxu0
      %615 = vmatprep.mubr.bf16.mxu0 0
      %616 = vmatmul.mubr.bf16.gmra.mrb[0].mxu0 %v476
      %v617 = vpop.f32.mrb[0].mxu0
      %v618 = vadd.f32 0.0, %v617
      %v619 = vpop.f32.mrb[0].mxu0
      %v620 = vpop.f32.mrb[0].mxu0
      %v621 = vadd.f32 0.0, %v620
      %v622 = vpop.f32.mrb[0].mxu0
      %623 = vmatprep.mubr.bf16.mxu0 0
      %624 = vmatmul.mubr.bf16.gmra.mrb[0].mxu0 %v477
      %v625 = vpop.f32.mrb[0].mxu0
      %v626 = vadd.f32 0.0, %v625
      %v627 = vpop.f32.mrb[0].mxu0
      %v628 = vpop.f32.mrb[0].mxu0
      %v629 = vadd.f32 0.0, %v628
      %v630 = vpop.f32.mrb[0].mxu0
      %631 = vmatprep.mubr.bf16.mxu0 0
      %632 = vmatmul.mubr.bf16.gmra.mrb[0].mxu0 %v478
      %v633 = vpop.f32.mrb[0].mxu0
      %v634 = vadd.f32 0.0, %v633
      %v635 = vpop.f32.mrb[0].mxu0
      %v636 = vpop.f32.mrb[0].mxu0
      %v637 = vadd.f32 0.0, %v636
      %v638 = vpop.f32.mrb[0].mxu0
      %639 = vdwg.mxu0
      %640 = vst [vmem:[#allocation3] sm:$0xff] %v578
      %641 = vst [vmem:[#allocation3 + $0x8] sm:$0xff] %v581
      %642 = vst [vmem:[#allocation3 + $0x10] sm:$0xff] %v586
      %643 = vst [vmem:[#allocation3 + $0x18] sm:$0xff] %v589
      %644 = vst [vmem:[#allocation3 + $0x20] sm:$0xff] %v594
      %645 = vst [vmem:[#allocation3 + $0x28] sm:$0xff] %v597
      %646 = vst [vmem:[#allocation3 + $0x30] sm:$0xff] %v602
      %647 = vst [vmem:[#allocation3 + $0x38] sm:$0xff] %v605
      %648 = vst [vmem:[#allocation3 + $0x40] sm:$0xff] %v610
      %649 = vst [vmem:[#allocation3 + $0x48] sm:$0xff] %v613
      %650 = vst [vmem:[#allocation3 + $0x50] sm:$0xff] %v618
      %651 = vst [vmem:[#allocation3 + $0x58] sm:$0xff] %v621
      %652 = vst [vmem:[#allocation3 + $0x60] sm:$0xff] %v626
      %653 = vst [vmem:[#allocation3 + $0x68] sm:$0xff] %v629
      %654 = vst [vmem:[#allocation3 + $0x70] sm:$0xff] %v634
      %655 = vst [vmem:[#allocation3 + $0x78] sm:$0xff] %v637
    $region53: #{tpu_custom_call.1} parent=1 // pred_fallthru
      _
    %v656 = vld [vmem:[#allocation4] sm:$0xff]
    %v657 = vld [vmem:[#allocation4 + $0x8] sm:$0xff]
    %v658 = vld [vmem:[#allocation4 + $0x10] sm:$0xff]
    %v659 = vld [vmem:[#allocation4 + $0x18] sm:$0xff]
    %v660 = vld [vmem:[#allocation4 + $0x20] sm:$0xff]
    %v661 = vld [vmem:[#allocation4 + $0x28] sm:$0xff]
    %v662 = vld [vmem:[#allocation4 + $0x30] sm:$0xff]
    %v663 = vld [vmem:[#allocation4 + $0x38] sm:$0xff]
    %v664 = vld [vmem:[#allocation4 + $0x40] sm:$0xff]
    %v665 = vld [vmem:[#allocation4 + $0x48] sm:$0xff]
    %v666 = vld [vmem:[#allocation4 + $0x50] sm:$0xff]
    %v667 = vld [vmem:[#allocation4 + $0x58] sm:$0xff]
    %v668 = vld [vmem:[#allocation4 + $0x60] sm:$0xff]
    %v669 = vld [vmem:[#allocation4 + $0x68] sm:$0xff]
    %v670 = vld [vmem:[#allocation4 + $0x70] sm:$0xff]
    %v671 = vld [vmem:[#allocation4 + $0x78] sm:$0xff]
    %v672 = vpack.c.bf16 %v657, %v656
    %v673 = vpack.c.bf16 %v659, %v658
    %v674 = vpack.c.bf16 %v661, %v660
    %v675 = vpack.c.bf16 %v663, %v662
    %v676 = vpack.c.bf16 %v665, %v664
    %v677 = vpack.c.bf16 %v667, %v666
    %v678 = vpack.c.bf16 %v669, %v668
    %v679 = vpack.c.bf16 %v671, %v670
    %v680 = vld [vmem:[#allocation9] sm:$0xff]
    %v681 = vld [vmem:[#allocation9 + $0x8] sm:$0xff]
    %v682 = vld [vmem:[#allocation9 + $0x10] sm:$0xff]
    %v683 = vld [vmem:[#allocation9 + $0x18] sm:$0xff]
    %v684 = vld [vmem:[#allocation9 + $0x20] sm:$0xff]
    %v685 = vld [vmem:[#allocation9 + $0x28] sm:$0xff]
    %v686 = vld [vmem:[#allocation9 + $0x30] sm:$0xff]
    %v687 = vld [vmem:[#allocation9 + $0x38] sm:$0xff]
    %v688 = vld [vmem:[#allocation9 + $0x40] sm:$0xff]
    %v689 = vld [vmem:[#allocation9 + $0x48] sm:$0xff]
    %v690 = vld [vmem:[#allocation9 + $0x50] sm:$0xff]
    %v691 = vld [vmem:[#allocation9 + $0x58] sm:$0xff]
    %v692 = vld [vmem:[#allocation9 + $0x60] sm:$0xff]
    %v693 = vld [vmem:[#allocation9 + $0x68] sm:$0xff]
    %v694 = vld [vmem:[#allocation9 + $0x70] sm:$0xff]
    %v695 = vld [vmem:[#allocation9 + $0x78] sm:$0xff]
    %v696 = vld [vmem:[%s4] sm:$0x3]
    %v698 = vlaneseq
    %v699 = vshrl.u32 %v698, 7
    %v700 = vsub.s32 0, %v699
    %v701 = vrot.slane %v696, %v700
    %v702 = vlaneseq
    %v703 = vshrl.u32 %v702, 7
    %v704 = vsub.s32 1, %v703
    %v705 = vrot.slane %v696, %v704
    %v724 = vunpack.c.l.b16 %v680
    %v725 = vunpack.c.h.b16 %v680
    %v726 = vunpack.c.l.b16 %v681
    %v727 = vunpack.c.h.b16 %v681
    %v728 = vunpack.c.l.b16 %v682
    %v729 = vunpack.c.h.b16 %v682
    %v730 = vunpack.c.l.b16 %v683
    %v731 = vunpack.c.h.b16 %v683
    %v732 = vunpack.c.l.b16 %v684
    %v733 = vunpack.c.h.b16 %v684
    %v734 = vunpack.c.l.b16 %v685
    %v735 = vunpack.c.h.b16 %v685
    %v736 = vunpack.c.l.b16 %v686
    %v737 = vunpack.c.h.b16 %v686
    %v738 = vunpack.c.l.b16 %v687
    %v739 = vunpack.c.h.b16 %v687
    %v740 = vunpack.c.l.b16 %v688
    %v741 = vunpack.c.h.b16 %v688
    %v742 = vunpack.c.l.b16 %v689
    %v743 = vunpack.c.h.b16 %v689
    %v744 = vunpack.c.l.b16 %v690
    %v745 = vunpack.c.h.b16 %v690
    %v746 = vunpack.c.l.b16 %v691
    %v747 = vunpack.c.h.b16 %v691
    %v748 = vunpack.c.l.b16 %v692
    %v749 = vunpack.c.h.b16 %v692
    %v750 = vunpack.c.l.b16 %v693
    %v751 = vunpack.c.h.b16 %v693
    %v752 = vunpack.c.l.b16 %v694
    %v753 = vunpack.c.h.b16 %v694
    %v754 = vunpack.c.l.b16 %v695
    %v755 = vunpack.c.h.b16 %v695
    %v756 = vpack.c.b16 %v726, %v724
    %v757 = vpack.c.b16 %v727, %v725
    %v758 = vpack.c.b16 %v730, %v728
    %v759 = vpack.c.b16 %v731, %v729
    %v760 = vpack.c.b16 %v734, %v732
    %v761 = vpack.c.b16 %v735, %v733
    %v762 = vpack.c.b16 %v738, %v736
    %v763 = vpack.c.b16 %v739, %v737
    %v764 = vpack.c.b16 %v742, %v740
    %v765 = vpack.c.b16 %v743, %v741
    %v766 = vpack.c.b16 %v746, %v744
    %v767 = vpack.c.b16 %v747, %v745
    %v768 = vpack.c.b16 %v750, %v748
    %v769 = vpack.c.b16 %v751, %v749
    %v770 = vpack.c.b16 %v754, %v752
    %v771 = vpack.c.b16 %v755, %v753
    %788 = vmatprep.subr.bf16.mxu0 %v757
    %789 = vmatpush1.bf16.msra.mxu0 %v756
    %790 = vmatprep.subr.bf16.mxu0 %v759
    %791 = vmatpush1.bf16.msra.mxu0 %v758
    %792 = vmatprep.subr.bf16.mxu0 %v761
    %793 = vmatpush1.bf16.msra.mxu0 %v760
    %794 = vmatprep.subr.bf16.mxu0 %v763
    %795 = vmatpush1.bf16.msra.mxu0 %v762
    %796 = vmatprep.subr.bf16.mxu0 %v765
    %797 = vmatpush1.bf16.msra.mxu0 %v764
    %798 = vmatprep.subr.bf16.mxu0 %v767
    %799 = vmatpush1.bf16.msra.mxu0 %v766
    %800 = vmatprep.subr.bf16.mxu0 %v769
    %801 = vmatpush1.bf16.msra.mxu0 %v768
    %802 = vmatprep.subr.bf16.mxu0 %v771
    %803 = vmatpush1.bf16.msra.mxu0 %v770
    %804 = vmatprep.subr.bf16.mxu0 0
    %805 = vmatpush1.bf16.msra.mxu0 0
    %806 = vmatprep.subr.bf16.mxu0 0
    %807 = vmatpush1.bf16.msra.mxu0 0
    %808 = vmatprep.subr.bf16.mxu0 0
    %809 = vmatpush1.bf16.msra.mxu0 0
    %810 = vmatprep.subr.bf16.mxu0 0
    %811 = vmatpush1.bf16.msra.mxu0 0
    %812 = vmatprep.subr.bf16.mxu0 0
    %813 = vmatpush1.bf16.msra.mxu0 0
    %814 = vmatprep.subr.bf16.mxu0 0
    %815 = vmatpush1.bf16.msra.mxu0 0
    %816 = vmatprep.subr.bf16.mxu0 0
    %817 = vmatpush1.bf16.msra.mxu0 0
    %818 = vmatprep.subr.bf16.mxu0 0
    %819 = vmatpush1.bf16.msra.mxu0 0
    %820 = vmatprep.mubr.bf16.mxu0 0
    %821 = vmatmul.mubr.bf16.gmra.mrb[0].mxu0 %v672
    %v822 = vpop.f32.mrb[0].mxu0
    %v823 = vadd.f32 %v701, %v822
    %v824 = vpop.f32.mrb[0].mxu0
    %v825 = vadd.f32 %v705, %v824
    %v826 = vpop.f32.mrb[0].mxu0
    %v827 = vadd.f32 %v701, %v826
    %v828 = vpop.f32.mrb[0].mxu0
    %v829 = vadd.f32 %v705, %v828
    %830 = vmatprep.mubr.bf16.mxu0 0
    %831 = vmatmul.mubr.bf16.gmra.mrb[0].mxu0 %v673
    %v832 = vpop.f32.mrb[0].mxu0
    %v833 = vadd.f32 %v701, %v832
    %v834 = vpop.f32.mrb[0].mxu0
    %v835 = vadd.f32 %v705, %v834
    %v836 = vpop.f32.mrb[0].mxu0
    %v837 = vadd.f32 %v701, %v836
    %v838 = vpop.f32.mrb[0].mxu0
    %v839 = vadd.f32 %v705, %v838
    %840 = vmatprep.mubr.bf16.mxu0 0
    %841 = vmatmul.mubr.bf16.gmra.mrb[0].mxu0 %v674
    %v842 = vpop.f32.mrb[0].mxu0
    %v843 = vadd.f32 %v701, %v842
    %v844 = vpop.f32.mrb[0].mxu0
    %v845 = vadd.f32 %v705, %v844
    %v846 = vpop.f32.mrb[0].mxu0
    %v847 = vadd.f32 %v701, %v846
    %v848 = vpop.f32.mrb[0].mxu0
    %v849 = vadd.f32 %v705, %v848
    %850 = vmatprep.mubr.bf16.mxu0 0
    %851 = vmatmul.mubr.bf16.gmra.mrb[0].mxu0 %v675
    %v852 = vpop.f32.mrb[0].mxu0
    %v853 = vadd.f32 %v701, %v852
    %v854 = vpop.f32.mrb[0].mxu0
    %v855 = vadd.f32 %v705, %v854
    %v856 = vpop.f32.mrb[0].mxu0
    %v857 = vadd.f32 %v701, %v856
    %v858 = vpop.f32.mrb[0].mxu0
    %v859 = vadd.f32 %v705, %v858
    %860 = vmatprep.mubr.bf16.mxu0 0
    %861 = vmatmul.mubr.bf16.gmra.mrb[0].mxu0 %v676
    %v862 = vpop.f32.mrb[0].mxu0
    %v863 = vadd.f32 %v701, %v862
    %v864 = vpop.f32.mrb[0].mxu0
    %v865 = vadd.f32 %v705, %v864
    %v866 = vpop.f32.mrb[0].mxu0
    %v867 = vadd.f32 %v701, %v866
    %v868 = vpop.f32.mrb[0].mxu0
    %v869 = vadd.f32 %v705, %v868
    %870 = vmatprep.mubr.bf16.mxu0 0
    %871 = vmatmul.mubr.bf16.gmra.mrb[0].mxu0 %v677
    %v872 = vpop.f32.mrb[0].mxu0
    %v873 = vadd.f32 %v701, %v872
    %v874 = vpop.f32.mrb[0].mxu0
    %v875 = vadd.f32 %v705, %v874
    %v876 = vpop.f32.mrb[0].mxu0
    %v877 = vadd.f32 %v701, %v876
    %v878 = vpop.f32.mrb[0].mxu0
    %v879 = vadd.f32 %v705, %v878
    %880 = vmatprep.mubr.bf16.mxu0 0
    %881 = vmatmul.mubr.bf16.gmra.mrb[0].mxu0 %v678
    %v882 = vpop.f32.mrb[0].mxu0
    %v883 = vadd.f32 %v701, %v882
    %v884 = vpop.f32.mrb[0].mxu0
    %v885 = vadd.f32 %v705, %v884
    %v886 = vpop.f32.mrb[0].mxu0
    %v887 = vadd.f32 %v701, %v886
    %v888 = vpop.f32.mrb[0].mxu0
    %v889 = vadd.f32 %v705, %v888
    %890 = vmatprep.mubr.bf16.mxu0 0
    %891 = vmatmul.mubr.bf16.gmra.mrb[0].mxu0 %v679
    %v892 = vpop.f32.mrb[0].mxu0
    %v893 = vadd.f32 %v701, %v892
    %v894 = vpop.f32.mrb[0].mxu0
    %v895 = vadd.f32 %v705, %v894
    %v896 = vpop.f32.mrb[0].mxu0
    %v897 = vadd.f32 %v701, %v896
    %v898 = vpop.f32.mrb[0].mxu0
    %v899 = vadd.f32 %v705, %v898
    %900 = vdwg.mxu0
    %v901 = vmax.f32 %v823, 0.0
    %v902 = vmax.f32 %v825, 0.0
    %v903 = vmax.f32 %v827, 0.0
    %v904 = vmax.f32 %v829, 0.0
    %v905 = vmax.f32 %v833, 0.0
    %v906 = vmax.f32 %v835, 0.0
    %v907 = vmax.f32 %v837, 0.0
    %v908 = vmax.f32 %v839, 0.0
    %v909 = vmax.f32 %v843, 0.0
    %v910 = vmax.f32 %v845, 0.0
    %v911 = vmax.f32 %v847, 0.0
    %v912 = vmax.f32 %v849, 0.0
    %v913 = vmax.f32 %v853, 0.0
    %v914 = vmax.f32 %v855, 0.0
    %v915 = vmax.f32 %v857, 0.0
    %v916 = vmax.f32 %v859, 0.0
    %v917 = vmax.f32 %v863, 0.0
    %v918 = vmax.f32 %v865, 0.0
    %v919 = vmax.f32 %v867, 0.0
    %v920 = vmax.f32 %v869, 0.0
    %v921 = vmax.f32 %v873, 0.0
    %v922 = vmax.f32 %v875, 0.0
    %v923 = vmax.f32 %v877, 0.0
    %v924 = vmax.f32 %v879, 0.0
    %v925 = vmax.f32 %v883, 0.0
    %v926 = vmax.f32 %v885, 0.0
    %v927 = vmax.f32 %v887, 0.0
    %v928 = vmax.f32 %v889, 0.0
    %v929 = vmax.f32 %v893, 0.0
    %v930 = vmax.f32 %v895, 0.0
    %v931 = vmax.f32 %v897, 0.0
    %v932 = vmax.f32 %v899, 0.0
    %v933 = vlaneseq
    %v934 = vand.u32 %v933, 127
    %v935 = vadd.s32 %v934, 128
    %s936 = smul.u32 0, 256
    %v937 = vstv %s936
    %v938 = vadd.s32 %v934, %v937
    %v939 = vadd.s32 %v935, %v937
    %v940 = vlaneseq
    %v941 = vshrl.u32 %v940, 7
    %v942 = vadd.s32 %v941, 8
    %v943 = vadd.s32 %v941, 16
    %v944 = vadd.s32 %v941, 24
    %v945 = vadd.s32 %v941, 32
    %v946 = vadd.s32 %v941, 40
    %v947 = vadd.s32 %v941, 48
    %v948 = vadd.s32 %v941, 56
    %v949 = vadd.s32 %v941, 64
    %v950 = vadd.s32 %v941, 72
    %v951 = vadd.s32 %v941, 80
    %v952 = vadd.s32 %v941, 88
    %v953 = vadd.s32 %v941, 96
    %v954 = vadd.s32 %v941, 104
    %v955 = vadd.s32 %v941, 112
    %v956 = vadd.s32 %v941, 120
    %v957 = vmul.u32 %v941, 64
    %v958 = vmul.u32 %v942, 64
    %v959 = vmul.u32 %v943, 64
    %v960 = vmul.u32 %v944, 64
    %v961 = vmul.u32 %v945, 64
    %v962 = vmul.u32 %v946, 64
    %v963 = vmul.u32 %v947, 64
    %v964 = vmul.u32 %v948, 64
    %v965 = vmul.u32 %v949, 64
    %v966 = vmul.u32 %v950, 64
    %v967 = vmul.u32 %v951, 64
    %v968 = vmul.u32 %v952, 64
    %v969 = vmul.u32 %v953, 64
    %v970 = vmul.u32 %v954, 64
    %v971 = vmul.u32 %v955, 64
    %v972 = vmul.u32 %v956, 64
    %vm973 = vcmp.ge.s32.totalorder %v938, %v957
    %vm974 = vcmp.ge.s32.totalorder %v939, %v957
    %vm975 = vcmp.ge.s32.totalorder %v938, %v958
    %vm976 = vcmp.ge.s32.totalorder %v939, %v958
    %vm977 = vcmp.ge.s32.totalorder %v938, %v959
    %vm978 = vcmp.ge.s32.totalorder %v939, %v959
    %vm979 = vcmp.ge.s32.totalorder %v938, %v960
    %vm980 = vcmp.ge.s32.totalorder %v939, %v960
    %vm981 = vcmp.ge.s32.totalorder %v938, %v961
    %vm982 = vcmp.ge.s32.totalorder %v939, %v961
    %vm983 = vcmp.ge.s32.totalorder %v938, %v962
    %vm984 = vcmp.ge.s32.totalorder %v939, %v962
    %vm985 = vcmp.ge.s32.totalorder %v938, %v963
    %vm986 = vcmp.ge.s32.totalorder %v939, %v963
    %vm987 = vcmp.ge.s32.totalorder %v938, %v964
    %vm988 = vcmp.ge.s32.totalorder %v939, %v964
    %vm989 = vcmp.ge.s32.totalorder %v938, %v965
    %vm990 = vcmp.ge.s32.totalorder %v939, %v965
    %vm991 = vcmp.ge.s32.totalorder %v938, %v966
    %vm992 = vcmp.ge.s32.totalorder %v939, %v966
    %vm993 = vcmp.ge.s32.totalorder %v938, %v967
    %vm994 = vcmp.ge.s32.totalorder %v939, %v967
    %vm995 = vcmp.ge.s32.totalorder %v938, %v968
    %vm996 = vcmp.ge.s32.totalorder %v939, %v968
    %vm997 = vcmp.ge.s32.totalorder %v938, %v969
    %vm998 = vcmp.ge.s32.totalorder %v939, %v969
    %vm999 = vcmp.ge.s32.totalorder %v938, %v970
    %vm1000 = vcmp.ge.s32.totalorder %v939, %v970
    %vm1001 = vcmp.ge.s32.totalorder %v938, %v971
    %vm1002 = vcmp.ge.s32.totalorder %v939, %v971
    %vm1003 = vcmp.ge.s32.totalorder %v938, %v972
    %vm1004 = vcmp.ge.s32.totalorder %v939, %v972
    %v1005 = vadd.s32 %v957, 64
    %v1006 = vadd.s32 %v958, 64
    %v1007 = vadd.s32 %v959, 64
    %v1008 = vadd.s32 %v960, 64
    %v1009 = vadd.s32 %v961, 64
    %v1010 = vadd.s32 %v962, 64
    %v1011 = vadd.s32 %v963, 64
    %v1012 = vadd.s32 %v964, 64
    %v1013 = vadd.s32 %v965, 64
    %v1014 = vadd.s32 %v966, 64
    %v1015 = vadd.s32 %v967, 64
    %v1016 = vadd.s32 %v968, 64
    %v1017 = vadd.s32 %v969, 64
    %v1018 = vadd.s32 %v970, 64
    %v1019 = vadd.s32 %v971, 64
    %v1020 = vadd.s32 %v972, 64
    %vm1021 = vcmp.lt.s32.totalorder %v938, %v1005
    %vm1022 = vcmp.lt.s32.totalorder %v939, %v1005
    %vm1023 = vcmp.lt.s32.totalorder %v938, %v1006
    %vm1024 = vcmp.lt.s32.totalorder %v939, %v1006
    %vm1025 = vcmp.lt.s32.totalorder %v938, %v1007
    %vm1026 = vcmp.lt.s32.totalorder %v939, %v1007
    %vm1027 = vcmp.lt.s32.totalorder %v938, %v1008
    %vm1028 = vcmp.lt.s32.totalorder %v939, %v1008
    %vm1029 = vcmp.lt.s32.totalorder %v938, %v1009
    %vm1030 = vcmp.lt.s32.totalorder %v939, %v1009
    %vm1031 = vcmp.lt.s32.totalorder %v938, %v1010
    %vm1032 = vcmp.lt.s32.totalorder %v939, %v1010
    %vm1033 = vcmp.lt.s32.totalorder %v938, %v1011
    %vm1034 = vcmp.lt.s32.totalorder %v939, %v1011
    %vm1035 = vcmp.lt.s32.totalorder %v938, %v1012
    %vm1036 = vcmp.lt.s32.totalorder %v939, %v1012
    %vm1037 = vcmp.lt.s32.totalorder %v938, %v1013
    %vm1038 = vcmp.lt.s32.totalorder %v939, %v1013
    %vm1039 = vcmp.lt.s32.totalorder %v938, %v1014
    %vm1040 = vcmp.lt.s32.totalorder %v939, %v1014
    %vm1041 = vcmp.lt.s32.totalorder %v938, %v1015
    %vm1042 = vcmp.lt.s32.totalorder %v939, %v1015
    %vm1043 = vcmp.lt.s32.totalorder %v938, %v1016
    %vm1044 = vcmp.lt.s32.totalorder %v939, %v1016
    %vm1045 = vcmp.lt.s32.totalorder %v938, %v1017
    %vm1046 = vcmp.lt.s32.totalorder %v939, %v1017
    %vm1047 = vcmp.lt.s32.totalorder %v938, %v1018
    %vm1048 = vcmp.lt.s32.totalorder %v939, %v1018
    %vm1049 = vcmp.lt.s32.totalorder %v938, %v1019
    %vm1050 = vcmp.lt.s32.totalorder %v939, %v1019
    %vm1051 = vcmp.lt.s32.totalorder %v938, %v1020
    %vm1052 = vcmp.lt.s32.totalorder %v939, %v1020
    %vm1053 = vmand %vm973, %vm1021
    %vm1054 = vmand %vm974, %vm1022
    %vm1055 = vmand %vm975, %vm1023
    %vm1056 = vmand %vm976, %vm1024
    %vm1057 = vmand %vm977, %vm1025
    %vm1058 = vmand %vm978, %vm1026
    %vm1059 = vmand %vm979, %vm1027
    %vm1060 = vmand %vm980, %vm1028
    %vm1061 = vmand %vm981, %vm1029
    %vm1062 = vmand %vm982, %vm1030
    %vm1063 = vmand %vm983, %vm1031
    %vm1064 = vmand %vm984, %vm1032
    %vm1065 = vmand %vm985, %vm1033
    %vm1066 = vmand %vm986, %vm1034
    %vm1067 = vmand %vm987, %vm1035
    %vm1068 = vmand %vm988, %vm1036
    %vm1069 = vmand %vm989, %vm1037
    %vm1070 = vmand %vm990, %vm1038
    %vm1071 = vmand %vm991, %vm1039
    %vm1072 = vmand %vm992, %vm1040
    %vm1073 = vmand %vm993, %vm1041
    %vm1074 = vmand %vm994, %vm1042
    %vm1075 = vmand %vm995, %vm1043
    %vm1076 = vmand %vm996, %vm1044
    %vm1077 = vmand %vm997, %vm1045
    %vm1078 = vmand %vm998, %vm1046
    %vm1079 = vmand %vm999, %vm1047
    %vm1080 = vmand %vm1000, %vm1048
    %vm1081 = vmand %vm1001, %vm1049
    %vm1082 = vmand %vm1002, %vm1050
    %vm1083 = vmand %vm1003, %vm1051
    %vm1084 = vmand %vm1004, %vm1052
    %v1085 = vsel %vm1053, 1.0, 0.0
    %v1086 = vsel %vm1054, 1.0, 0.0
    %v1087 = vsel %vm1055, 1.0, 0.0
    %v1088 = vsel %vm1056, 1.0, 0.0
    %v1089 = vsel %vm1057, 1.0, 0.0
    %v1090 = vsel %vm1058, 1.0, 0.0
    %v1091 = vsel %vm1059, 1.0, 0.0
    %v1092 = vsel %vm1060, 1.0, 0.0
    %v1093 = vsel %vm1061, 1.0, 0.0
    %v1094 = vsel %vm1062, 1.0, 0.0
    %v1095 = vsel %vm1063, 1.0, 0.0
    %v1096 = vsel %vm1064, 1.0, 0.0
    %v1097 = vsel %vm1065, 1.0, 0.0
    %v1098 = vsel %vm1066, 1.0, 0.0
    %v1099 = vsel %vm1067, 1.0, 0.0
    %v1100 = vsel %vm1068, 1.0, 0.0
    %v1101 = vsel %vm1069, 1.0, 0.0
    %v1102 = vsel %vm1070, 1.0, 0.0
    %v1103 = vsel %vm1071, 1.0, 0.0
    %v1104 = vsel %vm1072, 1.0, 0.0
    %v1105 = vsel %vm1073, 1.0, 0.0
    %v1106 = vsel %vm1074, 1.0, 0.0
    %v1107 = vsel %vm1075, 1.0, 0.0
    %v1108 = vsel %vm1076, 1.0, 0.0
    %v1109 = vsel %vm1077, 1.0, 0.0
    %v1110 = vsel %vm1078, 1.0, 0.0
    %v1111 = vsel %vm1079, 1.0, 0.0
    %v1112 = vsel %vm1080, 1.0, 0.0
    %v1113 = vsel %vm1081, 1.0, 0.0
    %v1114 = vsel %vm1082, 1.0, 0.0
    %v1115 = vsel %vm1083, 1.0, 0.0
    %v1116 = vsel %vm1084, 1.0, 0.0
    %v1117 = vpack.c.bf16 %v1087, %v1085
    %v1118 = vpack.c.bf16 %v1088, %v1086
    %v1119 = vpack.c.bf16 %v1091, %v1089
    %v1120 = vpack.c.bf16 %v1092, %v1090
    %v1121 = vpack.c.bf16 %v1095, %v1093
    %v1122 = vpack.c.bf16 %v1096, %v1094
    %v1123 = vpack.c.bf16 %v1099, %v1097
    %v1124 = vpack.c.bf16 %v1100, %v1098
    %v1125 = vpack.c.bf16 %v1103, %v1101
    %v1126 = vpack.c.bf16 %v1104, %v1102
    %v1127 = vpack.c.bf16 %v1107, %v1105
    %v1128 = vpack.c.bf16 %v1108, %v1106
    %v1129 = vpack.c.bf16 %v1111, %v1109
    %v1130 = vpack.c.bf16 %v1112, %v1110
    %v1131 = vpack.c.bf16 %v1115, %v1113
    %v1132 = vpack.c.bf16 %v1116, %v1114
    %v1133 = vld [vmem:[#allocation2] sm:$0xff]
    %v1134 = vld [vmem:[#allocation2 + $0x8] sm:$0xff]
    %v1135 = vld [vmem:[#allocation2 + $0x10] sm:$0xff]
    %v1136 = vld [vmem:[#allocation2 + $0x18] sm:$0xff]
    %v1137 = vld [vmem:[#allocation2 + $0x20] sm:$0xff]
    %v1138 = vld [vmem:[#allocation2 + $0x28] sm:$0xff]
    %v1139 = vld [vmem:[#allocation2 + $0x30] sm:$0xff]
    %v1140 = vld [vmem:[#allocation2 + $0x38] sm:$0xff]
    %v1141 = vld [vmem:[#allocation2 + $0x40] sm:$0xff]
    %v1142 = vld [vmem:[#allocation2 + $0x48] sm:$0xff]
    %v1143 = vld [vmem:[#allocation2 + $0x50] sm:$0xff]
    %v1144 = vld [vmem:[#allocation2 + $0x58] sm:$0xff]
    %v1145 = vld [vmem:[#allocation2 + $0x60] sm:$0xff]
    %v1146 = vld [vmem:[#allocation2 + $0x68] sm:$0xff]
    %v1147 = vld [vmem:[#allocation2 + $0x70] sm:$0xff]
    %v1148 = vld [vmem:[#allocation2 + $0x78] sm:$0xff]
    %v1149 = vpack.c.bf16 %v1134, %v1133
    %v1150 = vpack.c.bf16 %v1136, %v1135
    %v1151 = vpack.c.bf16 %v1138, %v1137
    %v1152 = vpack.c.bf16 %v1140, %v1139
    %v1153 = vpack.c.bf16 %v1142, %v1141
    %v1154 = vpack.c.bf16 %v1144, %v1143
    %v1155 = vpack.c.bf16 %v1146, %v1145
    %v1156 = vpack.c.bf16 %v1148, %v1147
    %1157 = vmatprep.subr.bf16.mxu0 %v1118
    %1158 = vmatpush1.bf16.msra.mxu0 %v1117
    %1159 = vmatprep.subr.bf16.mxu0 %v1120
    %1160 = vmatpush1.bf16.msra.mxu0 %v1119
    %1161 = vmatprep.subr.bf16.mxu0 %v1122
    %1162 = vmatpush1.bf16.msra.mxu0 %v1121
    %1163 = vmatprep.subr.bf16.mxu0 %v1124
    %1164 = vmatpush1.bf16.msra.mxu0 %v1123
    %1165 = vmatprep.subr.bf16.mxu0 %v1126
    %1166 = vmatpush1.bf16.msra.mxu0 %v1125
    %1167 = vmatprep.subr.bf16.mxu0 %v1128
    %1168 = vmatpush1.bf16.msra.mxu0 %v1127
    %1169 = vmatprep.subr.bf16.mxu0 %v1130
    %1170 = vmatpush1.bf16.msra.mxu0 %v1129
    %1171 = vmatprep.subr.bf16.mxu0 %v1132
    %1172 = vmatpush1.bf16.msra.mxu0 %v1131
    %1173 = vmatprep.subr.bf16.mxu0 0
    %1174 = vmatpush1.bf16.msra.mxu0 0
    %1175 = vmatprep.subr.bf16.mxu0 0
    %1176 = vmatpush1.bf16.msra.mxu0 0
    %1177 = vmatprep.subr.bf16.mxu0 0
    %1178 = vmatpush1.bf16.msra.mxu0 0
    %1179 = vmatprep.subr.bf16.mxu0 0
    %1180 = vmatpush1.bf16.msra.mxu0 0
    %1181 = vmatprep.subr.bf16.mxu0 0
    %1182 = vmatpush1.bf16.msra.mxu0 0
    %1183 = vmatprep.subr.bf16.mxu0 0
    %1184 = vmatpush1.bf16.msra.mxu0 0
    %1185 = vmatprep.subr.bf16.mxu0 0
    %1186 = vmatpush1.bf16.msra.mxu0 0
    %1187 = vmatprep.subr.bf16.mxu0 0
    %1188 = vmatpush1.bf16.msra.mxu0 0
    %1189 = vmatprep.mubr.bf16.mxu0 0
    %1190 = vmatmul.mubr.bf16.gmra.mrb[0].mxu0 %v1149
    %v1191 = vpop.f32.mrb[0].mxu0
    %v1192 = vadd.f32 0.0, %v1191
    %v1193 = vpop.f32.mrb[0].mxu0
    %v1194 = vadd.f32 0.0, %v1193
    %v1195 = vpop.f32.mrb[0].mxu0
    %v1196 = vadd.f32 0.0, %v1195
    %v1197 = vpop.f32.mrb[0].mxu0
    %v1198 = vadd.f32 0.0, %v1197
    %1199 = vmatprep.mubr.bf16.mxu0 0
    %1200 = vmatmul.mubr.bf16.gmra.mrb[0].mxu0 %v1150
    %v1201 = vpop.f32.mrb[0].mxu0
    %v1202 = vadd.f32 0.0, %v1201
    %v1203 = vpop.f32.mrb[0].mxu0
    %v1204 = vadd.f32 0.0, %v1203
    %v1205 = vpop.f32.mrb[0].mxu0
    %v1206 = vadd.f32 0.0, %v1205
    %v1207 = vpop.f32.mrb[0].mxu0
    %v1208 = vadd.f32 0.0, %v1207
    %1209 = vmatprep.mubr.bf16.mxu0 0
    %1210 = vmatmul.mubr.bf16.gmra.mrb[0].mxu0 %v1151
    %v1211 = vpop.f32.mrb[0].mxu0
    %v1212 = vadd.f32 0.0, %v1211
    %v1213 = vpop.f32.mrb[0].mxu0
    %v1214 = vadd.f32 0.0, %v1213
    %v1215 = vpop.f32.mrb[0].mxu0
    %v1216 = vadd.f32 0.0, %v1215
    %v1217 = vpop.f32.mrb[0].mxu0
    %v1218 = vadd.f32 0.0, %v1217
    %1219 = vmatprep.mubr.bf16.mxu0 0
    %1220 = vmatmul.mubr.bf16.gmra.mrb[0].mxu0 %v1152
    %v1221 = vpop.f32.mrb[0].mxu0
    %v1222 = vadd.f32 0.0, %v1221
    %v1223 = vpop.f32.mrb[0].mxu0
    %v1224 = vadd.f32 0.0, %v1223
    %v1225 = vpop.f32.mrb[0].mxu0
    %v1226 = vadd.f32 0.0, %v1225
    %v1227 = vpop.f32.mrb[0].mxu0
    %v1228 = vadd.f32 0.0, %v1227
    %1229 = vmatprep.mubr.bf16.mxu0 0
    %1230 = vmatmul.mubr.bf16.gmra.mrb[0].mxu0 %v1153
    %v1231 = vpop.f32.mrb[0].mxu0
    %v1232 = vadd.f32 0.0, %v1231
    %v1233 = vpop.f32.mrb[0].mxu0
    %v1234 = vadd.f32 0.0, %v1233
    %v1235 = vpop.f32.mrb[0].mxu0
    %v1236 = vadd.f32 0.0, %v1235
    %v1237 = vpop.f32.mrb[0].mxu0
    %v1238 = vadd.f32 0.0, %v1237
    %1239 = vmatprep.mubr.bf16.mxu0 0
    %1240 = vmatmul.mubr.bf16.gmra.mrb[0].mxu0 %v1154
    %v1241 = vpop.f32.mrb[0].mxu0
    %v1242 = vadd.f32 0.0, %v1241
    %v1243 = vpop.f32.mrb[0].mxu0
    %v1244 = vadd.f32 0.0, %v1243
    %v1245 = vpop.f32.mrb[0].mxu0
    %v1246 = vadd.f32 0.0, %v1245
    %v1247 = vpop.f32.mrb[0].mxu0
    %v1248 = vadd.f32 0.0, %v1247
    %1249 = vmatprep.mubr.bf16.mxu0 0
    %1250 = vmatmul.mubr.bf16.gmra.mrb[0].mxu0 %v1155
    %v1251 = vpop.f32.mrb[0].mxu0
    %v1252 = vadd.f32 0.0, %v1251
    %v1253 = vpop.f32.mrb[0].mxu0
    %v1254 = vadd.f32 0.0, %v1253
    %v1255 = vpop.f32.mrb[0].mxu0
    %v1256 = vadd.f32 0.0, %v1255
    %v1257 = vpop.f32.mrb[0].mxu0
    %v1258 = vadd.f32 0.0, %v1257
    %1259 = vmatprep.mubr.bf16.mxu0 0
    %1260 = vmatmul.mubr.bf16.gmra.mrb[0].mxu0 %v1156
    %v1261 = vpop.f32.mrb[0].mxu0
    %v1262 = vadd.f32 0.0, %v1261
    %v1263 = vpop.f32.mrb[0].mxu0
    %v1264 = vadd.f32 0.0, %v1263
    %v1265 = vpop.f32.mrb[0].mxu0
    %v1266 = vadd.f32 0.0, %v1265
    %v1267 = vpop.f32.mrb[0].mxu0
    %v1268 = vadd.f32 0.0, %v1267
    %1269 = vdwg.mxu0
    %v1270 = vld [vmem:[#allocation3] sm:$0xff]
    %v1271 = vld [vmem:[#allocation3 + $0x8] sm:$0xff]
    %v1272 = vld [vmem:[#allocation3 + $0x10] sm:$0xff]
    %v1273 = vld [vmem:[#allocation3 + $0x18] sm:$0xff]
    %v1274 = vld [vmem:[#allocation3 + $0x20] sm:$0xff]
    %v1275 = vld [vmem:[#allocation3 + $0x28] sm:$0xff]
    %v1276 = vld [vmem:[#allocation3 + $0x30] sm:$0xff]
    %v1277 = vld [vmem:[#allocation3 + $0x38] sm:$0xff]
    %v1278 = vld [vmem:[#allocation3 + $0x40] sm:$0xff]
    %v1279 = vld [vmem:[#allocation3 + $0x48] sm:$0xff]
    %v1280 = vld [vmem:[#allocation3 + $0x50] sm:$0xff]
    %v1281 = vld [vmem:[#allocation3 + $0x58] sm:$0xff]
    %v1282 = vld [vmem:[#allocation3 + $0x60] sm:$0xff]
    %v1283 = vld [vmem:[#allocation3 + $0x68] sm:$0xff]
    %v1284 = vld [vmem:[#allocation3 + $0x70] sm:$0xff]
    %v1285 = vld [vmem:[#allocation3 + $0x78] sm:$0xff]
    %v1286 = vmul.f32 %v901, %v1192
    %v1287 = vmul.f32 %v902, %v1194
    %v1288 = vmul.f32 %v903, %v1196
    %v1289 = vmul.f32 %v904, %v1198
    %v1290 = vmul.f32 %v905, %v1202
    %v1291 = vmul.f32 %v906, %v1204
    %v1292 = vmul.f32 %v907, %v1206
    %v1293 = vmul.f32 %v908, %v1208
    %v1294 = vmul.f32 %v909, %v1212
    %v1295 = vmul.f32 %v910, %v1214
    %v1296 = vmul.f32 %v911, %v1216
    %v1297 = vmul.f32 %v912, %v1218
    %v1298 = vmul.f32 %v913, %v1222
    %v1299 = vmul.f32 %v914, %v1224
    %v1300 = vmul.f32 %v915, %v1226
    %v1301 = vmul.f32 %v916, %v1228
    %v1302 = vmul.f32 %v917, %v1232
    %v1303 = vmul.f32 %v918, %v1234
    %v1304 = vmul.f32 %v919, %v1236
    %v1305 = vmul.f32 %v920, %v1238
    %v1306 = vmul.f32 %v921, %v1242
    %v1307 = vmul.f32 %v922, %v1244
    %v1308 = vmul.f32 %v923, %v1246
    %v1309 = vmul.f32 %v924, %v1248
    %v1310 = vmul.f32 %v925, %v1252
    %v1311 = vmul.f32 %v926, %v1254
    %v1312 = vmul.f32 %v927, %v1256
    %v1313 = vmul.f32 %v928, %v1258
    %v1314 = vmul.f32 %v929, %v1262
    %v1315 = vmul.f32 %v930, %v1264
    %v1316 = vmul.f32 %v931, %v1266
    %v1317 = vmul.f32 %v932, %v1268
    %v1318 = vpack.c.bf16 %v1288, %v1286
    %v1319 = vpack.c.bf16 %v1289, %v1287
    %v1320 = vpack.c.bf16 %v1292, %v1290
    %v1321 = vpack.c.bf16 %v1293, %v1291
    %v1322 = vpack.c.bf16 %v1296, %v1294
    %v1323 = vpack.c.bf16 %v1297, %v1295
    %v1324 = vpack.c.bf16 %v1300, %v1298
    %v1325 = vpack.c.bf16 %v1301, %v1299
    %v1326 = vpack.c.bf16 %v1304, %v1302
    %v1327 = vpack.c.bf16 %v1305, %v1303
    %v1328 = vpack.c.bf16 %v1308, %v1306
    %v1329 = vpack.c.bf16 %v1309, %v1307
    %v1330 = vpack.c.bf16 %v1312, %v1310
    %v1331 = vpack.c.bf16 %v1313, %v1311
    %v1332 = vpack.c.bf16 %v1316, %v1314
    %v1333 = vpack.c.bf16 %v1317, %v1315
    %v1334 = vld [vmem:[#allocation10] sm:$0xf]
    %v1335 = vld [vmem:[#allocation10 + $0x4] sm:$0xf]
    %v1336 = vld [vmem:[#allocation10 + $0x8] sm:$0xf]
    %v1337 = vld [vmem:[#allocation10 + $0xc] sm:$0xf]
    %v1338 = vld [vmem:[#allocation10 + $0x10] sm:$0xf]
    %v1339 = vld [vmem:[#allocation10 + $0x14] sm:$0xf]
    %v1340 = vld [vmem:[#allocation10 + $0x18] sm:$0xf]
    %v1341 = vld [vmem:[#allocation10 + $0x1c] sm:$0xf]
    %v1342 = vld [vmem:[#allocation10 + $0x20] sm:$0xf]
    %v1343 = vld [vmem:[#allocation10 + $0x24] sm:$0xf]
    %v1344 = vld [vmem:[#allocation10 + $0x28] sm:$0xf]
    %v1345 = vld [vmem:[#allocation10 + $0x2c] sm:$0xf]
    %v1346 = vld [vmem:[#allocation10 + $0x30] sm:$0xf]
    %v1347 = vld [vmem:[#allocation10 + $0x34] sm:$0xf]
    %v1348 = vld [vmem:[#allocation10 + $0x38] sm:$0xf]
    %v1349 = vld [vmem:[#allocation10 + $0x3c] sm:$0xf]
    %v1350 = vld [vmem:[#allocation10 + $0x40] sm:$0xf]
    %v1351 = vld [vmem:[#allocation10 + $0x44] sm:$0xf]
    %v1352 = vld [vmem:[#allocation10 + $0x48] sm:$0xf]
    %v1353 = vld [vmem:[#allocation10 + $0x4c] sm:$0xf]
    %v1354 = vld [vmem:[#allocation10 + $0x50] sm:$0xf]
    %v1355 = vld [vmem:[#allocation10 + $0x54] sm:$0xf]
    %v1356 = vld [vmem:[#allocation10 + $0x58] sm:$0xf]
    %v1357 = vld [vmem:[#allocation10 + $0x5c] sm:$0xf]
    %v1358 = vld [vmem:[#allocation10 + $0x60] sm:$0xf]
    %v1359 = vld [vmem:[#allocation10 + $0x64] sm:$0xf]
    %v1360 = vld [vmem:[#allocation10 + $0x68] sm:$0xf]
    %v1361 = vld [vmem:[#allocation10 + $0x6c] sm:$0xf]
    %v1362 = vld [vmem:[#allocation10 + $0x70] sm:$0xf]
    %v1363 = vld [vmem:[#allocation10 + $0x74] sm:$0xf]
    %v1364 = vld [vmem:[#allocation10 + $0x78] sm:$0xf]
    %v1365 = vld [vmem:[#allocation10 + $0x7c] sm:$0xf]
    %v1398 = vunpack.c.l.b16 %v1334
    %v1399 = vunpack.c.l.b16 %v1335
    %v1400 = vunpack.c.l.b16 %v1336
    %v1401 = vunpack.c.l.b16 %v1337
    %v1402 = vunpack.c.l.b16 %v1338
    %v1403 = vunpack.c.l.b16 %v1339
    %v1404 = vunpack.c.l.b16 %v1340
    %v1405 = vunpack.c.l.b16 %v1341
    %v1406 = vunpack.c.l.b16 %v1342
    %v1407 = vunpack.c.l.b16 %v1343
    %v1408 = vunpack.c.l.b16 %v1344
    %v1409 = vunpack.c.l.b16 %v1345
    %v1410 = vunpack.c.l.b16 %v1346
    %v1411 = vunpack.c.l.b16 %v1347
    %v1412 = vunpack.c.l.b16 %v1348
    %v1413 = vunpack.c.l.b16 %v1349
    %v1414 = vunpack.c.l.b16 %v1350
    %v1415 = vunpack.c.l.b16 %v1351
    %v1416 = vunpack.c.l.b16 %v1352
    %v1417 = vunpack.c.l.b16 %v1353
    %v1418 = vunpack.c.l.b16 %v1354
    %v1419 = vunpack.c.l.b16 %v1355
    %v1420 = vunpack.c.l.b16 %v1356
    %v1421 = vunpack.c.l.b16 %v1357
    %v1422 = vunpack.c.l.b16 %v1358
    %v1423 = vunpack.c.l.b16 %v1359
    %v1424 = vunpack.c.l.b16 %v1360
    %v1425 = vunpack.c.l.b16 %v1361
    %v1426 = vunpack.c.l.b16 %v1362
    %v1427 = vunpack.c.l.b16 %v1363
    %v1428 = vunpack.c.l.b16 %v1364
    %v1429 = vunpack.c.l.b16 %v1365
    %v1430 = vpack.c.b16 %v1399, %v1398
    %v1431 = vpack.c.b16 %v1401, %v1400
    %v1432 = vpack.c.b16 %v1403, %v1402
    %v1433 = vpack.c.b16 %v1405, %v1404
    %v1434 = vpack.c.b16 %v1407, %v1406
    %v1435 = vpack.c.b16 %v1409, %v1408
    %v1436 = vpack.c.b16 %v1411, %v1410
    %v1437 = vpack.c.b16 %v1413, %v1412
    %v1438 = vpack.c.b16 %v1415, %v1414
    %v1439 = vpack.c.b16 %v1417, %v1416
    %v1440 = vpack.c.b16 %v1419, %v1418
    %v1441 = vpack.c.b16 %v1421, %v1420
    %v1442 = vpack.c.b16 %v1423, %v1422
    %v1443 = vpack.c.b16 %v1425, %v1424
    %v1444 = vpack.c.b16 %v1427, %v1426
    %v1445 = vpack.c.b16 %v1429, %v1428
    %1462 = vmatprep.subr.bf16.mxu0 0
    %1463 = vmatpush1.bf16.msra.mxu0 %v1430
    %1464 = vmatprep.subr.bf16.mxu0 0
    %1465 = vmatpush1.bf16.msra.mxu0 %v1431
    %1466 = vmatprep.subr.bf16.mxu0 0
    %1467 = vmatpush1.bf16.msra.mxu0 %v1432
    %1468 = vmatprep.subr.bf16.mxu0 0
    %1469 = vmatpush1.bf16.msra.mxu0 %v1433
    %1470 = vmatprep.subr.bf16.mxu0 0
    %1471 = vmatpush1.bf16.msra.mxu0 %v1434
    %1472 = vmatprep.subr.bf16.mxu0 0
    %1473 = vmatpush1.bf16.msra.mxu0 %v1435
    %1474 = vmatprep.subr.bf16.mxu0 0
    %1475 = vmatpush1.bf16.msra.mxu0 %v1436
    %1476 = vmatprep.subr.bf16.mxu0 0
    %1477 = vmatpush1.bf16.msra.mxu0 %v1437
    %1478 = vmatprep.subr.bf16.mxu0 0
    %1479 = vmatpush1.bf16.msra.mxu0 %v1438
    %1480 = vmatprep.subr.bf16.mxu0 0
    %1481 = vmatpush1.bf16.msra.mxu0 %v1439
    %1482 = vmatprep.subr.bf16.mxu0 0
    %1483 = vmatpush1.bf16.msra.mxu0 %v1440
    %1484 = vmatprep.subr.bf16.mxu0 0
    %1485 = vmatpush1.bf16.msra.mxu0 %v1441
    %1486 = vmatprep.subr.bf16.mxu0 0
    %1487 = vmatpush1.bf16.msra.mxu0 %v1442
    %1488 = vmatprep.subr.bf16.mxu0 0
    %1489 = vmatpush1.bf16.msra.mxu0 %v1443
    %1490 = vmatprep.subr.bf16.mxu0 0
    %1491 = vmatpush1.bf16.msra.mxu0 %v1444
    %1492 = vmatprep.subr.bf16.mxu0 0
    %1493 = vmatpush1.bf16.msra.mxu0 %v1445
    %1494 = vmatprep.mubr.bf16.mxu0 %v1319
    %1495 = vmatmul.mubr.bf16.gmra.mrb[0].mxu0 %v1318
    %v1496 = vpop.f32.mrb[0].mxu0
    %v1497 = vadd.f32 0.0, %v1496
    %v1498 = vpop.f32.mrb[0].mxu0
    %v1499 = vpop.f32.mrb[0].mxu0
    %v1500 = vadd.f32 0.0, %v1499
    %v1501 = vpop.f32.mrb[0].mxu0
    %1502 = vmatprep.mubr.bf16.mxu0 %v1321
    %1503 = vmatmul.mubr.bf16.gmra.mrb[0].mxu0 %v1320
    %v1504 = vpop.f32.mrb[0].mxu0
    %v1505 = vadd.f32 0.0, %v1504
    %v1506 = vpop.f32.mrb[0].mxu0
    %v1507 = vpop.f32.mrb[0].mxu0
    %v1508 = vadd.f32 0.0, %v1507
    %v1509 = vpop.f32.mrb[0].mxu0
    %1510 = vmatprep.mubr.bf16.mxu0 %v1323
    %1511 = vmatmul.mubr.bf16.gmra.mrb[0].mxu0 %v1322
    %v1512 = vpop.f32.mrb[0].mxu0
    %v1513 = vadd.f32 0.0, %v1512
    %v1514 = vpop.f32.mrb[0].mxu0
    %v1515 = vpop.f32.mrb[0].mxu0
    %v1516 = vadd.f32 0.0, %v1515
    %v1517 = vpop.f32.mrb[0].mxu0
    %1518 = vmatprep.mubr.bf16.mxu0 %v1325
    %1519 = vmatmul.mubr.bf16.gmra.mrb[0].mxu0 %v1324
    %v1520 = vpop.f32.mrb[0].mxu0
    %v1521 = vadd.f32 0.0, %v1520
    %v1522 = vpop.f32.mrb[0].mxu0
    %v1523 = vpop.f32.mrb[0].mxu0
    %v1524 = vadd.f32 0.0, %v1523
    %v1525 = vpop.f32.mrb[0].mxu0
    %1526 = vmatprep.mubr.bf16.mxu0 %v1327
    %1527 = vmatmul.mubr.bf16.gmra.mrb[0].mxu0 %v1326
    %v1528 = vpop.f32.mrb[0].mxu0
    %v1529 = vadd.f32 0.0, %v1528
    %v1530 = vpop.f32.mrb[0].mxu0
    %v1531 = vpop.f32.mrb[0].mxu0
    %v1532 = vadd.f32 0.0, %v1531
    %v1533 = vpop.f32.mrb[0].mxu0
    %1534 = vmatprep.mubr.bf16.mxu0 %v1329
    %1535 = vmatmul.mubr.bf16.gmra.mrb[0].mxu0 %v1328
    %v1536 = vpop.f32.mrb[0].mxu0
    %v1537 = vadd.f32 0.0, %v1536
    %v1538 = vpop.f32.mrb[0].mxu0
    %v1539 = vpop.f32.mrb[0].mxu0
    %v1540 = vadd.f32 0.0, %v1539
    %v1541 = vpop.f32.mrb[0].mxu0
    %1542 = vmatprep.mubr.bf16.mxu0 %v1331
    %1543 = vmatmul.mubr.bf16.gmra.mrb[0].mxu0 %v1330
    %v1544 = vpop.f32.mrb[0].mxu0
    %v1545 = vadd.f32 0.0, %v1544
    %v1546 = vpop.f32.mrb[0].mxu0
    %v1547 = vpop.f32.mrb[0].mxu0
    %v1548 = vadd.f32 0.0, %v1547
    %v1549 = vpop.f32.mrb[0].mxu0
    %1550 = vmatprep.mubr.bf16.mxu0 %v1333
    %1551 = vmatmul.mubr.bf16.gmra.mrb[0].mxu0 %v1332
    %v1552 = vpop.f32.mrb[0].mxu0
    %v1553 = vadd.f32 0.0, %v1552
    %v1554 = vpop.f32.mrb[0].mxu0
    %v1555 = vpop.f32.mrb[0].mxu0
    %v1556 = vadd.f32 0.0, %v1555
    %v1557 = vpop.f32.mrb[0].mxu0
    %1558 = vdwg.mxu0
    %v1559 = vadd.f32 %v1270, %v1497
    %v1560 = vadd.f32 %v1271, %v1500
    %v1561 = vadd.f32 %v1272, %v1505
    %v1562 = vadd.f32 %v1273, %v1508
    %v1563 = vadd.f32 %v1274, %v1513
    %v1564 = vadd.f32 %v1275, %v1516
    %v1565 = vadd.f32 %v1276, %v1521
    %v1566 = vadd.f32 %v1277, %v1524
    %v1567 = vadd.f32 %v1278, %v1529
    %v1568 = vadd.f32 %v1279, %v1532
    %v1569 = vadd.f32 %v1280, %v1537
    %v1570 = vadd.f32 %v1281, %v1540
    %v1571 = vadd.f32 %v1282, %v1545
    %v1572 = vadd.f32 %v1283, %v1548
    %v1573 = vadd.f32 %v1284, %v1553
    %v1574 = vadd.f32 %v1285, %v1556
    %1575 = vst [vmem:[#allocation3] sm:$0xff] %v1559
    %1576 = vst [vmem:[#allocation3 + $0x8] sm:$0xff] %v1560
    %1577 = vst [vmem:[#allocation3 + $0x10] sm:$0xff] %v1561
    %1578 = vst [vmem:[#allocation3 + $0x18] sm:$0xff] %v1562
    %1579 = vst [vmem:[#allocation3 + $0x20] sm:$0xff] %v1563
    %1580 = vst [vmem:[#allocation3 + $0x28] sm:$0xff] %v1564
    %1581 = vst [vmem:[#allocation3 + $0x30] sm:$0xff] %v1565
    %1582 = vst [vmem:[#allocation3 + $0x38] sm:$0xff] %v1566
    %1583 = vst [vmem:[#allocation3 + $0x40] sm:$0xff] %v1567
    %1584 = vst [vmem:[#allocation3 + $0x48] sm:$0xff] %v1568
    %1585 = vst [vmem:[#allocation3 + $0x50] sm:$0xff] %v1569
    %1586 = vst [vmem:[#allocation3 + $0x58] sm:$0xff] %v1570
    %1587 = vst [vmem:[#allocation3 + $0x60] sm:$0xff] %v1571
    %1588 = vst [vmem:[#allocation3 + $0x68] sm:$0xff] %v1572
    %1589 = vst [vmem:[#allocation3 + $0x70] sm:$0xff] %v1573
    %1590 = vst [vmem:[#allocation3 + $0x78] sm:$0xff] %v1574
    // Predicated region
    $region54: #{tpu_custom_call.1} parent=1 // pred_check
      %p1591 = pneg %p99
    $region55: #{tpu_custom_call.1} parent=1 // pred_check_branch
      %1593 = sbr.rel (%p1591) target = $region57
    $region56: #{tpu_custom_call.1} parent=1 // pred_region
      %v1594 = vld [vmem:[#allocation3] sm:$0xff]
      %v1595 = vld [vmem:[#allocation3 + $0x8] sm:$0xff]
      %v1596 = vld [vmem:[#allocation3 + $0x10] sm:$0xff]
      %v1597 = vld [vmem:[#allocation3 + $0x18] sm:$0xff]
      %v1598 = vld [vmem:[#allocation3 + $0x20] sm:$0xff]
      %v1599 = vld [vmem:[#allocation3 + $0x28] sm:$0xff]
      %v1600 = vld [vmem:[#allocation3 + $0x30] sm:$0xff]
      %v1601 = vld [vmem:[#allocation3 + $0x38] sm:$0xff]
      %v1602 = vld [vmem:[#allocation3 + $0x40] sm:$0xff]
      %v1603 = vld [vmem:[#allocation3 + $0x48] sm:$0xff]
      %v1604 = vld [vmem:[#allocation3 + $0x50] sm:$0xff]
      %v1605 = vld [vmem:[#allocation3 + $0x58] sm:$0xff]
      %v1606 = vld [vmem:[#allocation3 + $0x60] sm:$0xff]
      %v1607 = vld [vmem:[#allocation3 + $0x68] sm:$0xff]
      %v1608 = vld [vmem:[#allocation3 + $0x70] sm:$0xff]
      %v1609 = vld [vmem:[#allocation3 + $0x78] sm:$0xff]
      %1610 = vst [vmem:[#allocation14] sm:$0xff] %v1594
      %1611 = vst [vmem:[#allocation14 + $0x8] sm:$0xff] %v1595
      %1612 = vst [vmem:[#allocation14 + $0x10] sm:$0xff] %v1596
      %1613 = vst [vmem:[#allocation14 + $0x18] sm:$0xff] %v1597
      %1614 = vst [vmem:[#allocation14 + $0x20] sm:$0xff] %v1598
      %1615 = vst [vmem:[#allocation14 + $0x28] sm:$0xff] %v1599
      %1616 = vst [vmem:[#allocation14 + $0x30] sm:$0xff] %v1600
      %1617 = vst [vmem:[#allocation14 + $0x38] sm:$0xff] %v1601
      %1618 = vst [vmem:[#allocation14 + $0x40] sm:$0xff] %v1602
      %1619 = vst [vmem:[#allocation14 + $0x48] sm:$0xff] %v1603
      %1620 = vst [vmem:[#allocation14 + $0x50] sm:$0xff] %v1604
      %1621 = vst [vmem:[#allocation14 + $0x58] sm:$0xff] %v1605
      %1622 = vst [vmem:[#allocation14 + $0x60] sm:$0xff] %v1606
      %1623 = vst [vmem:[#allocation14 + $0x68] sm:$0xff] %v1607
      %1624 = vst [vmem:[#allocation14 + $0x70] sm:$0xff] %v1608
      %1625 = vst [vmem:[#allocation14 + $0x78] sm:$0xff] %v1609
    $region57: #{tpu_custom_call.1} parent=1 // pred_fallthru
      _
    // Predicated region
    $region58: #{tpu_custom_call.1} parent=1 // pred_check
      _
    $region59: #{tpu_custom_call.1} parent=1 // pred_check_branch
      %1627 = sbr.rel (0) target = $region61
    $region60: #{tpu_custom_call.1} parent=1 // pred_region
      %s1629 = ssub.s32 2048, 2048
      %1630 = vsyncadd [#allocation6], %s1629
      %s1631 = sshll.u32 [#allocation13], 4
      %s1632 = int_to_ptr.vmem [resolvable:$true] %s1631
      %1637 = dma.vmem_to_hbm [thread:$0]  %s1632, 2048, %s7, [#allocation6], 128, 128, 8
    $region61: #{tpu_custom_call.1} parent=1 // pred_fallthru
      _
    // Predicated region
    $region62: #{tpu_custom_call.1} parent=1 // pred_check
      _
    $region63: #{tpu_custom_call.1} parent=1 // pred_check_branch
      %1639 = sbr.rel (0) target = $region65
    $region64: #{tpu_custom_call.1} parent=1 // pred_region
      %s1641 = ssub.s32 2048, 2048
      %1642 = vsyncadd [#allocation15], %s1641
      %s1643 = sshll.u32 [#allocation14], 4
      %s1644 = int_to_ptr.vmem [resolvable:$true] %s1643
      %1649 = dma.vmem_to_hbm [thread:$0]  %s1644, 2048, %s8, [#allocation15], 128, 128, 8
    $region65: #{tpu_custom_call.1} parent=1 // pred_fallthru
      _
    // Predicated region
    $region66: #{tpu_custom_call.1} parent=1 // pred_check
      _
    $region67: #{tpu_custom_call.1} parent=1 // pred_check_branch
      %1651 = sbr.rel (0) target = $region69
    $region68: #{tpu_custom_call.1} parent=1 // pred_region
      %1652 = dma.done [#allocation6], 2048
    $region69: #{tpu_custom_call.1} parent=1 // pred_fallthru
      _
    // Predicated region
    $region70: #{tpu_custom_call.1} parent=1 // pred_check
      _
    $region71: #{tpu_custom_call.1} parent=1 // pred_check_branch
      %1654 = sbr.rel (0) target = $region73
    $region72: #{tpu_custom_call.1} parent=1 // pred_region
      %1655 = dma.done [#allocation15], 2048
    $region73: #{tpu_custom_call.1} parent=1 // pred_fallthru
      _
    %1656 = vsyncpa [#allocation5], 1
    %1657 = vsyncpa [#allocation8], 1
    %1658 = vsyncpa [#allocation11], 1
    %1659 = vsyncpa [#allocation6], 1
    %1660 = vsyncpa [#allocation15], 1

// kernel: tpu_custom_call.1
$region0: #{tpu_custom_call.1}
  #allocation0 [shape = 'u32[]', space=smem, size = 0x4, offset = 0x4, fixed_abs, tag = 'smem constant byte address 0x4 - core index']
  #allocation1 [shape = 'u32[144,128]{1,0:T(1,128)}', space=vmem, size = 0x12000, scoped, tag = 'internal scratch']
  #allocation2 [shape = 'f32[128,128]{1,0:T(8,128)}', space=vmem, size = 0x10000, scoped, tag = 'scratch operand']
  #allocation3 [shape = 'f32[128,128]{1,0:T(8,128)}', space=vmem, size = 0x10000, scoped, tag = 'scratch operand']
  %s0 = inlined_call_operand.hbm [shape: f32[128,128], index: 0, kind: input, shape index: {}]
  %s1 = inlined_call_operand.hbm [shape: bf16[128,128], index: 1, kind: input, shape index: {}]
  %s2 = inlined_call_operand.vmem [shape: f32[1,128], index: 2, kind: input, shape index: {}]
  %s3 = inlined_call_operand.hbm [shape: bf16[128,256], index: 3, kind: input, shape index: {}]
  %s4 = inlined_call_operand.vmem [shape: f32[1,256], index: 4, kind: input, shape index: {}]
  %s5 = inlined_call_operand.hbm [shape: bf16[256,128], index: 5, kind: input, shape index: {}]
  %s6 = inlined_call_operand.hbm [shape: bf16[128,128], index: 6, kind: input, shape index: {}]
  %s7 = inlined_call_operand.hbm [shape: f32[128,128], index: 7, kind: output, shape index: {0}]
  %s8 = inlined_call_operand.hbm [shape: f32[128,128], index: 8, kind: output, shape index: {1}]
  %9 = xla_tuple %s7, %s8
  %s10 = sld [smem:[#allocation0]]
  $region74: #{tpu_custom_call.1} parent=0
    _
  %s12 = ssub.s32 1, %s10
  %s13 = scalar_select 0, %s12, %s10
  $region1: #{tpu_custom_call.1} parent=0
    #allocation4 [shape = 'u8[65536]{0}', space=vmem, size = 0x10000, scoped, tag = 'input window, operand 0, single buffered']
    #allocation5 [shape = 's32[1]{0}', space=sflag, size = 0x4, scoped, tag = 'scoped memory for tpu_custom_call.1']
    #allocation6 [shape = 's32[1]{0}', space=sflag, size = 0x4, scoped, tag = 'scoped memory for tpu_custom_call.1']
    #allocation7 [shape = 'u8[32768]{0}', space=vmem, size = 0x8000, scoped, tag = 'input window, operand 1, single buffered']
    #allocation8 [shape = 's32[1]{0}', space=sflag, size = 0x4, scoped, tag = 'scoped memory for tpu_custom_call.1']
    #allocation9 [shape = 'u8[65536]{0}', space=vmem, size = 0x10000, scoped, tag = 'input window, operand 3, single buffered']
    #allocation10 [shape = 'u8[65536]{0}', space=vmem, size = 0x10000, scoped, tag = 'input window, operand 5, single buffered']
    #allocation11 [shape = 's32[1]{0}', space=sflag, size = 0x4, scoped, tag = 'scoped memory for tpu_custom_call.1']
    #allocation12 [shape = 'u8[32768]{0}', space=vmem, size = 0x8000, scoped, tag = 'input window, operand 6, single buffered']
    #allocation13 [shape = 'u8[65536]{0}', space=vmem, size = 0x10000, scoped, tag = 'output window, operand 0, single buffered']
    #allocation14 [shape = 'u8[65536]{0}', space=vmem, size = 0x10000, scoped, tag = 'output window, operand 1, single buffered']
    #allocation15 [shape = 's32[1]{0}', space=sflag, size = 0x4, scoped, tag = 'scoped memory for tpu_custom_call.1']
    %14 = vsyncpa [#allocation5], 0
    %15 = vsyncpa [#allocation8], 0
    %16 = vsyncpa [#allocation11], 0
    %17 = vsyncpa [#allocation6], 0
    %18 = vsyncpa [#allocation15], 0
    // Predicated region
    $region2: #{tpu_custom_call.1} parent=1 // pred_check
      _
    $region3: #{tpu_custom_call.1} parent=1 // pred_check_branch
      %20 = sbr.rel (0) target = $region5
    $region4: #{tpu_custom_call.1} parent=1 // pred_region
      %s22 = ssub.s32 2048, 2048
      %23 = vsyncadd [#allocation5], %s22
      %s24 = sshll.u32 [#allocation4], 4
      %s25 = int_to_ptr.vmem [resolvable:$true] %s24
      %30 = dma.hbm_to_vmem [thread:$0]  %s0, 2048, %s25, [#allocation5], 128, 128, 8
    $region5: #{tpu_custom_call.1} parent=1 // pred_fallthru
      _
    // Predicated region
    $region6: #{tpu_custom_call.1} parent=1 // pred_check
      _
    $region7: #{tpu_custom_call.1} parent=1 // pred_check_branch
      %32 = sbr.rel (0) target = $region9
    $region8: #{tpu_custom_call.1} parent=1 // pred_region
      %s34 = ssub.s32 1024, 1024
      %35 = vsyncadd [#allocation8], %s34
      %s36 = sshll.u32 [#allocation7], 4
      %s37 = int_to_ptr.vmem [resolvable:$true] %s36
      %42 = dma.hbm_to_vmem [thread:$0]  %s1, 1024, %s37, [#allocation8], 64, 64, 4
    $region9: #{tpu_custom_call.1} parent=1 // pred_fallthru
      _
    // Predicated region
    $region10: #{tpu_custom_call.1} parent=1 // pred_check
      _
    $region11: #{tpu_custom_call.1} parent=1 // pred_check_branch
      %44 = sbr.rel (0) target = $region13
    $region12: #{tpu_custom_call.1} parent=1 // pred_region
      _
    $region13: #{tpu_custom_call.1} parent=1 // pred_fallthru
      _
    // Predicated region
    $region14: #{tpu_custom_call.1} parent=1 // pred_check
      _
    $region15: #{tpu_custom_call.1} parent=1 // pred_check_branch
      %46 = sbr.rel (0) target = $region17
    $region16: #{tpu_custom_call.1} parent=1 // pred_region
      %s48 = ssub.s32 2048, 2048
      %49 = vsyncadd [#allocation8], %s48
      %s50 = sshll.u32 [#allocation9], 4
      %s51 = int_to_ptr.vmem [resolvable:$true] %s50
      %56 = dma.hbm_to_vmem [thread:$0]  %s3, 2048, %s51, [#allocation8], 128, 128, 8
    $region17: #{tpu_custom_call.1} parent=1 // pred_fallthru
      _
    // Predicated region
    $region18: #{tpu_custom_call.1} parent=1 // pred_check
      _
    $region19: #{tpu_custom_call.1} parent=1 // pred_check_branch
      %58 = sbr.rel (0) target = $region21
    $region20: #{tpu_custom_call.1} parent=1 // pred_region
      _
    $region21: #{tpu_custom_call.1} parent=1 // pred_fallthru
      _
    // Predicated region
    $region22: #{tpu_custom_call.1} parent=1 // pred_check
      _
    $region23: #{tpu_custom_call.1} parent=1 // pred_check_branch
      %60 = sbr.rel (0) target = $region25
    $region24: #{tpu_custom_call.1} parent=1 // pred_region
      %s62 = ssub.s32 2048, 2048
      %63 = vsyncadd [#allocation11], %s62
      %s64 = sshll.u32 [#allocation10], 4
      %s65 = int_to_ptr.vmem [resolvable:$true] %s64
      %70 = dma.hbm_to_vmem [thread:$0]  %s5, 2048, %s65, [#allocation11], 64, 64, 4
    $region25: #{tpu_custom_call.1} parent=1 // pred_fallthru
      _
    // Predicated region
    $region26: #{tpu_custom_call.1} parent=1 // pred_check
      _
    $region27: #{tpu_custom_call.1} parent=1 // pred_check_branch
      %72 = sbr.rel (0) target = $region29
    $region28: #{tpu_custom_call.1} parent=1 // pred_region
      %s74 = ssub.s32 1024, 1024
      %75 = vsyncadd [#allocation11], %s74
      %s76 = sshll.u32 [#allocation12], 4
      %s77 = int_to_ptr.vmem [resolvable:$true] %s76
      %82 = dma.hbm_to_vmem [thread:$0]  %s6, 1024, %s77, [#allocation11], 64, 64, 4
    $region29: #{tpu_custom_call.1} parent=1 // pred_fallthru
      _
    // Predicated region
    $region30: #{tpu_custom_call.1} parent=1 // pred_check
      _
    $region31: #{tpu_custom_call.1} parent=1 // pred_check_branch
      %84 = sbr.rel (0) target = $region33
    $region32: #{tpu_custom_call.1} parent=1 // pred_region
      %85 = dma.done [#allocation5], 2048
    $region33: #{tpu_custom_call.1} parent=1 // pred_fallthru
      _
    // Predicated region
    $region34: #{tpu_custom_call.1} parent=1 // pred_check
      _
    $region35: #{tpu_custom_call.1} parent=1 // pred_check_branch
      %87 = sbr.rel (0) target = $region37
    $region36: #{tpu_custom_call.1} parent=1 // pred_region
      %88 = dma.done [#allocation8], 1024
    $region37: #{tpu_custom_call.1} parent=1 // pred_fallthru
      _
    // Predicated region
    $region38: #{tpu_custom_call.1} parent=1 // pred_check
      _
    $region39: #{tpu_custom_call.1} parent=1 // pred_check_branch
      %90 = sbr.rel (0) target = $region41
    $region40: #{tpu_custom_call.1} parent=1 // pred_region
      %91 = dma.done [#allocation8], 2048
    $region41: #{tpu_custom_call.1} parent=1 // pred_fallthru
      _
    // Predicated region
    $region42: #{tpu_custom_call.1} parent=1 // pred_check
      _
    $region43: #{tpu_custom_call.1} parent=1 // pred_check_branch
      %93 = sbr.rel (0) target = $region45
    $region44: #{tpu_custom_call.1} parent=1 // pred_region
      %94 = dma.done [#allocation11], 2048
    $region45: #{tpu_custom_call.1} parent=1 // pred_fallthru
      _
    // Predicated region
    $region46: #{tpu_custom_call.1} parent=1 // pred_check
      _
    $region47: #{tpu_custom_call.1} parent=1 // pred_check_branch
      %96 = sbr.rel (0) target = $region49
    $region48: #{tpu_custom_call.1} parent=1 // pred_region
      %97 = dma.done [#allocation11], 1024
    $region49: #{tpu_custom_call.1} parent=1 // pred_fallthru
      _
    %p99 = scmp.eq.s32.totalorder 0, 0
    // Predicated region
    $region50: #{tpu_custom_call.1} parent=1 // pred_check
      %p100 = pneg %p99
    $region51: #{tpu_custom_call.1} parent=1 // pred_check_branch
      %102 = sbr.rel (%p100) target = $region53
    $region52: #{tpu_custom_call.1} parent=1 // pred_region
      %v103 = vld [vmem:[#allocation4] sm:$0xff]
      %v104 = vld [vmem:[#allocation4 + $0x8] sm:$0xff]
      %v105 = vld [vmem:[#allocation4 + $0x10] sm:$0xff]
      %v106 = vld [vmem:[#allocation4 + $0x18] sm:$0xff]
      %v107 = vld [vmem:[#allocation4 + $0x20] sm:$0xff]
      %v108 = vld [vmem:[#allocation4 + $0x28] sm:$0xff]
      %v109 = vld [vmem:[#allocation4 + $0x30] sm:$0xff]
      %v110 = vld [vmem:[#allocation4 + $0x38] sm:$0xff]
      %v111 = vld [vmem:[#allocation4 + $0x40] sm:$0xff]
      %v112 = vld [vmem:[#allocation4 + $0x48] sm:$0xff]
      %v113 = vld [vmem:[#allocation4 + $0x50] sm:$0xff]
      %v114 = vld [vmem:[#allocation4 + $0x58] sm:$0xff]
      %v115 = vld [vmem:[#allocation4 + $0x60] sm:$0xff]
      %v116 = vld [vmem:[#allocation4 + $0x68] sm:$0xff]
      %v117 = vld [vmem:[#allocation4 + $0x70] sm:$0xff]
      %v118 = vld [vmem:[#allocation4 + $0x78] sm:$0xff]
      %v119 = vpack.c.bf16 %v104, %v103
      %v120 = vpack.c.bf16 %v106, %v105
      %v121 = vpack.c.bf16 %v108, %v107
      %v122 = vpack.c.bf16 %v110, %v109
      %v123 = vpack.c.bf16 %v112, %v111
      %v124 = vpack.c.bf16 %v114, %v113
      %v125 = vpack.c.bf16 %v116, %v115
      %v126 = vpack.c.bf16 %v118, %v117
      %v127 = vld [vmem:[#allocation7] sm:$0xf]
      %v128 = vld [vmem:[#allocation7 + $0x4] sm:$0xf]
      %v129 = vld [vmem:[#allocation7 + $0x8] sm:$0xf]
      %v130 = vld [vmem:[#allocation7 + $0xc] sm:$0xf]
      %v131 = vld [vmem:[#allocation7 + $0x10] sm:$0xf]
      %v132 = vld [vmem:[#allocation7 + $0x14] sm:$0xf]
      %v133 = vld [vmem:[#allocation7 + $0x18] sm:$0xf]
      %v134 = vld [vmem:[#allocation7 + $0x1c] sm:$0xf]
      %v135 = vld [vmem:[#allocation7 + $0x20] sm:$0xf]
      %v136 = vld [vmem:[#allocation7 + $0x24] sm:$0xf]
      %v137 = vld [vmem:[#allocation7 + $0x28] sm:$0xf]
      %v138 = vld [vmem:[#allocation7 + $0x2c] sm:$0xf]
      %v139 = vld [vmem:[#allocation7 + $0x30] sm:$0xf]
      %v140 = vld [vmem:[#allocation7 + $0x34] sm:$0xf]
      %v141 = vld [vmem:[#allocation7 + $0x38] sm:$0xf]
      %v142 = vld [vmem:[#allocation7 + $0x3c] sm:$0xf]
      %v143 = vld [vmem:[%s2] sm:$0x1]
      %v145 = vlaneseq
      %v146 = vshrl.u32 %v145, 7
      %v147 = vsub.s32 0, %v146
      %v148 = vrot.slane %v143, %v147
      %v166 = vunpack.c.l.b16 %v127
      %v167 = vunpack.c.l.b16 %v128
      %v168 = vunpack.c.l.b16 %v129
      %v169 = vunpack.c.l.b16 %v130
      %v170 = vunpack.c.l.b16 %v131
      %v171 = vunpack.c.l.b16 %v132
      %v172 = vunpack.c.l.b16 %v133
      %v173 = vunpack.c.l.b16 %v134
      %v174 = vunpack.c.l.b16 %v135
      %v175 = vunpack.c.l.b16 %v136
      %v176 = vunpack.c.l.b16 %v137
      %v177 = vunpack.c.l.b16 %v138
      %v178 = vunpack.c.l.b16 %v139
      %v179 = vunpack.c.l.b16 %v140
      %v180 = vunpack.c.l.b16 %v141
      %v181 = vunpack.c.l.b16 %v142
      %v182 = vpack.c.b16 %v167, %v166
      %v183 = vpack.c.b16 %v169, %v168
      %v184 = vpack.c.b16 %v171, %v170
      %v185 = vpack.c.b16 %v173, %v172
      %v186 = vpack.c.b16 %v175, %v174
      %v187 = vpack.c.b16 %v177, %v176
      %v188 = vpack.c.b16 %v179, %v178
      %v189 = vpack.c.b16 %v181, %v180
      %198 = vmatprep.subr.bf16.mxu0 0
      %199 = vmatpush1.bf16.msra.mxu0 %v182
      %200 = vmatprep.subr.bf16.mxu0 0
      %201 = vmatpush1.bf16.msra.mxu0 %v183
      %202 = vmatprep.subr.bf16.mxu0 0
      %203 = vmatpush1.bf16.msra.mxu0 %v184
      %204 = vmatprep.subr.bf16.mxu0 0
      %205 = vmatpush1.bf16.msra.mxu0 %v185
      %206 = vmatprep.subr.bf16.mxu0 0
      %207 = vmatpush1.bf16.msra.mxu0 %v186
      %208 = vmatprep.subr.bf16.mxu0 0
      %209 = vmatpush1.bf16.msra.mxu0 %v187
      %210 = vmatprep.subr.bf16.mxu0 0
      %211 = vmatpush1.bf16.msra.mxu0 %v188
      %212 = vmatprep.subr.bf16.mxu0 0
      %213 = vmatpush1.bf16.msra.mxu0 %v189
      %214 = vmatprep.subr.bf16.mxu0 0
      %215 = vmatpush1.bf16.msra.mxu0 0
      %216 = vmatprep.subr.bf16.mxu0 0
      %217 = vmatpush1.bf16.msra.mxu0 0
      %218 = vmatprep.subr.bf16.mxu0 0
      %219 = vmatpush1.bf16.msra.mxu0 0
      %220 = vmatprep.subr.bf16.mxu0 0
      %221 = vmatpush1.bf16.msra.mxu0 0
      %222 = vmatprep.subr.bf16.mxu0 0
      %223 = vmatpush1.bf16.msra.mxu0 0
      %224 = vmatprep.subr.bf16.mxu0 0
      %225 = vmatpush1.bf16.msra.mxu0 0
      %226 = vmatprep.subr.bf16.mxu0 0
      %227 = vmatpush1.bf16.msra.mxu0 0
      %228 = vmatprep.subr.bf16.mxu0 0
      %229 = vmatpush1.bf16.msra.mxu0 0
      %230 = vmatprep.mubr.bf16.mxu0 0
      %231 = vmatmul.mubr.bf16.gmra.mrb[0].mxu0 %v119
      %v232 = vpop.f32.mrb[0].mxu0
      %v233 = vadd.f32 %v148, %v232
      %v234 = vpop.f32.mrb[0].mxu0
      %v235 = vpop.f32.mrb[0].mxu0
      %v236 = vadd.f32 %v148, %v235
      %v237 = vpop.f32.mrb[0].mxu0
      %238 = vmatprep.mubr.bf16.mxu0 0
      %239 = vmatmul.mubr.bf16.gmra.mrb[0].mxu0 %v120
      %v240 = vpop.f32.mrb[0].mxu0
      %v241 = vadd.f32 %v148, %v240
      %v242 = vpop.f32.mrb[0].mxu0
      %v243 = vpop.f32.mrb[0].mxu0
      %v244 = vadd.f32 %v148, %v243
      %v245 = vpop.f32.mrb[0].mxu0
      %246 = vmatprep.mubr.bf16.mxu0 0
      %247 = vmatmul.mubr.bf16.gmra.mrb[0].mxu0 %v121
      %v248 = vpop.f32.mrb[0].mxu0
      %v249 = vadd.f32 %v148, %v248
      %v250 = vpop.f32.mrb[0].mxu0
      %v251 = vpop.f32.mrb[0].mxu0
      %v252 = vadd.f32 %v148, %v251
      %v253 = vpop.f32.mrb[0].mxu0
      %254 = vmatprep.mubr.bf16.mxu0 0
      %255 = vmatmul.mubr.bf16.gmra.mrb[0].mxu0 %v122
      %v256 = vpop.f32.mrb[0].mxu0
      %v257 = vadd.f32 %v148, %v256
      %v258 = vpop.f32.mrb[0].mxu0
      %v259 = vpop.f32.mrb[0].mxu0
      %v260 = vadd.f32 %v148, %v259
      %v261 = vpop.f32.mrb[0].mxu0
      %262 = vmatprep.mubr.bf16.mxu0 0
      %263 = vmatmul.mubr.bf16.gmra.mrb[0].mxu0 %v123
      %v264 = vpop.f32.mrb[0].mxu0
      %v265 = vadd.f32 %v148, %v264
      %v266 = vpop.f32.mrb[0].mxu0
      %v267 = vpop.f32.mrb[0].mxu0
      %v268 = vadd.f32 %v148, %v267
      %v269 = vpop.f32.mrb[0].mxu0
      %270 = vmatprep.mubr.bf16.mxu0 0
      %271 = vmatmul.mubr.bf16.gmra.mrb[0].mxu0 %v124
      %v272 = vpop.f32.mrb[0].mxu0
      %v273 = vadd.f32 %v148, %v272
      %v274 = vpop.f32.mrb[0].mxu0
      %v275 = vpop.f32.mrb[0].mxu0
      %v276 = vadd.f32 %v148, %v275
      %v277 = vpop.f32.mrb[0].mxu0
      %278 = vmatprep.mubr.bf16.mxu0 0
      %279 = vmatmul.mubr.bf16.gmra.mrb[0].mxu0 %v125
      %v280 = vpop.f32.mrb[0].mxu0
      %v281 = vadd.f32 %v148, %v280
      %v282 = vpop.f32.mrb[0].mxu0
      %v283 = vpop.f32.mrb[0].mxu0
      %v284 = vadd.f32 %v148, %v283
      %v285 = vpop.f32.mrb[0].mxu0
      %286 = vmatprep.mubr.bf16.mxu0 0
      %287 = vmatmul.mubr.bf16.gmra.mrb[0].mxu0 %v126
      %v288 = vpop.f32.mrb[0].mxu0
      %v289 = vadd.f32 %v148, %v288
      %v290 = vpop.f32.mrb[0].mxu0
      %v291 = vpop.f32.mrb[0].mxu0
      %v292 = vadd.f32 %v148, %v291
      %v293 = vpop.f32.mrb[0].mxu0
      %294 = vdwg.mxu0
      %295 = vst [vmem:[#allocation13] sm:$0xff] %v233
      %296 = vst [vmem:[#allocation13 + $0x8] sm:$0xff] %v236
      %297 = vst [vmem:[#allocation13 + $0x10] sm:$0xff] %v241
      %298 = vst [vmem:[#allocation13 + $0x18] sm:$0xff] %v244
      %299 = vst [vmem:[#allocation13 + $0x20] sm:$0xff] %v249
      %300 = vst [vmem:[#allocation13 + $0x28] sm:$0xff] %v252
      %301 = vst [vmem:[#allocation13 + $0x30] sm:$0xff] %v257
      %302 = vst [vmem:[#allocation13 + $0x38] sm:$0xff] %v260
      %303 = vst [vmem:[#allocation13 + $0x40] sm:$0xff] %v265
      %304 = vst [vmem:[#allocation13 + $0x48] sm:$0xff] %v268
      %305 = vst [vmem:[#allocation13 + $0x50] sm:$0xff] %v273
      %306 = vst [vmem:[#allocation13 + $0x58] sm:$0xff] %v276
      %307 = vst [vmem:[#allocation13 + $0x60] sm:$0xff] %v281
      %308 = vst [vmem:[#allocation13 + $0x68] sm:$0xff] %v284
      %309 = vst [vmem:[#allocation13 + $0x70] sm:$0xff] %v289
      %310 = vst [vmem:[#allocation13 + $0x78] sm:$0xff] %v292
      %311 = vmax.xlane.f32.xlu0 %v233
      %v312 = vpop.xlane.xlu0 %311
      %313 = vmax.xlane.f32.xlu0 %v236
      %v314 = vpop.xlane.xlu0 %313
      %315 = vmax.xlane.f32.xlu0 %v241
      %v316 = vpop.xlane.xlu0 %315
      %317 = vmax.xlane.f32.xlu0 %v244
      %v318 = vpop.xlane.xlu0 %317
      %319 = vmax.xlane.f32.xlu0 %v249
      %v320 = vpop.xlane.xlu0 %319
      %321 = vmax.xlane.f32.xlu0 %v252
      %v322 = vpop.xlane.xlu0 %321
      %323 = vmax.xlane.f32.xlu0 %v257
      %v324 = vpop.xlane.xlu0 %323
      %325 = vmax.xlane.f32.xlu0 %v260
      %v326 = vpop.xlane.xlu0 %325
      %327 = vmax.xlane.f32.xlu0 %v265
      %v328 = vpop.xlane.xlu0 %327
      %329 = vmax.xlane.f32.xlu0 %v268
      %v330 = vpop.xlane.xlu0 %329
      %331 = vmax.xlane.f32.xlu0 %v273
      %v332 = vpop.xlane.xlu0 %331
      %333 = vmax.xlane.f32.xlu0 %v276
      %v334 = vpop.xlane.xlu0 %333
      %335 = vmax.xlane.f32.xlu0 %v281
      %v336 = vpop.xlane.xlu0 %335
      %337 = vmax.xlane.f32.xlu0 %v284
      %v338 = vpop.xlane.xlu0 %337
      %339 = vmax.xlane.f32.xlu0 %v289
      %v340 = vpop.xlane.xlu0 %339
      %341 = vmax.xlane.f32.xlu0 %v292
      %v342 = vpop.xlane.xlu0 %341
      %v343 = vsub.f32 %v233, %v312
      %v344 = vsub.f32 %v236, %v314
      %v345 = vsub.f32 %v241, %v316
      %v346 = vsub.f32 %v244, %v318
      %v347 = vsub.f32 %v249, %v320
      %v348 = vsub.f32 %v252, %v322
      %v349 = vsub.f32 %v257, %v324
      %v350 = vsub.f32 %v260, %v326
      %v351 = vsub.f32 %v265, %v328
      %v352 = vsub.f32 %v268, %v330
      %v353 = vsub.f32 %v273, %v332
      %v354 = vsub.f32 %v276, %v334
      %v355 = vsub.f32 %v281, %v336
      %v356 = vsub.f32 %v284, %v338
      %v357 = vsub.f32 %v289, %v340
      %v358 = vsub.f32 %v292, %v342
      %v359 = vmul.f32 %v343, 1.442695
      %v360 = vpow.pop %v359
      %v361 = vmul.f32 %v344, 1.442695
      %v362 = vpow.pop %v361
      %v363 = vmul.f32 %v345, 1.442695
      %v364 = vpow.pop %v363
      %v365 = vmul.f32 %v346, 1.442695
      %v366 = vpow.pop %v365
      %v367 = vmul.f32 %v347, 1.442695
      %v368 = vpow.pop %v367
      %v369 = vmul.f32 %v348, 1.442695
      %v370 = vpow.pop %v369
      %v371 = vmul.f32 %v349, 1.442695
      %v372 = vpow.pop %v371
      %v373 = vmul.f32 %v350, 1.442695
      %v374 = vpow.pop %v373
      %v375 = vmul.f32 %v351, 1.442695
      %v376 = vpow.pop %v375
      %v377 = vmul.f32 %v352, 1.442695
      %v378 = vpow.pop %v377
      %v379 = vmul.f32 %v353, 1.442695
      %v380 = vpow.pop %v379
      %v381 = vmul.f32 %v354, 1.442695
      %v382 = vpow.pop %v381
      %v383 = vmul.f32 %v355, 1.442695
      %v384 = vpow.pop %v383
      %v385 = vmul.f32 %v356, 1.442695
      %v386 = vpow.pop %v385
      %v387 = vmul.f32 %v357, 1.442695
      %v388 = vpow.pop %v387
      %v389 = vmul.f32 %v358, 1.442695
      %v390 = vpow.pop %v389
      %391 = vadd.xlane.f32.xlu0 %v360
      %v392 = vpop.xlane.xlu0 %391
      %393 = vadd.xlane.f32.xlu0 %v362
      %v394 = vpop.xlane.xlu0 %393
      %395 = vadd.xlane.f32.xlu0 %v364
      %v396 = vpop.xlane.xlu0 %395
      %397 = vadd.xlane.f32.xlu0 %v366
      %v398 = vpop.xlane.xlu0 %397
      %399 = vadd.xlane.f32.xlu0 %v368
      %v400 = vpop.xlane.xlu0 %399
      %401 = vadd.xlane.f32.xlu0 %v370
      %v402 = vpop.xlane.xlu0 %401
      %403 = vadd.xlane.f32.xlu0 %v372
      %v404 = vpop.xlane.xlu0 %403
      %405 = vadd.xlane.f32.xlu0 %v374
      %v406 = vpop.xlane.xlu0 %405
      %407 = vadd.xlane.f32.xlu0 %v376
      %v408 = vpop.xlane.xlu0 %407
      %409 = vadd.xlane.f32.xlu0 %v378
      %v410 = vpop.xlane.xlu0 %409
      %411 = vadd.xlane.f32.xlu0 %v380
      %v412 = vpop.xlane.xlu0 %411
      %413 = vadd.xlane.f32.xlu0 %v382
      %v414 = vpop.xlane.xlu0 %413
      %415 = vadd.xlane.f32.xlu0 %v384
      %v416 = vpop.xlane.xlu0 %415
      %417 = vadd.xlane.f32.xlu0 %v386
      %v418 = vpop.xlane.xlu0 %417
      %419 = vadd.xlane.f32.xlu0 %v388
      %v420 = vpop.xlane.xlu0 %419
      %421 = vadd.xlane.f32.xlu0 %v390
      %v422 = vpop.xlane.xlu0 %421
      %v423 = vrcp.pop %v392
      %v424 = vrcp.pop %v394
      %v425 = vrcp.pop %v396
      %v426 = vrcp.pop %v398
      %v427 = vrcp.pop %v400
      %v428 = vrcp.pop %v402
      %v429 = vrcp.pop %v404
      %v430 = vrcp.pop %v406
      %v431 = vrcp.pop %v408
      %v432 = vrcp.pop %v410
      %v433 = vrcp.pop %v412
      %v434 = vrcp.pop %v414
      %v435 = vrcp.pop %v416
      %v436 = vrcp.pop %v418
      %v437 = vrcp.pop %v420
      %v438 = vrcp.pop %v422
      %v439 = vmul.f32 %v360, %v423
      %v440 = vmul.f32 %v362, %v424
      %v441 = vmul.f32 %v364, %v425
      %v442 = vmul.f32 %v366, %v426
      %v443 = vmul.f32 %v368, %v427
      %v444 = vmul.f32 %v370, %v428
      %v445 = vmul.f32 %v372, %v429
      %v446 = vmul.f32 %v374, %v430
      %v447 = vmul.f32 %v376, %v431
      %v448 = vmul.f32 %v378, %v432
      %v449 = vmul.f32 %v380, %v433
      %v450 = vmul.f32 %v382, %v434
      %v451 = vmul.f32 %v384, %v435
      %v452 = vmul.f32 %v386, %v436
      %v453 = vmul.f32 %v388, %v437
      %v454 = vmul.f32 %v390, %v438
      %455 = vst [vmem:[#allocation2] sm:$0xff] %v439
      %456 = vst [vmem:[#allocation2 + $0x8] sm:$0xff] %v440
      %457 = vst [vmem:[#allocation2 + $0x10] sm:$0xff] %v441
      %458 = vst [vmem:[#allocation2 + $0x18] sm:$0xff] %v442
      %459 = vst [vmem:[#allocation2 + $0x20] sm:$0xff] %v443
      %460 = vst [vmem:[#allocation2 + $0x28] sm:$0xff] %v444
      %461 = vst [vmem:[#allocation2 + $0x30] sm:$0xff] %v445
      %462 = vst [vmem:[#allocation2 + $0x38] sm:$0xff] %v446
      %463 = vst [vmem:[#allocation2 + $0x40] sm:$0xff] %v447
      %464 = vst [vmem:[#allocation2 + $0x48] sm:$0xff] %v448
      %465 = vst [vmem:[#allocation2 + $0x50] sm:$0xff] %v449
      %466 = vst [vmem:[#allocation2 + $0x58] sm:$0xff] %v450
      %467 = vst [vmem:[#allocation2 + $0x60] sm:$0xff] %v451
      %468 = vst [vmem:[#allocation2 + $0x68] sm:$0xff] %v452
      %469 = vst [vmem:[#allocation2 + $0x70] sm:$0xff] %v453
      %470 = vst [vmem:[#allocation2 + $0x78] sm:$0xff] %v454
      %v471 = vpack.c.bf16 %v440, %v439
      %v472 = vpack.c.bf16 %v442, %v441
      %v473 = vpack.c.bf16 %v444, %v443
      %v474 = vpack.c.bf16 %v446, %v445
      %v475 = vpack.c.bf16 %v448, %v447
      %v476 = vpack.c.bf16 %v450, %v449
      %v477 = vpack.c.bf16 %v452, %v451
      %v478 = vpack.c.bf16 %v454, %v453
      %v479 = vld [vmem:[#allocation12] sm:$0xf]
      %v480 = vld [vmem:[#allocation12 + $0x4] sm:$0xf]
      %v481 = vld [vmem:[#allocation12 + $0x8] sm:$0xf]
      %v482 = vld [vmem:[#allocation12 + $0xc] sm:$0xf]
      %v483 = vld [vmem:[#allocation12 + $0x10] sm:$0xf]
      %v484 = vld [vmem:[#allocation12 + $0x14] sm:$0xf]
      %v485 = vld [vmem:[#allocation12 + $0x18] sm:$0xf]
      %v486 = vld [vmem:[#allocation12 + $0x1c] sm:$0xf]
      %v487 = vld [vmem:[#allocation12 + $0x20] sm:$0xf]
      %v488 = vld [vmem:[#allocation12 + $0x24] sm:$0xf]
      %v489 = vld [vmem:[#allocation12 + $0x28] sm:$0xf]
      %v490 = vld [vmem:[#allocation12 + $0x2c] sm:$0xf]
      %v491 = vld [vmem:[#allocation12 + $0x30] sm:$0xf]
      %v492 = vld [vmem:[#allocation12 + $0x34] sm:$0xf]
      %v493 = vld [vmem:[#allocation12 + $0x38] sm:$0xf]
      %v494 = vld [vmem:[#allocation12 + $0x3c] sm:$0xf]
      %v511 = vunpack.c.l.b16 %v479
      %v512 = vunpack.c.l.b16 %v480
      %v513 = vunpack.c.l.b16 %v481
      %v514 = vunpack.c.l.b16 %v482
      %v515 = vunpack.c.l.b16 %v483
      %v516 = vunpack.c.l.b16 %v484
      %v517 = vunpack.c.l.b16 %v485
      %v518 = vunpack.c.l.b16 %v486
      %v519 = vunpack.c.l.b16 %v487
      %v520 = vunpack.c.l.b16 %v488
      %v521 = vunpack.c.l.b16 %v489
      %v522 = vunpack.c.l.b16 %v490
      %v523 = vunpack.c.l.b16 %v491
      %v524 = vunpack.c.l.b16 %v492
      %v525 = vunpack.c.l.b16 %v493
      %v526 = vunpack.c.l.b16 %v494
      %v527 = vpack.c.b16 %v512, %v511
      %v528 = vpack.c.b16 %v514, %v513
      %v529 = vpack.c.b16 %v516, %v515
      %v530 = vpack.c.b16 %v518, %v517
      %v531 = vpack.c.b16 %v520, %v519
      %v532 = vpack.c.b16 %v522, %v521
      %v533 = vpack.c.b16 %v524, %v523
      %v534 = vpack.c.b16 %v526, %v525
      %543 = vmatprep.subr.bf16.mxu0 0
      %544 = vmatpush1.bf16.msra.mxu0 %v527
      %545 = vmatprep.subr.bf16.mxu0 0
      %546 = vmatpush1.bf16.msra.mxu0 %v528
      %547 = vmatprep.subr.bf16.mxu0 0
      %548 = vmatpush1.bf16.msra.mxu0 %v529
      %549 = vmatprep.subr.bf16.mxu0 0
      %550 = vmatpush1.bf16.msra.mxu0 %v530
      %551 = vmatprep.subr.bf16.mxu0 0
      %552 = vmatpush1.bf16.msra.mxu0 %v531
      %553 = vmatprep.subr.bf16.mxu0 0
      %554 = vmatpush1.bf16.msra.mxu0 %v532
      %555 = vmatprep.subr.bf16.mxu0 0
      %556 = vmatpush1.bf16.msra.mxu0 %v533
      %557 = vmatprep.subr.bf16.mxu0 0
      %558 = vmatpush1.bf16.msra.mxu0 %v534
      %559 = vmatprep.subr.bf16.mxu0 0
      %560 = vmatpush1.bf16.msra.mxu0 0
      %561 = vmatprep.subr.bf16.mxu0 0
      %562 = vmatpush1.bf16.msra.mxu0 0
      %563 = vmatprep.subr.bf16.mxu0 0
      %564 = vmatpush1.bf16.msra.mxu0 0
      %565 = vmatprep.subr.bf16.mxu0 0
      %566 = vmatpush1.bf16.msra.mxu0 0
      %567 = vmatprep.subr.bf16.mxu0 0
      %568 = vmatpush1.bf16.msra.mxu0 0
      %569 = vmatprep.subr.bf16.mxu0 0
      %570 = vmatpush1.bf16.msra.mxu0 0
      %571 = vmatprep.subr.bf16.mxu0 0
      %572 = vmatpush1.bf16.msra.mxu0 0
      %573 = vmatprep.subr.bf16.mxu0 0
      %574 = vmatpush1.bf16.msra.mxu0 0
      %575 = vmatprep.mubr.bf16.mxu0 0
      %576 = vmatmul.mubr.bf16.gmra.mrb[0].mxu0 %v471
      %v577 = vpop.f32.mrb[0].mxu0
      %v578 = vadd.f32 0.0, %v577
      %v579 = vpop.f32.mrb[0].mxu0
      %v580 = vpop.f32.mrb[0].mxu0
      %v581 = vadd.f32 0.0, %v580
      %v582 = vpop.f32.mrb[0].mxu0
      %583 = vmatprep.mubr.bf16.mxu0 0
      %584 = vmatmul.mubr.bf16.gmra.mrb[0].mxu0 %v472
      %v585 = vpop.f32.mrb[0].mxu0
      %v586 = vadd.f32 0.0, %v585
      %v587 = vpop.f32.mrb[0].mxu0
      %v588 = vpop.f32.mrb[0].mxu0
      %v589 = vadd.f32 0.0, %v588
      %v590 = vpop.f32.mrb[0].mxu0
      %591 = vmatprep.mubr.bf16.mxu0 0
      %592 = vmatmul.mubr.bf16.gmra.mrb[0].mxu0 %v473
      %v593 = vpop.f32.mrb[0].mxu0
      %v594 = vadd.f32 0.0, %v593
      %v595 = vpop.f32.mrb[0].mxu0
      %v596 = vpop.f32.mrb[0].mxu0
      %v597 = vadd.f32 0.0, %v596
      %v598 = vpop.f32.mrb[0].mxu0
      %599 = vmatprep.mubr.bf16.mxu0 0
      %600 = vmatmul.mubr.bf16.gmra.mrb[0].mxu0 %v474
      %v601 = vpop.f32.mrb[0].mxu0
      %v602 = vadd.f32 0.0, %v601
      %v603 = vpop.f32.mrb[0].mxu0
      %v604 = vpop.f32.mrb[0].mxu0
      %v605 = vadd.f32 0.0, %v604
      %v606 = vpop.f32.mrb[0].mxu0
      %607 = vmatprep.mubr.bf16.mxu0 0
      %608 = vmatmul.mubr.bf16.gmra.mrb[0].mxu0 %v475
      %v609 = vpop.f32.mrb[0].mxu0
      %v610 = vadd.f32 0.0, %v609
      %v611 = vpop.f32.mrb[0].mxu0
      %v612 = vpop.f32.mrb[0].mxu0
      %v613 = vadd.f32 0.0, %v612
      %v614 = vpop.f32.mrb[0].mxu0
      %615 = vmatprep.mubr.bf16.mxu0 0
      %616 = vmatmul.mubr.bf16.gmra.mrb[0].mxu0 %v476
      %v617 = vpop.f32.mrb[0].mxu0
      %v618 = vadd.f32 0.0, %v617
      %v619 = vpop.f32.mrb[0].mxu0
      %v620 = vpop.f32.mrb[0].mxu0
      %v621 = vadd.f32 0.0, %v620
      %v622 = vpop.f32.mrb[0].mxu0
      %623 = vmatprep.mubr.bf16.mxu0 0
      %624 = vmatmul.mubr.bf16.gmra.mrb[0].mxu0 %v477
      %v625 = vpop.f32.mrb[0].mxu0
      %v626 = vadd.f32 0.0, %v625
      %v627 = vpop.f32.mrb[0].mxu0
      %v628 = vpop.f32.mrb[0].mxu0
      %v629 = vadd.f32 0.0, %v628
      %v630 = vpop.f32.mrb[0].mxu0
      %631 = vmatprep.mubr.bf16.mxu0 0
      %632 = vmatmul.mubr.bf16.gmra.mrb[0].mxu0 %v478
      %v633 = vpop.f32.mrb[0].mxu0
      %v634 = vadd.f32 0.0, %v633
      %v635 = vpop.f32.mrb[0].mxu0
      %v636 = vpop.f32.mrb[0].mxu0
      %v637 = vadd.f32 0.0, %v636
      %v638 = vpop.f32.mrb[0].mxu0
      %639 = vdwg.mxu0
      %640 = vst [vmem:[#allocation3] sm:$0xff] %v578
      %641 = vst [vmem:[#allocation3 + $0x8] sm:$0xff] %v581
      %642 = vst [vmem:[#allocation3 + $0x10] sm:$0xff] %v586
      %643 = vst [vmem:[#allocation3 + $0x18] sm:$0xff] %v589
      %644 = vst [vmem:[#allocation3 + $0x20] sm:$0xff] %v594
      %645 = vst [vmem:[#allocation3 + $0x28] sm:$0xff] %v597
      %646 = vst [vmem:[#allocation3 + $0x30] sm:$0xff] %v602
      %647 = vst [vmem:[#allocation3 + $0x38] sm:$0xff] %v605
      %648 = vst [vmem:[#allocation3 + $0x40] sm:$0xff] %v610
      %649 = vst [vmem:[#allocation3 + $0x48] sm:$0xff] %v613
      %650 = vst [vmem:[#allocation3 + $0x50] sm:$0xff] %v618
      %651 = vst [vmem:[#allocation3 + $0x58] sm:$0xff] %v621
      %652 = vst [vmem:[#allocation3 + $0x60] sm:$0xff] %v626
      %653 = vst [vmem:[#allocation3 + $0x68] sm:$0xff] %v629
      %654 = vst [vmem:[#allocation3 + $0x70] sm:$0xff] %v634
      %655 = vst [vmem:[#allocation3 + $0x78] sm:$0xff] %v637
    $region53: #{tpu_custom_call.1} parent=1 // pred_fallthru
      _
    %v656 = vld [vmem:[#allocation4] sm:$0xff]
    %v657 = vld [vmem:[#allocation4 + $0x8] sm:$0xff]
    %v658 = vld [vmem:[#allocation4 + $0x10] sm:$0xff]
    %v659 = vld [vmem:[#allocation4 + $0x18] sm:$0xff]
    %v660 = vld [vmem:[#allocation4 + $0x20] sm:$0xff]
    %v661 = vld [vmem:[#allocation4 + $0x28] sm:$0xff]
    %v662 = vld [vmem:[#allocation4 + $0x30] sm:$0xff]
    %v663 = vld [vmem:[#allocation4 + $0x38] sm:$0xff]
    %v664 = vld [vmem:[#allocation4 + $0x40] sm:$0xff]
    %v665 = vld [vmem:[#allocation4 + $0x48] sm:$0xff]
    %v666 = vld [vmem:[#allocation4 + $0x50] sm:$0xff]
    %v667 = vld [vmem:[#allocation4 + $0x58] sm:$0xff]
    %v668 = vld [vmem:[#allocation4 + $0x60] sm:$0xff]
    %v669 = vld [vmem:[#allocation4 + $0x68] sm:$0xff]
    %v670 = vld [vmem:[#allocation4 + $0x70] sm:$0xff]
    %v671 = vld [vmem:[#allocation4 + $0x78] sm:$0xff]
    %v672 = vpack.c.bf16 %v657, %v656
    %v673 = vpack.c.bf16 %v659, %v658
    %v674 = vpack.c.bf16 %v661, %v660
    %v675 = vpack.c.bf16 %v663, %v662
    %v676 = vpack.c.bf16 %v665, %v664
    %v677 = vpack.c.bf16 %v667, %v666
    %v678 = vpack.c.bf16 %v669, %v668
    %v679 = vpack.c.bf16 %v671, %v670
    %v680 = vld [vmem:[#allocation9] sm:$0xff]
    %v681 = vld [vmem:[#allocation9 + $0x8] sm:$0xff]
    %v682 = vld [vmem:[#allocation9 + $0x10] sm:$0xff]
    %v683 = vld [vmem:[#allocation9 + $0x18] sm:$0xff]
    %v684 = vld [vmem:[#allocation9 + $0x20] sm:$0xff]
    %v685 = vld [vmem:[#allocation9 + $0x28] sm:$0xff]
    %v686 = vld [vmem:[#allocation9 + $0x30] sm:$0xff]
    %v687 = vld [vmem:[#allocation9 + $0x38] sm:$0xff]
    %v688 = vld [vmem:[#allocation9 + $0x40] sm:$0xff]
    %v689 = vld [vmem:[#allocation9 + $0x48] sm:$0xff]
    %v690 = vld [vmem:[#allocation9 + $0x50] sm:$0xff]
    %v691 = vld [vmem:[#allocation9 + $0x58] sm:$0xff]
    %v692 = vld [vmem:[#allocation9 + $0x60] sm:$0xff]
    %v693 = vld [vmem:[#allocation9 + $0x68] sm:$0xff]
    %v694 = vld [vmem:[#allocation9 + $0x70] sm:$0xff]
    %v695 = vld [vmem:[#allocation9 + $0x78] sm:$0xff]
    %v696 = vld [vmem:[%s4] sm:$0x3]
    %v698 = vlaneseq
    %v699 = vshrl.u32 %v698, 7
    %v700 = vsub.s32 0, %v699
    %v701 = vrot.slane %v696, %v700
    %v702 = vlaneseq
    %v703 = vshrl.u32 %v702, 7
    %v704 = vsub.s32 1, %v703
    %v705 = vrot.slane %v696, %v704
    %v724 = vunpack.c.l.b16 %v680
    %v725 = vunpack.c.h.b16 %v680
    %v726 = vunpack.c.l.b16 %v681
    %v727 = vunpack.c.h.b16 %v681
    %v728 = vunpack.c.l.b16 %v682
    %v729 = vunpack.c.h.b16 %v682
    %v730 = vunpack.c.l.b16 %v683
    %v731 = vunpack.c.h.b16 %v683
    %v732 = vunpack.c.l.b16 %v684
    %v733 = vunpack.c.h.b16 %v684
    %v734 = vunpack.c.l.b16 %v685
    %v735 = vunpack.c.h.b16 %v685
    %v736 = vunpack.c.l.b16 %v686
    %v737 = vunpack.c.h.b16 %v686
    %v738 = vunpack.c.l.b16 %v687
    %v739 = vunpack.c.h.b16 %v687
    %v740 = vunpack.c.l.b16 %v688
    %v741 = vunpack.c.h.b16 %v688
    %v742 = vunpack.c.l.b16 %v689
    %v743 = vunpack.c.h.b16 %v689
    %v744 = vunpack.c.l.b16 %v690
    %v745 = vunpack.c.h.b16 %v690
    %v746 = vunpack.c.l.b16 %v691
    %v747 = vunpack.c.h.b16 %v691
    %v748 = vunpack.c.l.b16 %v692
    %v749 = vunpack.c.h.b16 %v692
    %v750 = vunpack.c.l.b16 %v693
    %v751 = vunpack.c.h.b16 %v693
    %v752 = vunpack.c.l.b16 %v694
    %v753 = vunpack.c.h.b16 %v694
    %v754 = vunpack.c.l.b16 %v695
    %v755 = vunpack.c.h.b16 %v695
    %v756 = vpack.c.b16 %v726, %v724
    %v757 = vpack.c.b16 %v727, %v725
    %v758 = vpack.c.b16 %v730, %v728
    %v759 = vpack.c.b16 %v731, %v729
    %v760 = vpack.c.b16 %v734, %v732
    %v761 = vpack.c.b16 %v735, %v733
    %v762 = vpack.c.b16 %v738, %v736
    %v763 = vpack.c.b16 %v739, %v737
    %v764 = vpack.c.b16 %v742, %v740
    %v765 = vpack.c.b16 %v743, %v741
    %v766 = vpack.c.b16 %v746, %v744
    %v767 = vpack.c.b16 %v747, %v745
    %v768 = vpack.c.b16 %v750, %v748
    %v769 = vpack.c.b16 %v751, %v749
    %v770 = vpack.c.b16 %v754, %v752
    %v771 = vpack.c.b16 %v755, %v753
    %788 = vmatprep.subr.bf16.mxu0 %v757
    %789 = vmatpush1.bf16.msra.mxu0 %v756
    %790 = vmatprep.subr.bf16.mxu0 %v759
    %791 = vmatpush1.bf16.msra.mxu0 %v758
    %792 = vmatprep.subr.bf16.mxu0 %v761
    %793 = vmatpush1.bf16.msra.mxu0 %v760
    %794 = vmatprep.subr.bf16.mxu0 %v763
    %795 = vmatpush1.bf16.msra.mxu0 %v762
    %796 = vmatprep.subr.bf16.mxu0 %v765
    %797 = vmatpush1.bf16.msra.mxu0 %v764
    %798 = vmatprep.subr.bf16.mxu0 %v767
    %799 = vmatpush1.bf16.msra.mxu0 %v766
    %800 = vmatprep.subr.bf16.mxu0 %v769
    %801 = vmatpush1.bf16.msra.mxu0 %v768
    %802 = vmatprep.subr.bf16.mxu0 %v771
    %803 = vmatpush1.bf16.msra.mxu0 %v770
    %804 = vmatprep.subr.bf16.mxu0 0
    %805 = vmatpush1.bf16.msra.mxu0 0
    %806 = vmatprep.subr.bf16.mxu0 0
    %807 = vmatpush1.bf16.msra.mxu0 0
    %808 = vmatprep.subr.bf16.mxu0 0
    %809 = vmatpush1.bf16.msra.mxu0 0
    %810 = vmatprep.subr.bf16.mxu0 0
    %811 = vmatpush1.bf16.msra.mxu0 0
    %812 = vmatprep.subr.bf16.mxu0 0
    %813 = vmatpush1.bf16.msra.mxu0 0
    %814 = vmatprep.subr.bf16.mxu0 0
    %815 = vmatpush1.bf16.msra.mxu0 0
    %816 = vmatprep.subr.bf16.mxu0 0
    %817 = vmatpush1.bf16.msra.mxu0 0
    %818 = vmatprep.subr.bf16.mxu0 0
    %819 = vmatpush1.bf16.msra.mxu0 0
    %820 = vmatprep.mubr.bf16.mxu0 0
    %821 = vmatmul.mubr.bf16.gmra.mrb[0].mxu0 %v672
    %v822 = vpop.f32.mrb[0].mxu0
    %v823 = vadd.f32 %v701, %v822
    %v824 = vpop.f32.mrb[0].mxu0
    %v825 = vadd.f32 %v705, %v824
    %v826 = vpop.f32.mrb[0].mxu0
    %v827 = vadd.f32 %v701, %v826
    %v828 = vpop.f32.mrb[0].mxu0
    %v829 = vadd.f32 %v705, %v828
    %830 = vmatprep.mubr.bf16.mxu0 0
    %831 = vmatmul.mubr.bf16.gmra.mrb[0].mxu0 %v673
    %v832 = vpop.f32.mrb[0].mxu0
    %v833 = vadd.f32 %v701, %v832
    %v834 = vpop.f32.mrb[0].mxu0
    %v835 = vadd.f32 %v705, %v834
    %v836 = vpop.f32.mrb[0].mxu0
    %v837 = vadd.f32 %v701, %v836
    %v838 = vpop.f32.mrb[0].mxu0
    %v839 = vadd.f32 %v705, %v838
    %840 = vmatprep.mubr.bf16.mxu0 0
    %841 = vmatmul.mubr.bf16.gmra.mrb[0].mxu0 %v674
    %v842 = vpop.f32.mrb[0].mxu0
    %v843 = vadd.f32 %v701, %v842
    %v844 = vpop.f32.mrb[0].mxu0
    %v845 = vadd.f32 %v705, %v844
    %v846 = vpop.f32.mrb[0].mxu0
    %v847 = vadd.f32 %v701, %v846
    %v848 = vpop.f32.mrb[0].mxu0
    %v849 = vadd.f32 %v705, %v848
    %850 = vmatprep.mubr.bf16.mxu0 0
    %851 = vmatmul.mubr.bf16.gmra.mrb[0].mxu0 %v675
    %v852 = vpop.f32.mrb[0].mxu0
    %v853 = vadd.f32 %v701, %v852
    %v854 = vpop.f32.mrb[0].mxu0
    %v855 = vadd.f32 %v705, %v854
    %v856 = vpop.f32.mrb[0].mxu0
    %v857 = vadd.f32 %v701, %v856
    %v858 = vpop.f32.mrb[0].mxu0
    %v859 = vadd.f32 %v705, %v858
    %860 = vmatprep.mubr.bf16.mxu0 0
    %861 = vmatmul.mubr.bf16.gmra.mrb[0].mxu0 %v676
    %v862 = vpop.f32.mrb[0].mxu0
    %v863 = vadd.f32 %v701, %v862
    %v864 = vpop.f32.mrb[0].mxu0
    %v865 = vadd.f32 %v705, %v864
    %v866 = vpop.f32.mrb[0].mxu0
    %v867 = vadd.f32 %v701, %v866
    %v868 = vpop.f32.mrb[0].mxu0
    %v869 = vadd.f32 %v705, %v868
    %870 = vmatprep.mubr.bf16.mxu0 0
    %871 = vmatmul.mubr.bf16.gmra.mrb[0].mxu0 %v677
    %v872 = vpop.f32.mrb[0].mxu0
    %v873 = vadd.f32 %v701, %v872
    %v874 = vpop.f32.mrb[0].mxu0
    %v875 = vadd.f32 %v705, %v874
    %v876 = vpop.f32.mrb[0].mxu0
    %v877 = vadd.f32 %v701, %v876
    %v878 = vpop.f32.mrb[0].mxu0
    %v879 = vadd.f32 %v705, %v878
    %880 = vmatprep.mubr.bf16.mxu0 0
    %881 = vmatmul.mubr.bf16.gmra.mrb[0].mxu0 %v678
    %v882 = vpop.f32.mrb[0].mxu0
    %v883 = vadd.f32 %v701, %v882
    %v884 = vpop.f32.mrb[0].mxu0
    %v885 = vadd.f32 %v705, %v884
    %v886 = vpop.f32.mrb[0].mxu0
    %v887 = vadd.f32 %v701, %v886
    %v888 = vpop.f32.mrb[0].mxu0
    %v889 = vadd.f32 %v705, %v888
    %890 = vmatprep.mubr.bf16.mxu0 0
    %891 = vmatmul.mubr.bf16.gmra.mrb[0].mxu0 %v679
    %v892 = vpop.f32.mrb[0].mxu0
    %v893 = vadd.f32 %v701, %v892
    %v894 = vpop.f32.mrb[0].mxu0
    %v895 = vadd.f32 %v705, %v894
    %v896 = vpop.f32.mrb[0].mxu0
    %v897 = vadd.f32 %v701, %v896
    %v898 = vpop.f32.mrb[0].mxu0
    %v899 = vadd.f32 %v705, %v898
    %900 = vdwg.mxu0
    %v901 = vmax.f32 %v823, 0.0
    %v902 = vmax.f32 %v825, 0.0
    %v903 = vmax.f32 %v827, 0.0
    %v904 = vmax.f32 %v829, 0.0
    %v905 = vmax.f32 %v833, 0.0
    %v906 = vmax.f32 %v835, 0.0
    %v907 = vmax.f32 %v837, 0.0
    %v908 = vmax.f32 %v839, 0.0
    %v909 = vmax.f32 %v843, 0.0
    %v910 = vmax.f32 %v845, 0.0
    %v911 = vmax.f32 %v847, 0.0
    %v912 = vmax.f32 %v849, 0.0
    %v913 = vmax.f32 %v853, 0.0
    %v914 = vmax.f32 %v855, 0.0
    %v915 = vmax.f32 %v857, 0.0
    %v916 = vmax.f32 %v859, 0.0
    %v917 = vmax.f32 %v863, 0.0
    %v918 = vmax.f32 %v865, 0.0
    %v919 = vmax.f32 %v867, 0.0
    %v920 = vmax.f32 %v869, 0.0
    %v921 = vmax.f32 %v873, 0.0
    %v922 = vmax.f32 %v875, 0.0
    %v923 = vmax.f32 %v877, 0.0
    %v924 = vmax.f32 %v879, 0.0
    %v925 = vmax.f32 %v883, 0.0
    %v926 = vmax.f32 %v885, 0.0
    %v927 = vmax.f32 %v887, 0.0
    %v928 = vmax.f32 %v889, 0.0
    %v929 = vmax.f32 %v893, 0.0
    %v930 = vmax.f32 %v895, 0.0
    %v931 = vmax.f32 %v897, 0.0
    %v932 = vmax.f32 %v899, 0.0
    %v933 = vlaneseq
    %v934 = vand.u32 %v933, 127
    %v935 = vadd.s32 %v934, 128
    %s936 = smul.u32 0, 256
    %v937 = vstv %s936
    %v938 = vadd.s32 %v934, %v937
    %v939 = vadd.s32 %v935, %v937
    %v940 = vlaneseq
    %v941 = vshrl.u32 %v940, 7
    %v942 = vadd.s32 %v941, 8
    %v943 = vadd.s32 %v941, 16
    %v944 = vadd.s32 %v941, 24
    %v945 = vadd.s32 %v941, 32
    %v946 = vadd.s32 %v941, 40
    %v947 = vadd.s32 %v941, 48
    %v948 = vadd.s32 %v941, 56
    %v949 = vadd.s32 %v941, 64
    %v950 = vadd.s32 %v941, 72
    %v951 = vadd.s32 %v941, 80
    %v952 = vadd.s32 %v941, 88
    %v953 = vadd.s32 %v941, 96
    %v954 = vadd.s32 %v941, 104
    %v955 = vadd.s32 %v941, 112
    %v956 = vadd.s32 %v941, 120
    %v957 = vmul.u32 %v941, 64
    %v958 = vmul.u32 %v942, 64
    %v959 = vmul.u32 %v943, 64
    %v960 = vmul.u32 %v944, 64
    %v961 = vmul.u32 %v945, 64
    %v962 = vmul.u32 %v946, 64
    %v963 = vmul.u32 %v947, 64
    %v964 = vmul.u32 %v948, 64
    %v965 = vmul.u32 %v949, 64
    %v966 = vmul.u32 %v950, 64
    %v967 = vmul.u32 %v951, 64
    %v968 = vmul.u32 %v952, 64
    %v969 = vmul.u32 %v953, 64
    %v970 = vmul.u32 %v954, 64
    %v971 = vmul.u32 %v955, 64
    %v972 = vmul.u32 %v956, 64
    %vm973 = vcmp.ge.s32.totalorder %v938, %v957
    %vm974 = vcmp.ge.s32.totalorder %v939, %v957
    %vm975 = vcmp.ge.s32.totalorder %v938, %v958
    %vm976 = vcmp.ge.s32.totalorder %v939, %v958
    %vm977 = vcmp.ge.s32.totalorder %v938, %v959
    %vm978 = vcmp.ge.s32.totalorder %v939, %v959
    %vm979 = vcmp.ge.s32.totalorder %v938, %v960
    %vm980 = vcmp.ge.s32.totalorder %v939, %v960
    %vm981 = vcmp.ge.s32.totalorder %v938, %v961
    %vm982 = vcmp.ge.s32.totalorder %v939, %v961
    %vm983 = vcmp.ge.s32.totalorder %v938, %v962
    %vm984 = vcmp.ge.s32.totalorder %v939, %v962
    %vm985 = vcmp.ge.s32.totalorder %v938, %v963
    %vm986 = vcmp.ge.s32.totalorder %v939, %v963
    %vm987 = vcmp.ge.s32.totalorder %v938, %v964
    %vm988 = vcmp.ge.s32.totalorder %v939, %v964
    %vm989 = vcmp.ge.s32.totalorder %v938, %v965
    %vm990 = vcmp.ge.s32.totalorder %v939, %v965
    %vm991 = vcmp.ge.s32.totalorder %v938, %v966
    %vm992 = vcmp.ge.s32.totalorder %v939, %v966
    %vm993 = vcmp.ge.s32.totalorder %v938, %v967
    %vm994 = vcmp.ge.s32.totalorder %v939, %v967
    %vm995 = vcmp.ge.s32.totalorder %v938, %v968
    %vm996 = vcmp.ge.s32.totalorder %v939, %v968
    %vm997 = vcmp.ge.s32.totalorder %v938, %v969
    %vm998 = vcmp.ge.s32.totalorder %v939, %v969
    %vm999 = vcmp.ge.s32.totalorder %v938, %v970
    %vm1000 = vcmp.ge.s32.totalorder %v939, %v970
    %vm1001 = vcmp.ge.s32.totalorder %v938, %v971
    %vm1002 = vcmp.ge.s32.totalorder %v939, %v971
    %vm1003 = vcmp.ge.s32.totalorder %v938, %v972
    %vm1004 = vcmp.ge.s32.totalorder %v939, %v972
    %v1005 = vadd.s32 %v957, 64
    %v1006 = vadd.s32 %v958, 64
    %v1007 = vadd.s32 %v959, 64
    %v1008 = vadd.s32 %v960, 64
    %v1009 = vadd.s32 %v961, 64
    %v1010 = vadd.s32 %v962, 64
    %v1011 = vadd.s32 %v963, 64
    %v1012 = vadd.s32 %v964, 64
    %v1013 = vadd.s32 %v965, 64
    %v1014 = vadd.s32 %v966, 64
    %v1015 = vadd.s32 %v967, 64
    %v1016 = vadd.s32 %v968, 64
    %v1017 = vadd.s32 %v969, 64
    %v1018 = vadd.s32 %v970, 64
    %v1019 = vadd.s32 %v971, 64
    %v1020 = vadd.s32 %v972, 64
    %vm1021 = vcmp.lt.s32.totalorder %v938, %v1005
    %vm1022 = vcmp.lt.s32.totalorder %v939, %v1005
    %vm1023 = vcmp.lt.s32.totalorder %v938, %v1006
    %vm1024 = vcmp.lt.s32.totalorder %v939, %v1006
    %vm1025 = vcmp.lt.s32.totalorder %v938, %v1007
    %vm1026 = vcmp.lt.s32.totalorder %v939, %v1007
    %vm1027 = vcmp.lt.s32.totalorder %v938, %v1008
    %vm1028 = vcmp.lt.s32.totalorder %v939, %v1008
    %vm1029 = vcmp.lt.s32.totalorder %v938, %v1009
    %vm1030 = vcmp.lt.s32.totalorder %v939, %v1009
    %vm1031 = vcmp.lt.s32.totalorder %v938, %v1010
    %vm1032 = vcmp.lt.s32.totalorder %v939, %v1010
    %vm1033 = vcmp.lt.s32.totalorder %v938, %v1011
    %vm1034 = vcmp.lt.s32.totalorder %v939, %v1011
    %vm1035 = vcmp.lt.s32.totalorder %v938, %v1012
    %vm1036 = vcmp.lt.s32.totalorder %v939, %v1012
    %vm1037 = vcmp.lt.s32.totalorder %v938, %v1013
    %vm1038 = vcmp.lt.s32.totalorder %v939, %v1013
    %vm1039 = vcmp.lt.s32.totalorder %v938, %v1014
    %vm1040 = vcmp.lt.s32.totalorder %v939, %v1014
    %vm1041 = vcmp.lt.s32.totalorder %v938, %v1015
    %vm1042 = vcmp.lt.s32.totalorder %v939, %v1015
    %vm1043 = vcmp.lt.s32.totalorder %v938, %v1016
    %vm1044 = vcmp.lt.s32.totalorder %v939, %v1016
    %vm1045 = vcmp.lt.s32.totalorder %v938, %v1017
    %vm1046 = vcmp.lt.s32.totalorder %v939, %v1017
    %vm1047 = vcmp.lt.s32.totalorder %v938, %v1018
    %vm1048 = vcmp.lt.s32.totalorder %v939, %v1018
    %vm1049 = vcmp.lt.s32.totalorder %v938, %v1019
    %vm1050 = vcmp.lt.s32.totalorder %v939, %v1019
    %vm1051 = vcmp.lt.s32.totalorder %v938, %v1020
    %vm1052 = vcmp.lt.s32.totalorder %v939, %v1020
    %vm1053 = vmand %vm973, %vm1021
    %vm1054 = vmand %vm974, %vm1022
    %vm1055 = vmand %vm975, %vm1023
    %vm1056 = vmand %vm976, %vm1024
    %vm1057 = vmand %vm977, %vm1025
    %vm1058 = vmand %vm978, %vm1026
    %vm1059 = vmand %vm979, %vm1027
    %vm1060 = vmand %vm980, %vm1028
    %vm1061 = vmand %vm981, %vm1029
    %vm1062 = vmand %vm982, %vm1030
    %vm1063 = vmand %vm983, %vm1031
    %vm1064 = vmand %vm984, %vm1032
    %vm1065 = vmand %vm985, %vm1033
    %vm1066 = vmand %vm986, %vm1034
    %vm1067 = vmand %vm987, %vm1035
    %vm1068 = vmand %vm988, %vm1036
    %vm1069 = vmand %vm989, %vm1037
    %vm1070 = vmand %vm990, %vm1038
    %vm1071 = vmand %vm991, %vm1039
    %vm1072 = vmand %vm992, %vm1040
    %vm1073 = vmand %vm993, %vm1041
    %vm1074 = vmand %vm994, %vm1042
    %vm1075 = vmand %vm995, %vm1043
    %vm1076 = vmand %vm996, %vm1044
    %vm1077 = vmand %vm997, %vm1045
    %vm1078 = vmand %vm998, %vm1046
    %vm1079 = vmand %vm999, %vm1047
    %vm1080 = vmand %vm1000, %vm1048
    %vm1081 = vmand %vm1001, %vm1049
    %vm1082 = vmand %vm1002, %vm1050
    %vm1083 = vmand %vm1003, %vm1051
    %vm1084 = vmand %vm1004, %vm1052
    %v1085 = vsel %vm1053, 1.0, 0.0
    %v1086 = vsel %vm1054, 1.0, 0.0
    %v1087 = vsel %vm1055, 1.0, 0.0
    %v1088 = vsel %vm1056, 1.0, 0.0
    %v1089 = vsel %vm1057, 1.0, 0.0
    %v1090 = vsel %vm1058, 1.0, 0.0
    %v1091 = vsel %vm1059, 1.0, 0.0
    %v1092 = vsel %vm1060, 1.0, 0.0
    %v1093 = vsel %vm1061, 1.0, 0.0
    %v1094 = vsel %vm1062, 1.0, 0.0
    %v1095 = vsel %vm1063, 1.0, 0.0
    %v1096 = vsel %vm1064, 1.0, 0.0
    %v1097 = vsel %vm1065, 1.0, 0.0
    %v1098 = vsel %vm1066, 1.0, 0.0
    %v1099 = vsel %vm1067, 1.0, 0.0
    %v1100 = vsel %vm1068, 1.0, 0.0
    %v1101 = vsel %vm1069, 1.0, 0.0
    %v1102 = vsel %vm1070, 1.0, 0.0
    %v1103 = vsel %vm1071, 1.0, 0.0
    %v1104 = vsel %vm1072, 1.0, 0.0
    %v1105 = vsel %vm1073, 1.0, 0.0
    %v1106 = vsel %vm1074, 1.0, 0.0
    %v1107 = vsel %vm1075, 1.0, 0.0
    %v1108 = vsel %vm1076, 1.0, 0.0
    %v1109 = vsel %vm1077, 1.0, 0.0
    %v1110 = vsel %vm1078, 1.0, 0.0
    %v1111 = vsel %vm1079, 1.0, 0.0
    %v1112 = vsel %vm1080, 1.0, 0.0
    %v1113 = vsel %vm1081, 1.0, 0.0
    %v1114 = vsel %vm1082, 1.0, 0.0
    %v1115 = vsel %vm1083, 1.0, 0.0
    %v1116 = vsel %vm1084, 1.0, 0.0
    %v1117 = vpack.c.bf16 %v1087, %v1085
    %v1118 = vpack.c.bf16 %v1088, %v1086
    %v1119 = vpack.c.bf16 %v1091, %v1089
    %v1120 = vpack.c.bf16 %v1092, %v1090
    %v1121 = vpack.c.bf16 %v1095, %v1093
    %v1122 = vpack.c.bf16 %v1096, %v1094
    %v1123 = vpack.c.bf16 %v1099, %v1097
    %v1124 = vpack.c.bf16 %v1100, %v1098
    %v1125 = vpack.c.bf16 %v1103, %v1101
    %v1126 = vpack.c.bf16 %v1104, %v1102
    %v1127 = vpack.c.bf16 %v1107, %v1105
    %v1128 = vpack.c.bf16 %v1108, %v1106
    %v1129 = vpack.c.bf16 %v1111, %v1109
    %v1130 = vpack.c.bf16 %v1112, %v1110
    %v1131 = vpack.c.bf16 %v1115, %v1113
    %v1132 = vpack.c.bf16 %v1116, %v1114
    %v1133 = vld [vmem:[#allocation2] sm:$0xff]
    %v1134 = vld [vmem:[#allocation2 + $0x8] sm:$0xff]
    %v1135 = vld [vmem:[#allocation2 + $0x10] sm:$0xff]
    %v1136 = vld [vmem:[#allocation2 + $0x18] sm:$0xff]
    %v1137 = vld [vmem:[#allocation2 + $0x20] sm:$0xff]
    %v1138 = vld [vmem:[#allocation2 + $0x28] sm:$0xff]
    %v1139 = vld [vmem:[#allocation2 + $0x30] sm:$0xff]
    %v1140 = vld [vmem:[#allocation2 + $0x38] sm:$0xff]
    %v1141 = vld [vmem:[#allocation2 + $0x40] sm:$0xff]
    %v1142 = vld [vmem:[#allocation2 + $0x48] sm:$0xff]
    %v1143 = vld [vmem:[#allocation2 + $0x50] sm:$0xff]
    %v1144 = vld [vmem:[#allocation2 + $0x58] sm:$0xff]
    %v1145 = vld [vmem:[#allocation2 + $0x60] sm:$0xff]
    %v1146 = vld [vmem:[#allocation2 + $0x68] sm:$0xff]
    %v1147 = vld [vmem:[#allocation2 + $0x70] sm:$0xff]
    %v1148 = vld [vmem:[#allocation2 + $0x78] sm:$0xff]
    %v1149 = vpack.c.bf16 %v1134, %v1133
    %v1150 = vpack.c.bf16 %v1136, %v1135
    %v1151 = vpack.c.bf16 %v1138, %v1137
    %v1152 = vpack.c.bf16 %v1140, %v1139
    %v1153 = vpack.c.bf16 %v1142, %v1141
    %v1154 = vpack.c.bf16 %v1144, %v1143
    %v1155 = vpack.c.bf16 %v1146, %v1145
    %v1156 = vpack.c.bf16 %v1148, %v1147
    %1157 = vmatprep.subr.bf16.mxu0 %v1118
    %1158 = vmatpush1.bf16.msra.mxu0 %v1117
    %1159 = vmatprep.subr.bf16.mxu0 %v1120
    %1160 = vmatpush1.bf16.msra.mxu0 %v1119
    %1161 = vmatprep.subr.bf16.mxu0 %v1122
    %1162 = vmatpush1.bf16.msra.mxu0 %v1121
    %1163 = vmatprep.subr.bf16.mxu0 %v1124
    %1164 = vmatpush1.bf16.msra.mxu0 %v1123
    %1165 = vmatprep.subr.bf16.mxu0 %v1126
    %1166 = vmatpush1.bf16.msra.mxu0 %v1125
    %1167 = vmatprep.subr.bf16.mxu0 %v1128
    %1168 = vmatpush1.bf16.msra.mxu0 %v1127
    %1169 = vmatprep.subr.bf16.mxu0 %v1130
    %1170 = vmatpush1.bf16.msra.mxu0 %v1129
    %1171 = vmatprep.subr.bf16.mxu0 %v1132
    %1172 = vmatpush1.bf16.msra.mxu0 %v1131
    %1173 = vmatprep.subr.bf16.mxu0 0
    %1174 = vmatpush1.bf16.msra.mxu0 0
    %1175 = vmatprep.subr.bf16.mxu0 0
    %1176 = vmatpush1.bf16.msra.mxu0 0
    %1177 = vmatprep.subr.bf16.mxu0 0
    %1178 = vmatpush1.bf16.msra.mxu0 0
    %1179 = vmatprep.subr.bf16.mxu0 0
    %1180 = vmatpush1.bf16.msra.mxu0 0
    %1181 = vmatprep.subr.bf16.mxu0 0
    %1182 = vmatpush1.bf16.msra.mxu0 0
    %1183 = vmatprep.subr.bf16.mxu0 0
    %1184 = vmatpush1.bf16.msra.mxu0 0
    %1185 = vmatprep.subr.bf16.mxu0 0
    %1186 = vmatpush1.bf16.msra.mxu0 0
    %1187 = vmatprep.subr.bf16.mxu0 0
    %1188 = vmatpush1.bf16.msra.mxu0 0
    %1189 = vmatprep.mubr.bf16.mxu0 0
    %1190 = vmatmul.mubr.bf16.gmra.mrb[0].mxu0 %v1149
    %v1191 = vpop.f32.mrb[0].mxu0
    %v1192 = vadd.f32 0.0, %v1191
    %v1193 = vpop.f32.mrb[0].mxu0
    %v1194 = vadd.f32 0.0, %v1193
    %v1195 = vpop.f32.mrb[0].mxu0
    %v1196 = vadd.f32 0.0, %v1195
    %v1197 = vpop.f32.mrb[0].mxu0
    %v1198 = vadd.f32 0.0, %v1197
    %1199 = vmatprep.mubr.bf16.mxu0 0
    %1200 = vmatmul.mubr.bf16.gmra.mrb[0].mxu0 %v1150
    %v1201 = vpop.f32.mrb[0].mxu0
    %v1202 = vadd.f32 0.0, %v1201
    %v1203 = vpop.f32.mrb[0].mxu0
    %v1204 = vadd.f32 0.0, %v1203
    %v1205 = vpop.f32.mrb[0].mxu0
    %v1206 = vadd.f32 0.0, %v1205
    %v1207 = vpop.f32.mrb[0].mxu0
    %v1208 = vadd.f32 0.0, %v1207
    %1209 = vmatprep.mubr.bf16.mxu0 0
    %1210 = vmatmul.mubr.bf16.gmra.mrb[0].mxu0 %v1151
    %v1211 = vpop.f32.mrb[0].mxu0
    %v1212 = vadd.f32 0.0, %v1211
    %v1213 = vpop.f32.mrb[0].mxu0
    %v1214 = vadd.f32 0.0, %v1213
    %v1215 = vpop.f32.mrb[0].mxu0
    %v1216 = vadd.f32 0.0, %v1215
    %v1217 = vpop.f32.mrb[0].mxu0
    %v1218 = vadd.f32 0.0, %v1217
    %1219 = vmatprep.mubr.bf16.mxu0 0
    %1220 = vmatmul.mubr.bf16.gmra.mrb[0].mxu0 %v1152
    %v1221 = vpop.f32.mrb[0].mxu0
    %v1222 = vadd.f32 0.0, %v1221
    %v1223 = vpop.f32.mrb[0].mxu0
    %v1224 = vadd.f32 0.0, %v1223
    %v1225 = vpop.f32.mrb[0].mxu0
    %v1226 = vadd.f32 0.0, %v1225
    %v1227 = vpop.f32.mrb[0].mxu0
    %v1228 = vadd.f32 0.0, %v1227
    %1229 = vmatprep.mubr.bf16.mxu0 0
    %1230 = vmatmul.mubr.bf16.gmra.mrb[0].mxu0 %v1153
    %v1231 = vpop.f32.mrb[0].mxu0
    %v1232 = vadd.f32 0.0, %v1231
    %v1233 = vpop.f32.mrb[0].mxu0
    %v1234 = vadd.f32 0.0, %v1233
    %v1235 = vpop.f32.mrb[0].mxu0
    %v1236 = vadd.f32 0.0, %v1235
    %v1237 = vpop.f32.mrb[0].mxu0
    %v1238 = vadd.f32 0.0, %v1237
    %1239 = vmatprep.mubr.bf16.mxu0 0
    %1240 = vmatmul.mubr.bf16.gmra.mrb[0].mxu0 %v1154
    %v1241 = vpop.f32.mrb[0].mxu0
    %v1242 = vadd.f32 0.0, %v1241
    %v1243 = vpop.f32.mrb[0].mxu0
    %v1244 = vadd.f32 0.0, %v1243
    %v1245 = vpop.f32.mrb[0].mxu0
    %v1246 = vadd.f32 0.0, %v1245
    %v1247 = vpop.f32.mrb[0].mxu0
    %v1248 = vadd.f32 0.0, %v1247
    %1249 = vmatprep.mubr.bf16.mxu0 0
    %1250 = vmatmul.mubr.bf16.gmra.mrb[0].mxu0 %v1155
    %v1251 = vpop.f32.mrb[0].mxu0
    %v1252 = vadd.f32 0.0, %v1251
    %v1253 = vpop.f32.mrb[0].mxu0
    %v1254 = vadd.f32 0.0, %v1253
    %v1255 = vpop.f32.mrb[0].mxu0
    %v1256 = vadd.f32 0.0, %v1255
    %v1257 = vpop.f32.mrb[0].mxu0
    %v1258 = vadd.f32 0.0, %v1257
    %1259 = vmatprep.mubr.bf16.mxu0 0
    %1260 = vmatmul.mubr.bf16.gmra.mrb[0].mxu0 %v1156
    %v1261 = vpop.f32.mrb[0].mxu0
    %v1262 = vadd.f32 0.0, %v1261
    %v1263 = vpop.f32.mrb[0].mxu0
    %v1264 = vadd.f32 0.0, %v1263
    %v1265 = vpop.f32.mrb[0].mxu0
    %v1266 = vadd.f32 0.0, %v1265
    %v1267 = vpop.f32.mrb[0].mxu0
    %v1268 = vadd.f32 0.0, %v1267
    %1269 = vdwg.mxu0
    %v1270 = vld [vmem:[#allocation3] sm:$0xff]
    %v1271 = vld [vmem:[#allocation3 + $0x8] sm:$0xff]
    %v1272 = vld [vmem:[#allocation3 + $0x10] sm:$0xff]
    %v1273 = vld [vmem:[#allocation3 + $0x18] sm:$0xff]
    %v1274 = vld [vmem:[#allocation3 + $0x20] sm:$0xff]
    %v1275 = vld [vmem:[#allocation3 + $0x28] sm:$0xff]
    %v1276 = vld [vmem:[#allocation3 + $0x30] sm:$0xff]
    %v1277 = vld [vmem:[#allocation3 + $0x38] sm:$0xff]
    %v1278 = vld [vmem:[#allocation3 + $0x40] sm:$0xff]
    %v1279 = vld [vmem:[#allocation3 + $0x48] sm:$0xff]
    %v1280 = vld [vmem:[#allocation3 + $0x50] sm:$0xff]
    %v1281 = vld [vmem:[#allocation3 + $0x58] sm:$0xff]
    %v1282 = vld [vmem:[#allocation3 + $0x60] sm:$0xff]
    %v1283 = vld [vmem:[#allocation3 + $0x68] sm:$0xff]
    %v1284 = vld [vmem:[#allocation3 + $0x70] sm:$0xff]
    %v1285 = vld [vmem:[#allocation3 + $0x78] sm:$0xff]
    %v1286 = vmul.f32 %v901, %v1192
    %v1287 = vmul.f32 %v902, %v1194
    %v1288 = vmul.f32 %v903, %v1196
    %v1289 = vmul.f32 %v904, %v1198
    %v1290 = vmul.f32 %v905, %v1202
    %v1291 = vmul.f32 %v906, %v1204
    %v1292 = vmul.f32 %v907, %v1206
    %v1293 = vmul.f32 %v908, %v1208
    %v1294 = vmul.f32 %v909, %v1212
    %v1295 = vmul.f32 %v910, %v1214
    %v1296 = vmul.f32 %v911, %v1216
    %v1297 = vmul.f32 %v912, %v1218
    %v1298 = vmul.f32 %v913, %v1222
    %v1299 = vmul.f32 %v914, %v1224
    %v1300 = vmul.f32 %v915, %v1226
    %v1301 = vmul.f32 %v916, %v1228
    %v1302 = vmul.f32 %v917, %v1232
    %v1303 = vmul.f32 %v918, %v1234
    %v1304 = vmul.f32 %v919, %v1236
    %v1305 = vmul.f32 %v920, %v1238
    %v1306 = vmul.f32 %v921, %v1242
    %v1307 = vmul.f32 %v922, %v1244
    %v1308 = vmul.f32 %v923, %v1246
    %v1309 = vmul.f32 %v924, %v1248
    %v1310 = vmul.f32 %v925, %v1252
    %v1311 = vmul.f32 %v926, %v1254
    %v1312 = vmul.f32 %v927, %v1256
    %v1313 = vmul.f32 %v928, %v1258
    %v1314 = vmul.f32 %v929, %v1262
    %v1315 = vmul.f32 %v930, %v1264
    %v1316 = vmul.f32 %v931, %v1266
    %v1317 = vmul.f32 %v932, %v1268
    %v1318 = vpack.c.bf16 %v1288, %v1286
    %v1319 = vpack.c.bf16 %v1289, %v1287
    %v1320 = vpack.c.bf16 %v1292, %v1290
    %v1321 = vpack.c.bf16 %v1293, %v1291
    %v1322 = vpack.c.bf16 %v1296, %v1294
    %v1323 = vpack.c.bf16 %v1297, %v1295
    %v1324 = vpack.c.bf16 %v1300, %v1298
    %v1325 = vpack.c.bf16 %v1301, %v1299
    %v1326 = vpack.c.bf16 %v1304, %v1302
    %v1327 = vpack.c.bf16 %v1305, %v1303
    %v1328 = vpack.c.bf16 %v1308, %v1306
    %v1329 = vpack.c.bf16 %v1309, %v1307
    %v1330 = vpack.c.bf16 %v1312, %v1310
    %v1331 = vpack.c.bf16 %v1313, %v1311
    %v1332 = vpack.c.bf16 %v1316, %v1314
    %v1333 = vpack.c.bf16 %v1317, %v1315
    %v1334 = vld [vmem:[#allocation10] sm:$0xf]
    %v1335 = vld [vmem:[#allocation10 + $0x4] sm:$0xf]
    %v1336 = vld [vmem:[#allocation10 + $0x8] sm:$0xf]
    %v1337 = vld [vmem:[#allocation10 + $0xc] sm:$0xf]
    %v1338 = vld [vmem:[#allocation10 + $0x10] sm:$0xf]
    %v1339 = vld [vmem:[#allocation10 + $0x14] sm:$0xf]
    %v1340 = vld [vmem:[#allocation10 + $0x18] sm:$0xf]
    %v1341 = vld [vmem:[#allocation10 + $0x1c] sm:$0xf]
    %v1342 = vld [vmem:[#allocation10 + $0x20] sm:$0xf]
    %v1343 = vld [vmem:[#allocation10 + $0x24] sm:$0xf]
    %v1344 = vld [vmem:[#allocation10 + $0x28] sm:$0xf]
    %v1345 = vld [vmem:[#allocation10 + $0x2c] sm:$0xf]
    %v1346 = vld [vmem:[#allocation10 + $0x30] sm:$0xf]
    %v1347 = vld [vmem:[#allocation10 + $0x34] sm:$0xf]
    %v1348 = vld [vmem:[#allocation10 + $0x38] sm:$0xf]
    %v1349 = vld [vmem:[#allocation10 + $0x3c] sm:$0xf]
    %v1350 = vld [vmem:[#allocation10 + $0x40] sm:$0xf]
    %v1351 = vld [vmem:[#allocation10 + $0x44] sm:$0xf]
    %v1352 = vld [vmem:[#allocation10 + $0x48] sm:$0xf]
    %v1353 = vld [vmem:[#allocation10 + $0x4c] sm:$0xf]
    %v1354 = vld [vmem:[#allocation10 + $0x50] sm:$0xf]
    %v1355 = vld [vmem:[#allocation10 + $0x54] sm:$0xf]
    %v1356 = vld [vmem:[#allocation10 + $0x58] sm:$0xf]
    %v1357 = vld [vmem:[#allocation10 + $0x5c] sm:$0xf]
    %v1358 = vld [vmem:[#allocation10 + $0x60] sm:$0xf]
    %v1359 = vld [vmem:[#allocation10 + $0x64] sm:$0xf]
    %v1360 = vld [vmem:[#allocation10 + $0x68] sm:$0xf]
    %v1361 = vld [vmem:[#allocation10 + $0x6c] sm:$0xf]
    %v1362 = vld [vmem:[#allocation10 + $0x70] sm:$0xf]
    %v1363 = vld [vmem:[#allocation10 + $0x74] sm:$0xf]
    %v1364 = vld [vmem:[#allocation10 + $0x78] sm:$0xf]
    %v1365 = vld [vmem:[#allocation10 + $0x7c] sm:$0xf]
    %v1398 = vunpack.c.l.b16 %v1334
    %v1399 = vunpack.c.l.b16 %v1335
    %v1400 = vunpack.c.l.b16 %v1336
    %v1401 = vunpack.c.l.b16 %v1337
    %v1402 = vunpack.c.l.b16 %v1338
    %v1403 = vunpack.c.l.b16 %v1339
    %v1404 = vunpack.c.l.b16 %v1340
    %v1405 = vunpack.c.l.b16 %v1341
    %v1406 = vunpack.c.l.b16 %v1342
    %v1407 = vunpack.c.l.b16 %v1343
    %v1408 = vunpack.c.l.b16 %v1344
    %v1409 = vunpack.c.l.b16 %v1345
    %v1410 = vunpack.c.l.b16 %v1346
    %v1411 = vunpack.c.l.b16 %v1347
    %v1412 = vunpack.c.l.b16 %v1348
    %v1413 = vunpack.c.l.b16 %v1349
    %v1414 = vunpack.c.l.b16 %v1350
    %v1415 = vunpack.c.l.b16 %v1351
    %v1416 = vunpack.c.l.b16 %v1352
    %v1417 = vunpack.c.l.b16 %v1353
    %v1418 = vunpack.c.l.b16 %v1354
    %v1419 = vunpack.c.l.b16 %v1355
    %v1420 = vunpack.c.l.b16 %v1356
    %v1421 = vunpack.c.l.b16 %v1357
    %v1422 = vunpack.c.l.b16 %v1358
    %v1423 = vunpack.c.l.b16 %v1359
    %v1424 = vunpack.c.l.b16 %v1360
    %v1425 = vunpack.c.l.b16 %v1361
    %v1426 = vunpack.c.l.b16 %v1362
    %v1427 = vunpack.c.l.b16 %v1363
    %v1428 = vunpack.c.l.b16 %v1364
    %v1429 = vunpack.c.l.b16 %v1365
    %v1430 = vpack.c.b16 %v1399, %v1398
    %v1431 = vpack.c.b16 %v1401, %v1400
    %v1432 = vpack.c.b16 %v1403, %v1402
    %v1433 = vpack.c.b16 %v1405, %v1404
    %v1434 = vpack.c.b16 %v1407, %v1406
    %v1435 = vpack.c.b16 %v1409, %v1408
    %v1436 = vpack.c.b16 %v1411, %v1410
    %v1437 = vpack.c.b16 %v1413, %v1412
    %v1438 = vpack.c.b16 %v1415, %v1414
    %v1439 = vpack.c.b16 %v1417, %v1416
    %v1440 = vpack.c.b16 %v1419, %v1418
    %v1441 = vpack.c.b16 %v1421, %v1420
    %v1442 = vpack.c.b16 %v1423, %v1422
    %v1443 = vpack.c.b16 %v1425, %v1424
    %v1444 = vpack.c.b16 %v1427, %v1426
    %v1445 = vpack.c.b16 %v1429, %v1428
    %1462 = vmatprep.subr.bf16.mxu0 0
    %1463 = vmatpush1.bf16.msra.mxu0 %v1430
    %1464 = vmatprep.subr.bf16.mxu0 0
    %1465 = vmatpush1.bf16.msra.mxu0 %v1431
    %1466 = vmatprep.subr.bf16.mxu0 0
    %1467 = vmatpush1.bf16.msra.mxu0 %v1432
    %1468 = vmatprep.subr.bf16.mxu0 0
    %1469 = vmatpush1.bf16.msra.mxu0 %v1433
    %1470 = vmatprep.subr.bf16.mxu0 0
    %1471 = vmatpush1.bf16.msra.mxu0 %v1434
    %1472 = vmatprep.subr.bf16.mxu0 0
    %1473 = vmatpush1.bf16.msra.mxu0 %v1435
    %1474 = vmatprep.subr.bf16.mxu0 0
    %1475 = vmatpush1.bf16.msra.mxu0 %v1436
    %1476 = vmatprep.subr.bf16.mxu0 0
    %1477 = vmatpush1.bf16.msra.mxu0 %v1437
    %1478 = vmatprep.subr.bf16.mxu0 0
    %1479 = vmatpush1.bf16.msra.mxu0 %v1438
    %1480 = vmatprep.subr.bf16.mxu0 0
    %1481 = vmatpush1.bf16.msra.mxu0 %v1439
    %1482 = vmatprep.subr.bf16.mxu0 0
    %1483 = vmatpush1.bf16.msra.mxu0 %v1440
    %1484 = vmatprep.subr.bf16.mxu0 0
    %1485 = vmatpush1.bf16.msra.mxu0 %v1441
    %1486 = vmatprep.subr.bf16.mxu0 0
    %1487 = vmatpush1.bf16.msra.mxu0 %v1442
    %1488 = vmatprep.subr.bf16.mxu0 0
    %1489 = vmatpush1.bf16.msra.mxu0 %v1443
    %1490 = vmatprep.subr.bf16.mxu0 0
    %1491 = vmatpush1.bf16.msra.mxu0 %v1444
    %1492 = vmatprep.subr.bf16.mxu0 0
    %1493 = vmatpush1.bf16.msra.mxu0 %v1445
    %1494 = vmatprep.mubr.bf16.mxu0 %v1319
    %1495 = vmatmul.mubr.bf16.gmra.mrb[0].mxu0 %v1318
    %v1496 = vpop.f32.mrb[0].mxu0
    %v1497 = vadd.f32 0.0, %v1496
    %v1498 = vpop.f32.mrb[0].mxu0
    %v1499 = vpop.f32.mrb[0].mxu0
    %v1500 = vadd.f32 0.0, %v1499
    %v1501 = vpop.f32.mrb[0].mxu0
    %1502 = vmatprep.mubr.bf16.mxu0 %v1321
    %1503 = vmatmul.mubr.bf16.gmra.mrb[0].mxu0 %v1320
    %v1504 = vpop.f32.mrb[0].mxu0
    %v1505 = vadd.f32 0.0, %v1504
    %v1506 = vpop.f32.mrb[0].mxu0
    %v1507 = vpop.f32.mrb[0].mxu0
    %v1508 = vadd.f32 0.0, %v1507
    %v1509 = vpop.f32.mrb[0].mxu0
    %1510 = vmatprep.mubr.bf16.mxu0 %v1323
    %1511 = vmatmul.mubr.bf16.gmra.mrb[0].mxu0 %v1322
    %v1512 = vpop.f32.mrb[0].mxu0
    %v1513 = vadd.f32 0.0, %v1512
    %v1514 = vpop.f32.mrb[0].mxu0
    %v1515 = vpop.f32.mrb[0].mxu0
    %v1516 = vadd.f32 0.0, %v1515
    %v1517 = vpop.f32.mrb[0].mxu0
    %1518 = vmatprep.mubr.bf16.mxu0 %v1325
    %1519 = vmatmul.mubr.bf16.gmra.mrb[0].mxu0 %v1324
    %v1520 = vpop.f32.mrb[0].mxu0
    %v1521 = vadd.f32 0.0, %v1520
    %v1522 = vpop.f32.mrb[0].mxu0
    %v1523 = vpop.f32.mrb[0].mxu0
    %v1524 = vadd.f32 0.0, %v1523
    %v1525 = vpop.f32.mrb[0].mxu0
    %1526 = vmatprep.mubr.bf16.mxu0 %v1327
    %1527 = vmatmul.mubr.bf16.gmra.mrb[0].mxu0 %v1326
    %v1528 = vpop.f32.mrb[0].mxu0
    %v1529 = vadd.f32 0.0, %v1528
    %v1530 = vpop.f32.mrb[0].mxu0
    %v1531 = vpop.f32.mrb[0].mxu0
    %v1532 = vadd.f32 0.0, %v1531
    %v1533 = vpop.f32.mrb[0].mxu0
    %1534 = vmatprep.mubr.bf16.mxu0 %v1329
    %1535 = vmatmul.mubr.bf16.gmra.mrb[0].mxu0 %v1328
    %v1536 = vpop.f32.mrb[0].mxu0
    %v1537 = vadd.f32 0.0, %v1536
    %v1538 = vpop.f32.mrb[0].mxu0
    %v1539 = vpop.f32.mrb[0].mxu0
    %v1540 = vadd.f32 0.0, %v1539
    %v1541 = vpop.f32.mrb[0].mxu0
    %1542 = vmatprep.mubr.bf16.mxu0 %v1331
    %1543 = vmatmul.mubr.bf16.gmra.mrb[0].mxu0 %v1330
    %v1544 = vpop.f32.mrb[0].mxu0
    %v1545 = vadd.f32 0.0, %v1544
    %v1546 = vpop.f32.mrb[0].mxu0
    %v1547 = vpop.f32.mrb[0].mxu0
    %v1548 = vadd.f32 0.0, %v1547
    %v1549 = vpop.f32.mrb[0].mxu0
    %1550 = vmatprep.mubr.bf16.mxu0 %v1333
    %1551 = vmatmul.mubr.bf16.gmra.mrb[0].mxu0 %v1332
    %v1552 = vpop.f32.mrb[0].mxu0
    %v1553 = vadd.f32 0.0, %v1552
    %v1554 = vpop.f32.mrb[0].mxu0
    %v1555 = vpop.f32.mrb[0].mxu0
    %v1556 = vadd.f32 0.0, %v1555
    %v1557 = vpop.f32.mrb[0].mxu0
    %1558 = vdwg.mxu0
    %v1559 = vadd.f32 %v1270, %v1497
    %v1560 = vadd.f32 %v1271, %v1500
    %v1561 = vadd.f32 %v1272, %v1505
    %v1562 = vadd.f32 %v1273, %v1508
    %v1563 = vadd.f32 %v1274, %v1513
    %v1564 = vadd.f32 %v1275, %v1516
    %v1565 = vadd.f32 %v1276, %v1521
    %v1566 = vadd.f32 %v1277, %v1524
    %v1567 = vadd.f32 %v1278, %v1529
    %v1568 = vadd.f32 %v1279, %v1532
    %v1569 = vadd.f32 %v1280, %v1537
    %v1570 = vadd.f32 %v1281, %v1540
    %v1571 = vadd.f32 %v1282, %v1545
    %v1572 = vadd.f32 %v1283, %v1548
    %v1573 = vadd.f32 %v1284, %v1553
    %v1574 = vadd.f32 %v1285, %v1556
    %1575 = vst [vmem:[#allocation3] sm:$0xff] %v1559
    %1576 = vst [vmem:[#allocation3 + $0x8] sm:$0xff] %v1560
    %1577 = vst [vmem:[#allocation3 + $0x10] sm:$0xff] %v1561
    %1578 = vst [vmem:[#allocation3 + $0x18] sm:$0xff] %v1562
    %1579 = vst [vmem:[#allocation3 + $0x20] sm:$0xff] %v1563
    %1580 = vst [vmem:[#allocation3 + $0x28] sm:$0xff] %v1564
    %1581 = vst [vmem:[#allocation3 + $0x30] sm:$0xff] %v1565
    %1582 = vst [vmem:[#allocation3 + $0x38] sm:$0xff] %v1566
    %1583 = vst [vmem:[#allocation3 + $0x40] sm:$0xff] %v1567
    %1584 = vst [vmem:[#allocation3 + $0x48] sm:$0xff] %v1568
    %1585 = vst [vmem:[#allocation3 + $0x50] sm:$0xff] %v1569
    %1586 = vst [vmem:[#allocation3 + $0x58] sm:$0xff] %v1570
    %1587 = vst [vmem:[#allocation3 + $0x60] sm:$0xff] %v1571
    %1588 = vst [vmem:[#allocation3 + $0x68] sm:$0xff] %v1572
    %1589 = vst [vmem:[#allocation3 + $0x70] sm:$0xff] %v1573
    %1590 = vst [vmem:[#allocation3 + $0x78] sm:$0xff] %v1574
    // Predicated region
    $region54: #{tpu_custom_call.1} parent=1 // pred_check
      %p1591 = pneg %p99
    $region55: #{tpu_custom_call.1} parent=1 // pred_check_branch
      %1593 = sbr.rel (%p1591) target = $region57
    $region56: #{tpu_custom_call.1} parent=1 // pred_region
      %v1594 = vld [vmem:[#allocation3] sm:$0xff]
      %v1595 = vld [vmem:[#allocation3 + $0x8] sm:$0xff]
      %v1596 = vld [vmem:[#allocation3 + $0x10] sm:$0xff]
      %v1597 = vld [vmem:[#allocation3 + $0x18] sm:$0xff]
      %v1598 = vld [vmem:[#allocation3 + $0x20] sm:$0xff]
      %v1599 = vld [vmem:[#allocation3 + $0x28] sm:$0xff]
      %v1600 = vld [vmem:[#allocation3 + $0x30] sm:$0xff]
      %v1601 = vld [vmem:[#allocation3 + $0x38] sm:$0xff]
      %v1602 = vld [vmem:[#allocation3 + $0x40] sm:$0xff]
      %v1603 = vld [vmem:[#allocation3 + $0x48] sm:$0xff]
      %v1604 = vld [vmem:[#allocation3 + $0x50] sm:$0xff]
      %v1605 = vld [vmem:[#allocation3 + $0x58] sm:$0xff]
      %v1606 = vld [vmem:[#allocation3 + $0x60] sm:$0xff]
      %v1607 = vld [vmem:[#allocation3 + $0x68] sm:$0xff]
      %v1608 = vld [vmem:[#allocation3 + $0x70] sm:$0xff]
      %v1609 = vld [vmem:[#allocation3 + $0x78] sm:$0xff]
      %1610 = vst [vmem:[#allocation14] sm:$0xff] %v1594
      %1611 = vst [vmem:[#allocation14 + $0x8] sm:$0xff] %v1595
      %1612 = vst [vmem:[#allocation14 + $0x10] sm:$0xff] %v1596
      %1613 = vst [vmem:[#allocation14 + $0x18] sm:$0xff] %v1597
      %1614 = vst [vmem:[#allocation14 + $0x20] sm:$0xff] %v1598
      %1615 = vst [vmem:[#allocation14 + $0x28] sm:$0xff] %v1599
      %1616 = vst [vmem:[#allocation14 + $0x30] sm:$0xff] %v1600
      %1617 = vst [vmem:[#allocation14 + $0x38] sm:$0xff] %v1601
      %1618 = vst [vmem:[#allocation14 + $0x40] sm:$0xff] %v1602
      %1619 = vst [vmem:[#allocation14 + $0x48] sm:$0xff] %v1603
      %1620 = vst [vmem:[#allocation14 + $0x50] sm:$0xff] %v1604
      %1621 = vst [vmem:[#allocation14 + $0x58] sm:$0xff] %v1605
      %1622 = vst [vmem:[#allocation14 + $0x60] sm:$0xff] %v1606
      %1623 = vst [vmem:[#allocation14 + $0x68] sm:$0xff] %v1607
      %1624 = vst [vmem:[#allocation14 + $0x70] sm:$0xff] %v1608
      %1625 = vst [vmem:[#allocation14 + $0x78] sm:$0xff] %v1609
    $region57: #{tpu_custom_call.1} parent=1 // pred_fallthru
      _
    // Predicated region
    $region58: #{tpu_custom_call.1} parent=1 // pred_check
      _
    $region59: #{tpu_custom_call.1} parent=1 // pred_check_branch
      %1627 = sbr.rel (0) target = $region61
    $region60: #{tpu_custom_call.1} parent=1 // pred_region
      %s1629 = ssub.s32 2048, 2048
      %1630 = vsyncadd [#allocation6], %s1629
      %s1631 = sshll.u32 [#allocation13], 4
      %s1632 = int_to_ptr.vmem [resolvable:$true] %s1631
      %1637 = dma.vmem_to_hbm [thread:$0]  %s1632, 2048, %s7, [#allocation6], 128, 128, 8
    $region61: #{tpu_custom_call.1} parent=1 // pred_fallthru
      _
    // Predicated region
    $region62: #{tpu_custom_call.1} parent=1 // pred_check
      _
    $region63: #{tpu_custom_call.1} parent=1 // pred_check_branch
      %1639 = sbr.rel (0) target = $region65
    $region64: #{tpu_custom_call.1} parent=1 // pred_region
      %s1641 = ssub.s32 2048, 2048
      %1642 = vsyncadd [#allocation15], %s1641
      %s1643 = sshll.u32 [#allocation14], 4
      %s1644 = int_to_ptr.vmem [resolvable:$true] %s1643
      %1649 = dma.vmem_to_hbm [thread:$0]  %s1644, 2048, %s8, [#allocation15], 128, 128, 8
    $region65: #{tpu_custom_call.1} parent=1 // pred_fallthru
      _
    // Predicated region
    $region66: #{tpu_custom_call.1} parent=1 // pred_check
      _
    $region67: #{tpu_custom_call.1} parent=1 // pred_check_branch
      %1651 = sbr.rel (0) target = $region69
    $region68: #{tpu_custom_call.1} parent=1 // pred_region
      %1652 = dma.done [#allocation6], 2048
    $region69: #{tpu_custom_call.1} parent=1 // pred_fallthru
      _
    // Predicated region
    $region70: #{tpu_custom_call.1} parent=1 // pred_check
      _
    $region71: #{tpu_custom_call.1} parent=1 // pred_check_branch
      %1654 = sbr.rel (0) target = $region73
    $region72: #{tpu_custom_call.1} parent=1 // pred_region
      %1655 = dma.done [#allocation15], 2048
    $region73: #{tpu_custom_call.1} parent=1 // pred_fallthru
      _
    %1656 = vsyncpa [#allocation5], 1
    %1657 = vsyncpa [#allocation8], 1
    %1658 = vsyncpa [#allocation11], 1
    %1659 = vsyncpa [#allocation6], 1
    %1660 = vsyncpa [#allocation15], 1

</llo_original>
